<compile_context>
chip_gen: v5e
topology: v5e:2x2
jax: 0.10.0
libtpu: 0.0.40
codegen_flags: <defaults>
</compile_context>

<pallas_src>
import functools

import jax
import jax.numpy as jnp
from jax.experimental import pallas as pl
from jax.experimental.pallas import tpu as pltpu

# Scoped VMEM limit: safe on every chip (>= all defaults, < all physical sizes).
_VMEM_LIMIT_BYTES = 32 * 1024 * 1024

# Sublane-aligned left offset of the conv interior inside the halo scratch
# (multiple of 8 so the per-iteration interior store is an aligned vst).
_HALO = 8


def _pick_cin_tile(cin):
    """Cin reduction tile: divides Cin, keeps VMEM footprint modest."""
    for tc in (256, 512, 128):
        if cin % tc == 0:
            return tc
    return cin


def _pick_row_tile(n_out):
    """Hout row tile for the upsample kernel (edge tile may be partial)."""
    return n_out if n_out <= 128 else 128


# ----------------------------------------------------------------------------
# Kernel 1: fused conv3x3 + folded-BN + ReLU + conv1x1(+bias), Cin-chunked.
# bf16 MXU inputs, f32 accumulation in a persistent VMEM scratch. The 1-px
# conv halo is materialized in a VMEM scratch (no HBM pad pass in glue).
# ----------------------------------------------------------------------------
def _cbr_cls_kernel(H, W, x_ref, w3_ref, scale_ref, bias_ref,
                    wcls_ref, bcls_ref, out_ref, xp_ref, acc_ref):
    kc = pl.program_id(1)

    @pl.when(kc == 0)
    def _():
        acc_ref[...] = jnp.zeros_like(acc_ref)
        # Zero the halo scratch once per image. Only the interior is rewritten
        # below, so the zero border (conv padding) persists across Cin chunks.
        xp_ref[...] = jnp.zeros_like(xp_ref)

    # Place this Cin-chunk's tile at row 1 / sublane column _HALO (aligned
    # store); the 3x3 halo reads come out of the surrounding zero border.
    xp_ref[1:H + 1, _HALO:_HALO + W, :] = x_ref[0]

    xp = xp_ref[...]                                   # (H+2, W+2*_HALO, TC) bf16
    acc = acc_ref[...]                                 # (H, W, Cmid) f32
    # 3x3 conv as 9 shifted (H,W,TC)x(TC,Cmid) bf16 contractions on the MXU.
    # TODO(synk): the dx != 1 taps slice at sublane offsets 7/9; replace with a
    # pltpu.roll-based (XLU) shift at production shapes to skip the relayouts.
    for dy in range(3):
        for dx in range(3):
            patch = xp[dy:dy + H, dx + _HALO - 1:dx + _HALO - 1 + W, :]
            w = w3_ref[dy, dx]                         # (TC, Cmid) bf16
            acc = acc + jax.lax.dot_general(
                patch, w, (((2,), (0,)), ((), ())),
                preferred_element_type=jnp.float32)
    acc_ref[...] = acc

    @pl.when(kc == pl.num_programs(1) - 1)
    def _():
        # folded BatchNorm (inference) + ReLU in f32
        h = jnp.maximum(acc * scale_ref[0] + bias_ref[0], 0.0)
        # TODO(synk): Dropout(p=0.1) is identity here (eval-mode semantics).
        # 1x1 classification conv; classifier channels are padded to 128 lanes
        # so the store is lane-dense and the MXU N-tile is well utilized.
        logits = jax.lax.dot_general(
            h.astype(jnp.bfloat16), wcls_ref[...], (((2,), (0,)), ((), ())),
            preferred_element_type=jnp.float32) + bcls_ref[0]
        out_ref[0] = logits.astype(out_ref.dtype)


def cbr_classify(x_nhwc_bf16, w3_bf16, bn_scale, bn_bias, wcls_pad_bf16, bcls_pad):
    B, H, W, Cin = x_nhwc_bf16.shape
    Cmid = w3_bf16.shape[-1]
    NP = wcls_pad_bf16.shape[-1]
    TC = _pick_cin_tile(Cin)
    KC = Cin // TC

    # TODO(synk): for very large H*W the (H, W, Cmid) f32 accumulator would need
    # an extra spatial grid axis; PSPNet decode spatial (<=90x90) fits VMEM.
    kernel = functools.partial(_cbr_cls_kernel, H, W)
    return pl.pallas_call(
        kernel,
        out_shape=jax.ShapeDtypeStruct((B, H, W, NP), jnp.bfloat16),
        grid_spec=pltpu.PrefetchScalarGridSpec(
            num_scalar_prefetch=0,
            grid=(B, KC),                              # Cin reduction axis last
            in_specs=[
                pl.BlockSpec((1, H, W, TC), lambda b, k: (b, 0, 0, k)),
                pl.BlockSpec((3, 3, TC, Cmid), lambda b, k: (0, 0, k, 0)),
                pl.BlockSpec((1, Cmid), lambda b, k: (0, 0)),
                pl.BlockSpec((1, Cmid), lambda b, k: (0, 0)),
                pl.BlockSpec((Cmid, NP), lambda b, k: (0, 0)),
                pl.BlockSpec((1, NP), lambda b, k: (0, 0)),
            ],
            out_specs=pl.BlockSpec((1, H, W, NP), lambda b, k: (b, 0, 0, 0)),
            scratch_shapes=[
                pltpu.VMEM((H + 2, W + 2 * _HALO, TC), jnp.bfloat16),  # halo buf
                pltpu.VMEM((H, W, Cmid), jnp.float32),                 # f32 acc
            ],
        ),
        compiler_params=pltpu.CompilerParams(
            dimension_semantics=("parallel", "arbitrary"),
            vmem_limit_bytes=_VMEM_LIMIT_BYTES),
    )(x_nhwc_bf16, w3_bf16, bn_scale[None, :], bn_bias[None, :],
      wcls_pad_bf16, bcls_pad[None, :])


# ----------------------------------------------------------------------------
# Kernel 2: bilinear upsample (align_corners=True), channel-major, row-tiled.
# Emits NCHW directly: out[c] = A_h @ y[c] @ A_w^T (two lane-dense 2-D matmuls).
# ----------------------------------------------------------------------------
def _upsample_nchw_kernel(n_cls, y_ref, ah_ref, awt_ref, out_ref):
    ah = ah_ref[...]                                   # (THO, H)  bf16
    awt = awt_ref[...]                                 # (W, Wout) bf16
    for c in range(n_cls):                             # small static class loop
        yc = y_ref[0, c]                               # (H, W) bf16
        t = jnp.dot(ah, yc, preferred_element_type=jnp.float32)        # (THO, W)
        z = jnp.dot(t.astype(jnp.bfloat16), awt,
                    preferred_element_type=jnp.float32)                # (THO, Wout)
        out_ref[0, c] = z.astype(out_ref.dtype)


def _interp_matrix(n_out, n_in):
    # align_corners=True source coordinates (matches F.interpolate bilinear).
    if n_out == 1:
        src = jnp.zeros((1,), jnp.float32)
    else:
        src = jnp.arange(n_out, dtype=jnp.float32) * (n_in - 1) / (n_out - 1)
    i0 = jnp.clip(jnp.floor(src).astype(jnp.int32), 0, n_in - 1)
    i1 = jnp.clip(i0 + 1, 0, n_in - 1)
    frac = src - i0.astype(jnp.float32)
    return ((1.0 - frac)[:, None] * jax.nn.one_hot(i0, n_in, dtype=jnp.float32)
            + frac[:, None] * jax.nn.one_hot(i1, n_in, dtype=jnp.float32))


def bilinear_upsample_nchw(y_nchw, h_out, w_out):
    B, C, H, W = y_nchw.shape
    THO = _pick_row_tile(h_out)
    NTO = pl.cdiv(h_out, THO)

    # Pad the tiny row-interp matrix so every grid step reads in-bounds; the
    # partial final output block is masked by Pallas.
    ah = _interp_matrix(h_out, H)
    ah = jnp.pad(ah, ((0, NTO * THO - h_out), (0, 0))).astype(jnp.bfloat16)
    awt = _interp_matrix(w_out, W).T.astype(jnp.bfloat16)               # (W, Wout)

    kernel = functools.partial(_upsample_nchw_kernel, C)
    return pl.pallas_call(
        kernel,
        out_shape=jax.ShapeDtypeStruct((B, C, h_out, w_out), jnp.float32),
        grid_spec=pltpu.PrefetchScalarGridSpec(
            num_scalar_prefetch=0,
            grid=(B, NTO),
            in_specs=[
                pl.BlockSpec((1, C, H, W), lambda b, t: (b, 0, 0, 0)),
                pl.BlockSpec((THO, H), lambda b, t: (t, 0)),
                pl.BlockSpec((W, w_out), lambda b, t: (0, 0)),
            ],
            out_specs=pl.BlockSpec((1, C, THO, w_out), lambda b, t: (b, 0, t, 0)),
        ),
        compiler_params=pltpu.CompilerParams(
            dimension_semantics=("parallel", "parallel"),
            vmem_limit_bytes=_VMEM_LIMIT_BYTES),
    )(y_nchw.astype(jnp.bfloat16), ah, awt)


# ----------------------------------------------------------------------------
# Module wrapper (NCHW in / NCHW out, like the PyTorch module)
# ----------------------------------------------------------------------------
def decode_psp_feature(x_nchw, params, height, width):
    n_classes = params["wcls"].shape[-1]
    ncls_pad = 128 * pl.cdiv(n_classes, 128)

    # NCHW -> NHWC (channels on the lane axis for the conv contractions); bf16
    # operands halve HBM->VMEM DMA bytes and hit the MXU's bf16 peak.
    # TODO(synk): this layout transpose of the big input is the remaining glue
    # HBM pass; fold it into the producing PSP module once fused end-to-end.
    x = jnp.transpose(x_nchw, (0, 2, 3, 1)).astype(jnp.bfloat16)
    w3 = params["w3"].astype(jnp.bfloat16)
    wcls = jnp.pad(params["wcls"],
                   ((0, 0), (0, ncls_pad - n_classes))).astype(jnp.bfloat16)
    bcls = jnp.pad(params["bcls"], (0, ncls_pad - n_classes)).astype(jnp.float32)

    logits = cbr_classify(x, w3,
                          params["bn_scale"].astype(jnp.float32),
                          params["bn_bias"].astype(jnp.float32),
                          wcls, bcls)                       # (B, H, W, ncls_pad) bf16

    # Cheap glue transpose of the SMALL pre-upsample tensor to channel-major;
    # the big upsampled tensor is produced NCHW directly by kernel 2.
    y = jnp.transpose(logits[..., :n_classes], (0, 3, 1, 2))  # (B, ncls, H, W) bf16
    return bilinear_upsample_nchw(y, height, width)           # (B, ncls, Hout, Wout)


def init_params(key, in_channels, n_classes, c_mid=64):
    ks = jax.random.split(key, 7)
    w3 = jax.random.normal(ks[0], (3, 3, in_channels, c_mid), jnp.float32) * 0.1
    gamma = 1.0 + 0.1 * jax.random.normal(ks[1], (c_mid,), jnp.float32)
    beta = 0.1 * jax.random.normal(ks[2], (c_mid,), jnp.float32)
    run_mean = 0.1 * jax.random.normal(ks[3], (c_mid,), jnp.float32)
    run_var = jnp.abs(jax.random.normal(ks[4], (c_mid,), jnp.float32)) + 0.5
    eps = 1e-5
    bn_scale = gamma / jnp.sqrt(run_var + eps)
    bn_bias = beta - run_mean * bn_scale
    wcls = jax.random.normal(ks[5], (c_mid, n_classes), jnp.float32) * 0.05
    bcls = 0.01 * jax.random.normal(ks[6], (n_classes,), jnp.float32)
    return {"w3": w3, "bn_scale": bn_scale, "bn_bias": bn_bias,
            "wcls": wcls, "bcls": bcls}


if __name__ == "__main__":
    key = jax.random.PRNGKey(0)
    k_x, k_p = jax.random.split(key)

    B, Cin, H, W = 2, 4, 16, 16       # small test shapes
    n_classes = 8
    height, width = 32, 32            # target size for F.interpolate

    x = jax.random.normal(k_x, (B, Cin, H, W), jnp.float32)   # NCHW, like PyTorch
    params = init_params(k_p, Cin, n_classes, c_mid=64)

    out = decode_psp_feature(x, params, height, width)
    out = jax.block_until_ready(out)
    assert out.shape == (B, n_classes, height, width), out.shape
    assert jnp.isfinite(out).all()
    print("KERNEL_OK")
</pallas_src>

<mosaic_0001>
module attributes {stable_mosaic.version = 11 : i64} {
  func.func @_cbr_cls_kernel(%arg0: i32, %arg1: i32, %arg2: memref<1x16x16x4xbf16, #tpu.memory_space<vmem>>, %arg3: memref<3x3x4x64xbf16, #tpu.memory_space<vmem>>, %arg4: memref<1x64xf32, #tpu.memory_space<vmem>>, %arg5: memref<1x64xf32, #tpu.memory_space<vmem>>, %arg6: memref<64x128xbf16, #tpu.memory_space<vmem>>, %arg7: memref<1x128xf32, #tpu.memory_space<vmem>>, %arg8: memref<1x16x16x128xbf16, #tpu.memory_space<vmem>>, %arg9: memref<18x32x4xbf16, #tpu.memory_space<vmem>>, %arg10: memref<16x16x64xf32, #tpu.memory_space<vmem>>) attributes {dimension_semantics = [#tpu.dimension_semantics<parallel>, #tpu.dimension_semantics<arbitrary>], iteration_bounds = array<i64: 2, 1>, scalar_prefetch = 0 : i64, scratch_operands = 2 : i64, tpu.core_type = #tpu.core_type<tc>, window_params = [{transform_indices = @transform_0, window_bounds = array<i64: 1, 16, 16, 4>}, {transform_indices = @transform_1, window_bounds = array<i64: 3, 3, 4, 64>}, {pipeline_mode = #tpu.pipeline_mode<synchronous>, transform_indices = @transform_2, window_bounds = array<i64: 1, 64>}, {pipeline_mode = #tpu.pipeline_mode<synchronous>, transform_indices = @transform_3, window_bounds = array<i64: 1, 64>}, {pipeline_mode = #tpu.pipeline_mode<synchronous>, transform_indices = @transform_4, window_bounds = array<i64: 64, 128>}, {pipeline_mode = #tpu.pipeline_mode<synchronous>, transform_indices = @transform_5, window_bounds = array<i64: 1, 128>}, {transform_indices = @transform_6, window_bounds = array<i64: 1, 16, 16, 128>}]} {
    %c0_i32 = arith.constant 0 : i32
    %0 = arith.cmpi eq, %arg1, %c0_i32 : i32
    %1 = arith.extui %0 : i1 to i32
    %c0_i32_0 = arith.constant 0 : i32
    %2 = arith.cmpi ne, %1, %c0_i32_0 : i32
    scf.if %2 {
      %cst_59 = arith.constant 0.000000e+00 : f32
      %57 = vector.broadcast %cst_59 : f32 to vector<16x16x64xf32>
      %c0_60 = arith.constant 0 : index
      %c0_61 = arith.constant 0 : index
      %c0_62 = arith.constant 0 : index
      %58 = vector.load %arg10[%c0_60, %c0_61, %c0_62] : memref<16x16x64xf32, #tpu.memory_space<vmem>>, vector<16x16x64xf32>
      tpu.vector_store %arg10[%c0_60, %c0_61, %c0_62], %57 {strides = array<i32>} : memref<16x16x64xf32, #tpu.memory_space<vmem>>, vector<16x16x64xf32>,
      %cst_63 = arith.constant 0.000000e+00 : bf16
      %59 = vector.broadcast %cst_63 : bf16 to vector<18x32x4xbf16>
      %c0_64 = arith.constant 0 : index
      %c0_65 = arith.constant 0 : index
      %c0_66 = arith.constant 0 : index
      %60 = vector.load %arg9[%c0_64, %c0_65, %c0_66] : memref<18x32x4xbf16, #tpu.memory_space<vmem>>, vector<18x32x4xbf16>
      tpu.vector_store %arg9[%c0_64, %c0_65, %c0_66], %59 {strides = array<i32>} : memref<18x32x4xbf16, #tpu.memory_space<vmem>>, vector<18x32x4xbf16>,
    } else {
    }
    %c0 = arith.constant 0 : index
    %c0_1 = arith.constant 0 : index
    %c0_2 = arith.constant 0 : index
    %c0_3 = arith.constant 0 : index
    %3 = vector.load %arg2[%c0, %c0_1, %c0_2, %c0_3] : memref<1x16x16x4xbf16, #tpu.memory_space<vmem>>, vector<1x16x16x4xbf16>
    %4 = vector.shape_cast %3 : vector<1x16x16x4xbf16> to vector<16x16x4xbf16>
    %c1 = arith.constant 1 : index
    %c8 = arith.constant 8 : index
    %c0_4 = arith.constant 0 : index
    %5 = vector.load %arg9[%c1, %c8, %c0_4] : memref<18x32x4xbf16, #tpu.memory_space<vmem>>, vector<16x16x4xbf16>
    tpu.vector_store %arg9[%c1, %c8, %c0_4], %4 {strides = array<i32>} : memref<18x32x4xbf16, #tpu.memory_space<vmem>>, vector<16x16x4xbf16>,
    %c0_5 = arith.constant 0 : index
    %c0_6 = arith.constant 0 : index
    %c0_7 = arith.constant 0 : index
    %6 = vector.load %arg9[%c0_5, %c0_6, %c0_7] : memref<18x32x4xbf16, #tpu.memory_space<vmem>>, vector<18x32x4xbf16>
    %c0_8 = arith.constant 0 : index
    %c0_9 = arith.constant 0 : index
    %c0_10 = arith.constant 0 : index
    %7 = vector.load %arg10[%c0_8, %c0_9, %c0_10] : memref<16x16x64xf32, #tpu.memory_space<vmem>>, vector<16x16x64xf32>
    %8 = vector.extract_strided_slice %6 {offsets = [0, 7, 0], sizes = [16, 16, 4], strides = [1, 1, 1]} : vector<18x32x4xbf16> to vector<16x16x4xbf16>
    %c0_11 = arith.constant 0 : index
    %c0_12 = arith.constant 0 : index
    %c0_13 = arith.constant 0 : index
    %c0_14 = arith.constant 0 : index
    %9 = vector.load %arg3[%c0_11, %c0_12, %c0_13, %c0_14] : memref<3x3x4x64xbf16, #tpu.memory_space<vmem>>, vector<1x1x4x64xbf16>
    %10 = vector.shape_cast %9 : vector<1x1x4x64xbf16> to vector<4x64xbf16>
    %cst = arith.constant dense<0.000000e+00> : vector<16x16x64xf32>
    %11 = tpu.matmul %8, %10, %cst {dimension_numbers = #tpu.dot_dimension_numbers<[2], [0], [0, 1], [1], [0, 0, 0, 1, 1, 1], [], []>} : vector<16x16x4xbf16>, vector<4x64xbf16>, vector<16x16x64xf32> -> vector<16x16x64xf32>
    %12 = arith.addf %7, %11 : vector<16x16x64xf32>
    %13 = vector.extract_strided_slice %6 {offsets = [0, 8, 0], sizes = [16, 16, 4], strides = [1, 1, 1]} : vector<18x32x4xbf16> to vector<16x16x4xbf16>
    %c0_15 = arith.constant 0 : index
    %c1_16 = arith.constant 1 : index
    %c0_17 = arith.constant 0 : index
    %c0_18 = arith.constant 0 : index
    %14 = vector.load %arg3[%c0_15, %c1_16, %c0_17, %c0_18] : memref<3x3x4x64xbf16, #tpu.memory_space<vmem>>, vector<1x1x4x64xbf16>
    %15 = vector.shape_cast %14 : vector<1x1x4x64xbf16> to vector<4x64xbf16>
    %cst_19 = arith.constant dense<0.000000e+00> : vector<16x16x64xf32>
    %16 = tpu.matmul %13, %15, %cst_19 {dimension_numbers = #tpu.dot_dimension_numbers<[2], [0], [0, 1], [1], [0, 0, 0, 1, 1, 1], [], []>} : vector<16x16x4xbf16>, vector<4x64xbf16>, vector<16x16x64xf32> -> vector<16x16x64xf32>
    %17 = arith.addf %12, %16 : vector<16x16x64xf32>
    %18 = vector.extract_strided_slice %6 {offsets = [0, 9, 0], sizes = [16, 16, 4], strides = [1, 1, 1]} : vector<18x32x4xbf16> to vector<16x16x4xbf16>
    %c0_20 = arith.constant 0 : index
    %c2 = arith.constant 2 : index
    %c0_21 = arith.constant 0 : index
    %c0_22 = arith.constant 0 : index
    %19 = vector.load %arg3[%c0_20, %c2, %c0_21, %c0_22] : memref<3x3x4x64xbf16, #tpu.memory_space<vmem>>, vector<1x1x4x64xbf16>
    %20 = vector.shape_cast %19 : vector<1x1x4x64xbf16> to vector<4x64xbf16>
    %cst_23 = arith.constant dense<0.000000e+00> : vector<16x16x64xf32>
    %21 = tpu.matmul %18, %20, %cst_23 {dimension_numbers = #tpu.dot_dimension_numbers<[2], [0], [0, 1], [1], [0, 0, 0, 1, 1, 1], [], []>} : vector<16x16x4xbf16>, vector<4x64xbf16>, vector<16x16x64xf32> -> vector<16x16x64xf32>
    %22 = arith.addf %17, %21 : vector<16x16x64xf32>
    %23 = vector.extract_strided_slice %6 {offsets = [1, 7, 0], sizes = [16, 16, 4], strides = [1, 1, 1]} : vector<18x32x4xbf16> to vector<16x16x4xbf16>
    %c1_24 = arith.constant 1 : index
    %c0_25 = arith.constant 0 : index
    %c0_26 = arith.constant 0 : index
    %c0_27 = arith.constant 0 : index
    %24 = vector.load %arg3[%c1_24, %c0_25, %c0_26, %c0_27] : memref<3x3x4x64xbf16, #tpu.memory_space<vmem>>, vector<1x1x4x64xbf16>
    %25 = vector.shape_cast %24 : vector<1x1x4x64xbf16> to vector<4x64xbf16>
    %cst_28 = arith.constant dense<0.000000e+00> : vector<16x16x64xf32>
    %26 = tpu.matmul %23, %25, %cst_28 {dimension_numbers = #tpu.dot_dimension_numbers<[2], [0], [0, 1], [1], [0, 0, 0, 1, 1, 1], [], []>} : vector<16x16x4xbf16>, vector<4x64xbf16>, vector<16x16x64xf32> -> vector<16x16x64xf32>
    %27 = arith.addf %22, %26 : vector<16x16x64xf32>
    %28 = vector.extract_strided_slice %6 {offsets = [1, 8, 0], sizes = [16, 16, 4], strides = [1, 1, 1]} : vector<18x32x4xbf16> to vector<16x16x4xbf16>
    %c1_29 = arith.constant 1 : index
    %c1_30 = arith.constant 1 : index
    %c0_31 = arith.constant 0 : index
    %c0_32 = arith.constant 0 : index
    %29 = vector.load %arg3[%c1_29, %c1_30, %c0_31, %c0_32] : memref<3x3x4x64xbf16, #tpu.memory_space<vmem>>, vector<1x1x4x64xbf16>
    %30 = vector.shape_cast %29 : vector<1x1x4x64xbf16> to vector<4x64xbf16>
    %cst_33 = arith.constant dense<0.000000e+00> : vector<16x16x64xf32>
    %31 = tpu.matmul %28, %30, %cst_33 {dimension_numbers = #tpu.dot_dimension_numbers<[2], [0], [0, 1], [1], [0, 0, 0, 1, 1, 1], [], []>} : vector<16x16x4xbf16>, vector<4x64xbf16>, vector<16x16x64xf32> -> vector<16x16x64xf32>
    %32 = arith.addf %27, %31 : vector<16x16x64xf32>
    %33 = vector.extract_strided_slice %6 {offsets = [1, 9, 0], sizes = [16, 16, 4], strides = [1, 1, 1]} : vector<18x32x4xbf16> to vector<16x16x4xbf16>
    %c1_34 = arith.constant 1 : index
    %c2_35 = arith.constant 2 : index
    %c0_36 = arith.constant 0 : index
    %c0_37 = arith.constant 0 : index
    %34 = vector.load %arg3[%c1_34, %c2_35, %c0_36, %c0_37] : memref<3x3x4x64xbf16, #tpu.memory_space<vmem>>, vector<1x1x4x64xbf16>
    %35 = vector.shape_cast %34 : vector<1x1x4x64xbf16> to vector<4x64xbf16>
    %cst_38 = arith.constant dense<0.000000e+00> : vector<16x16x64xf32>
    %36 = tpu.matmul %33, %35, %cst_38 {dimension_numbers = #tpu.dot_dimension_numbers<[2], [0], [0, 1], [1], [0, 0, 0, 1, 1, 1], [], []>} : vector<16x16x4xbf16>, vector<4x64xbf16>, vector<16x16x64xf32> -> vector<16x16x64xf32>
    %37 = arith.addf %32, %36 : vector<16x16x64xf32>
    %38 = vector.extract_strided_slice %6 {offsets = [2, 7, 0], sizes = [16, 16, 4], strides = [1, 1, 1]} : vector<18x32x4xbf16> to vector<16x16x4xbf16>
    %c2_39 = arith.constant 2 : index
    %c0_40 = arith.constant 0 : index
    %c0_41 = arith.constant 0 : index
    %c0_42 = arith.constant 0 : index
    %39 = vector.load %arg3[%c2_39, %c0_40, %c0_41, %c0_42] : memref<3x3x4x64xbf16, #tpu.memory_space<vmem>>, vector<1x1x4x64xbf16>
    %40 = vector.shape_cast %39 : vector<1x1x4x64xbf16> to vector<4x64xbf16>
    %cst_43 = arith.constant dense<0.000000e+00> : vector<16x16x64xf32>
    %41 = tpu.matmul %38, %40, %cst_43 {dimension_numbers = #tpu.dot_dimension_numbers<[2], [0], [0, 1], [1], [0, 0, 0, 1, 1, 1], [], []>} : vector<16x16x4xbf16>, vector<4x64xbf16>, vector<16x16x64xf32> -> vector<16x16x64xf32>
    %42 = arith.addf %37, %41 : vector<16x16x64xf32>
    %43 = vector.extract_strided_slice %6 {offsets = [2, 8, 0], sizes = [16, 16, 4], strides = [1, 1, 1]} : vector<18x32x4xbf16> to vector<16x16x4xbf16>
    %c2_44 = arith.constant 2 : index
    %c1_45 = arith.constant 1 : index
    %c0_46 = arith.constant 0 : index
    %c0_47 = arith.constant 0 : index
    %44 = vector.load %arg3[%c2_44, %c1_45, %c0_46, %c0_47] : memref<3x3x4x64xbf16, #tpu.memory_space<vmem>>, vector<1x1x4x64xbf16>
    %45 = vector.shape_cast %44 : vector<1x1x4x64xbf16> to vector<4x64xbf16>
    %cst_48 = arith.constant dense<0.000000e+00> : vector<16x16x64xf32>
    %46 = tpu.matmul %43, %45, %cst_48 {dimension_numbers = #tpu.dot_dimension_numbers<[2], [0], [0, 1], [1], [0, 0, 0, 1, 1, 1], [], []>} : vector<16x16x4xbf16>, vector<4x64xbf16>, vector<16x16x64xf32> -> vector<16x16x64xf32>
    %47 = arith.addf %42, %46 : vector<16x16x64xf32>
    %48 = vector.extract_strided_slice %6 {offsets = [2, 9, 0], sizes = [16, 16, 4], strides = [1, 1, 1]} : vector<18x32x4xbf16> to vector<16x16x4xbf16>
    %c2_49 = arith.constant 2 : index
    %c2_50 = arith.constant 2 : index
    %c0_51 = arith.constant 0 : index
    %c0_52 = arith.constant 0 : index
    %49 = vector.load %arg3[%c2_49, %c2_50, %c0_51, %c0_52] : memref<3x3x4x64xbf16, #tpu.memory_space<vmem>>, vector<1x1x4x64xbf16>
    %50 = vector.shape_cast %49 : vector<1x1x4x64xbf16> to vector<4x64xbf16>
    %cst_53 = arith.constant dense<0.000000e+00> : vector<16x16x64xf32>
    %51 = tpu.matmul %48, %50, %cst_53 {dimension_numbers = #tpu.dot_dimension_numbers<[2], [0], [0, 1], [1], [0, 0, 0, 1, 1, 1], [], []>} : vector<16x16x4xbf16>, vector<4x64xbf16>, vector<16x16x64xf32> -> vector<16x16x64xf32>
    %52 = arith.addf %47, %51 : vector<16x16x64xf32>
    %c0_54 = arith.constant 0 : index
    %c0_55 = arith.constant 0 : index
    %c0_56 = arith.constant 0 : index
    %53 = vector.load %arg10[%c0_54, %c0_55, %c0_56] : memref<16x16x64xf32, #tpu.memory_space<vmem>>, vector<16x16x64xf32>
    tpu.vector_store %arg10[%c0_54, %c0_55, %c0_56], %52 {strides = array<i32>} : memref<16x16x64xf32, #tpu.memory_space<vmem>>, vector<16x16x64xf32>,
    %c0_i32_57 = arith.constant 0 : i32
    %54 = arith.cmpi eq, %arg1, %c0_i32_57 : i32
    %55 = arith.extui %54 : i1 to i32
    %c0_i32_58 = arith.constant 0 : i32
    %56 = arith.cmpi ne, %55, %c0_i32_58 : i32
    scf.if %56 {
      %c0_59 = arith.constant 0 : index
      %c0_60 = arith.constant 0 : index
      %57 = vector.load %arg4[%c0_59, %c0_60] : memref<1x64xf32, #tpu.memory_space<vmem>>, vector<1x64xf32>
      %58 = vector.shape_cast %57 : vector<1x64xf32> to vector<64xf32>
      %59 = vector.shape_cast %58 : vector<64xf32> to vector<1x1x64xf32>
      %60 = vector.broadcast %59 : vector<1x1x64xf32> to vector<16x16x64xf32>
      %61 = arith.mulf %52, %60 : vector<16x16x64xf32>
      %c0_61 = arith.constant 0 : index
      %c0_62 = arith.constant 0 : index
      %62 = vector.load %arg5[%c0_61, %c0_62] : memref<1x64xf32, #tpu.memory_space<vmem>>, vector<1x64xf32>
      %63 = vector.shape_cast %62 : vector<1x64xf32> to vector<64xf32>
      %64 = vector.shape_cast %63 : vector<64xf32> to vector<1x1x64xf32>
      %65 = vector.broadcast %64 : vector<1x1x64xf32> to vector<16x16x64xf32>
      %66 = arith.addf %61, %65 : vector<16x16x64xf32>
      %cst_63 = arith.constant 0.000000e+00 : f32
      %67 = vector.broadcast %cst_63 : f32 to vector<16x16x64xf32>
      %68 = arith.maximumf %66, %67 : vector<16x16x64xf32>
      %69 = arith.truncf %68 : vector<16x16x64xf32> to vector<16x16x64xbf16>
      %c0_64 = arith.constant 0 : index
      %c0_65 = arith.constant 0 : index
      %70 = vector.load %arg6[%c0_64, %c0_65] : memref<64x128xbf16, #tpu.memory_space<vmem>>, vector<64x128xbf16>
      %cst_66 = arith.constant dense<0.000000e+00> : vector<16x16x128xf32>
      %71 = tpu.matmul %69, %70, %cst_66 {dimension_numbers = #tpu.dot_dimension_numbers<[2], [0], [0, 1], [1], [0, 0, 0, 1, 1, 1], [], []>} : vector<16x16x64xbf16>, vector<64x128xbf16>, vector<16x16x128xf32> -> vector<16x16x128xf32>
      %c0_67 = arith.constant 0 : index
      %c0_68 = arith.constant 0 : index
      %72 = vector.load %arg7[%c0_67, %c0_68] : memref<1x128xf32, #tpu.memory_space<vmem>>, vector<1x128xf32>
      %73 = vector.shape_cast %72 : vector<1x128xf32> to vector<128xf32>
      %74 = vector.shape_cast %73 : vector<128xf32> to vector<1x1x128xf32>
      %75 = vector.broadcast %74 : vector<1x1x128xf32> to vector<16x16x128xf32>
      %76 = arith.addf %71, %75 : vector<16x16x128xf32>
      %77 = arith.truncf %76 : vector<16x16x128xf32> to vector<16x16x128xbf16>
      %c0_69 = arith.constant 0 : index
      %c0_70 = arith.constant 0 : index
      %c0_71 = arith.constant 0 : index
      %c0_72 = arith.constant 0 : index
      %78 = vector.load %arg8[%c0_69, %c0_70, %c0_71, %c0_72] : memref<1x16x16x128xbf16, #tpu.memory_space<vmem>>, vector<1x16x16x128xbf16>
      %79 = vector.shape_cast %78 : vector<1x16x16x128xbf16> to vector<16x16x128xbf16>
      %80 = vector.shape_cast %77 : vector<16x16x128xbf16> to vector<1x16x16x128xbf16>
      tpu.vector_store %arg8[%c0_69, %c0_70, %c0_71, %c0_72], %80 {strides = array<i32>} : memref<1x16x16x128xbf16, #tpu.memory_space<vmem>>, vector<1x16x16x128xbf16>,
    } else {
    }
    return
  }
  func.func @transform_0(%arg0: i32, %arg1: i32) -> (i32, i32, i32, i32) {
    %c0_i32 = arith.constant 0 : i32
    %c0_i32_0 = arith.constant 0 : i32
    %c0_i32_1 = arith.constant 0 : i32
    return %arg0, %c0_i32, %c0_i32_0, %arg1 : i32, i32, i32, i32
  }
  func.func @transform_1(%arg0: i32, %arg1: i32) -> (i32, i32, i32, i32) {
    %c0_i32 = arith.constant 0 : i32
    %c0_i32_0 = arith.constant 0 : i32
    %c0_i32_1 = arith.constant 0 : i32
    %c0_i32_2 = arith.constant 0 : i32
    return %c0_i32, %c0_i32_0, %arg1, %c0_i32_1 : i32, i32, i32, i32
  }
  func.func @transform_2(%arg0: i32, %arg1: i32) -> (i32, i32) {
    %c0_i32 = arith.constant 0 : i32
    %c0_i32_0 = arith.constant 0 : i32
    %c0_i32_1 = arith.constant 0 : i32
    return %c0_i32, %c0_i32_0 : i32, i32
  }
  func.func @transform_3(%arg0: i32, %arg1: i32) -> (i32, i32) {
    %c0_i32 = arith.constant 0 : i32
    %c0_i32_0 = arith.constant 0 : i32
    %c0_i32_1 = arith.constant 0 : i32
    return %c0_i32, %c0_i32_0 : i32, i32
  }
  func.func @transform_4(%arg0: i32, %arg1: i32) -> (i32, i32) {
    %c0_i32 = arith.constant 0 : i32
    %c0_i32_0 = arith.constant 0 : i32
    %c0_i32_1 = arith.constant 0 : i32
    return %c0_i32, %c0_i32_0 : i32, i32
  }
  func.func @transform_5(%arg0: i32, %arg1: i32) -> (i32, i32) {
    %c0_i32 = arith.constant 0 : i32
    %c0_i32_0 = arith.constant 0 : i32
    %c0_i32_1 = arith.constant 0 : i32
    return %c0_i32, %c0_i32_0 : i32, i32
  }
  func.func @transform_6(%arg0: i32, %arg1: i32) -> (i32, i32, i32, i32) {
    %c0_i32 = arith.constant 0 : i32
    %c0_i32_0 = arith.constant 0 : i32
    %c0_i32_1 = arith.constant 0 : i32
    %c0_i32_2 = arith.constant 0 : i32
    return %arg0, %c0_i32, %c0_i32_0, %c0_i32_1 : i32, i32, i32, i32
  }
}

</mosaic_0001>

<llo_original>
// kernel: tpu_custom_call.1
$region0: #{tpu_custom_call.1}
  #allocation0 [shape = 'u32[]', space=smem, size = 0x4, offset = 0x4, fixed_abs, tag = 'smem constant byte address 0x4 - core index']
  #allocation1 [shape = 'u32[72,128]{1,0:T(1,128)}', space=vmem, size = 0x9000, scoped, tag = 'internal scratch']
  #allocation2 [shape = 'bf16[18,32,4]{2,1,0:T(8,128)(2,1)}', space=vmem, size = 0x24000, scoped, tag = 'scratch operand']
  #allocation3 [shape = 'f32[16,16,64]{2,1,0:T(8,128)}', space=vmem, size = 0x20000, scoped, tag = 'scratch operand']
  %s0 = inlined_call_operand.vmem [shape: bf16[2,16,16,4], index: 0, kind: input, shape index: {}]
  %s1 = inlined_call_operand.vmem [shape: bf16[3,3,4,64], index: 1, kind: input, shape index: {}]
  %s2 = inlined_call_operand.vmem [shape: f32[1,64], index: 2, kind: input, shape index: {}]
  %s3 = inlined_call_operand.vmem [shape: f32[1,64], index: 3, kind: input, shape index: {}]
  %s4 = inlined_call_operand.vmem [shape: bf16[64,128], index: 4, kind: input, shape index: {}]
  %s5 = inlined_call_operand.vmem [shape: f32[1,128], index: 5, kind: input, shape index: {}]
  %s6 = inlined_call_operand.hbm [shape: bf16[2,16,16,128], index: 6, kind: output, shape index: {}]
  %s7 = sld [smem:[#allocation0]]
  $region65: #{tpu_custom_call.1} parent=0
    _
  %s9 = ssub.s32 1, %s7
  %s10 = scalar_select 0, %s9, %s7
  $region1: #{tpu_custom_call.1} parent=0
    #allocation4 [shape = 'u8[131072]{0}', space=vmem, size = 0x20000, scoped, tag = 'output window, operand 0']
    #allocation5 [shape = 's32[2]{0}', space=sflag, size = 0x8, scoped, tag = 'scoped memory for tpu_custom_call.1']
    %11 = vsyncpa [#allocation5], 0
    %s12 = scalar_lea.sflag [#allocation5], 1
    %13 = vsyncpa %s12, 0
    loop: start=0, step=1, limit=4
    $region2: #{tpu_custom_call.1} parent=1 // loop_pre_header
      _
    $region3: #{tpu_custom_call.1} parent=1 // loop_header
      %s15 = sphi 0, %s19
      %p16 = scmp.ge.s32.totalorder %s15, 4
      %s22 = sphi 0, %s34
      %s23 = sphi 0, %s30
      %s24 = sphi 0, %s22
      %s25 = sphi 0, %s23
      %s26 = sphi 0, %s24
      %s27 = sphi 0, %s25
      %s39 = sphi 0, %s41
      %s42 = sphi 0, %s39
      %s43 = sphi 0, %s42
      %s59 = sphi 0, %s43
      %s65 = sphi 0, %s67
      %s68 = sphi 0, %s65
      %s69 = sphi 0, %s68
      %s85 = sphi 0, %s69
      %s89 = sphi 0, %s89
      %s91 = sphi 0, %s89
      %s92 = sphi 0, %s91
      %s106 = sphi 0, %s92
      %s110 = sphi 0, %s110
      %s112 = sphi 0, %s110
      %s113 = sphi 0, %s112
      %s127 = sphi 0, %s113
      %s131 = sphi 0, %s131
      %s133 = sphi 0, %s131
      %s134 = sphi 0, %s133
      %s148 = sphi 0, %s134
      %s152 = sphi 0, %s152
      %s154 = sphi 0, %s152
      %s155 = sphi 0, %s154
      %s169 = sphi 0, %s155
      %s175 = sphi 0, %s177
      %s178 = sphi 0, %s175
      %s179 = sphi 0, %s178
      %s195 = sphi 0, %s179
    $region4: #{tpu_custom_call.1} parent=1 // loop_header_branch
      %18 = sbr.rel (%p16) target = $region8
    $region5: #{tpu_custom_call.1} parent=1 // loop_body
      %s20 = ssub.s32 %s15, 1
      %s21 = ssub.s32 %s15, 2
      %s28 = sadd.s32 1, %s23
      %p29 = scmp.ge.s32.totalorder %s28, 1
      %s30 = scalar_select %p29, 0, %s28
      %s31 = sadd.s32 1, %s22
      %s32 = scalar_select %p29, %s31, %s22
      %p33 = scmp.ge.s32.totalorder %s32, 2
      %s34 = scalar_select %p33, 0, %s32
      %s35 = ssub.s32 %s22, %s34
      %s36 = ssub.s32 %s23, %s30
      %s37 = sor.u32 %s35, %s36
      %p38 = scmp.eq.s32.totalorder %s37, 0
      %s40 = sadd.s32 %s39, 1
      %s41 = scalar_select %p38, %s39, %s40
      %p44 = pneg %p38
      %p45 = scmp.eq.s32.totalorder %s15, 1
      %p46 = por %p44, %p45
      %p47 = scmp.ne.s32.totalorder %s39, %s42
      %p48 = scmp.eq.s32.totalorder %s15, 0
      %p49 = por %p47, %p48
      %p50 = scmp.ne.s32.totalorder %s39, %s42
      %p51 = scmp.eq.s32.totalorder %s20, 1
      %p52 = por %p50, %p51
      %p53 = scmp.ne.s32.totalorder %s42, %s43
      %p54 = scmp.eq.s32.totalorder %s20, 0
      %p55 = por %p53, %p54
      %p56 = scmp.ne.s32.totalorder %s42, %s43
      %p57 = scmp.eq.s32.totalorder %s21, 1
      %p58 = por %p56, %p57
      %p60 = scmp.ne.s32.totalorder %s43, %s59
      %p61 = scmp.eq.s32.totalorder %s21, 0
      %p62 = por %p60, %p61
      %s63 = ssub.s32 %s23, %s30
      %p64 = scmp.eq.s32.totalorder %s63, 0
      %s66 = sadd.s32 %s65, 1
      %s67 = scalar_select %p64, %s65, %s66
      %p70 = pneg %p64
      %p71 = scmp.eq.s32.totalorder %s15, 1
      %p72 = por %p70, %p71
      %p73 = scmp.ne.s32.totalorder %s65, %s68
      %p74 = scmp.eq.s32.totalorder %s15, 0
      %p75 = por %p73, %p74
      %p76 = scmp.ne.s32.totalorder %s65, %s68
      %p77 = scmp.eq.s32.totalorder %s20, 1
      %p78 = por %p76, %p77
      %p79 = scmp.ne.s32.totalorder %s68, %s69
      %p80 = scmp.eq.s32.totalorder %s20, 0
      %p81 = por %p79, %p80
      %p82 = scmp.ne.s32.totalorder %s68, %s69
      %p83 = scmp.eq.s32.totalorder %s21, 1
      %p84 = por %p82, %p83
      %p86 = scmp.ne.s32.totalorder %s69, %s85
      %p87 = scmp.eq.s32.totalorder %s21, 0
      %p88 = por %p86, %p87
      %s90 = sadd.s32 %s89, 1
      %p93 = scmp.eq.s32.totalorder %s15, 1
      %p94 = scmp.ne.s32.totalorder %s89, %s91
      %p95 = scmp.eq.s32.totalorder %s15, 0
      %p96 = por %p94, %p95
      %p97 = scmp.ne.s32.totalorder %s89, %s91
      %p98 = scmp.eq.s32.totalorder %s20, 1
      %p99 = por %p97, %p98
      %p100 = scmp.ne.s32.totalorder %s91, %s92
      %p101 = scmp.eq.s32.totalorder %s20, 0
      %p102 = por %p100, %p101
      %p103 = scmp.ne.s32.totalorder %s91, %s92
      %p104 = scmp.eq.s32.totalorder %s21, 1
      %p105 = por %p103, %p104
      %p107 = scmp.ne.s32.totalorder %s92, %s106
      %p108 = scmp.eq.s32.totalorder %s21, 0
      %p109 = por %p107, %p108
      %s111 = sadd.s32 %s110, 1
      %p114 = scmp.eq.s32.totalorder %s15, 1
      %p115 = scmp.ne.s32.totalorder %s110, %s112
      %p116 = scmp.eq.s32.totalorder %s15, 0
      %p117 = por %p115, %p116
      %p118 = scmp.ne.s32.totalorder %s110, %s112
      %p119 = scmp.eq.s32.totalorder %s20, 1
      %p120 = por %p118, %p119
      %p121 = scmp.ne.s32.totalorder %s112, %s113
      %p122 = scmp.eq.s32.totalorder %s20, 0
      %p123 = por %p121, %p122
      %p124 = scmp.ne.s32.totalorder %s112, %s113
      %p125 = scmp.eq.s32.totalorder %s21, 1
      %p126 = por %p124, %p125
      %p128 = scmp.ne.s32.totalorder %s113, %s127
      %p129 = scmp.eq.s32.totalorder %s21, 0
      %p130 = por %p128, %p129
      %s132 = sadd.s32 %s131, 1
      %p135 = scmp.eq.s32.totalorder %s15, 1
      %p136 = scmp.ne.s32.totalorder %s131, %s133
      %p137 = scmp.eq.s32.totalorder %s15, 0
      %p138 = por %p136, %p137
      %p139 = scmp.ne.s32.totalorder %s131, %s133
      %p140 = scmp.eq.s32.totalorder %s20, 1
      %p141 = por %p139, %p140
      %p142 = scmp.ne.s32.totalorder %s133, %s134
      %p143 = scmp.eq.s32.totalorder %s20, 0
      %p144 = por %p142, %p143
      %p145 = scmp.ne.s32.totalorder %s133, %s134
      %p146 = scmp.eq.s32.totalorder %s21, 1
      %p147 = por %p145, %p146
      %p149 = scmp.ne.s32.totalorder %s134, %s148
      %p150 = scmp.eq.s32.totalorder %s21, 0
      %p151 = por %p149, %p150
      %s153 = sadd.s32 %s152, 1
      %p156 = scmp.eq.s32.totalorder %s15, 1
      %p157 = scmp.ne.s32.totalorder %s152, %s154
      %p158 = scmp.eq.s32.totalorder %s15, 0
      %p159 = por %p157, %p158
      %p160 = scmp.ne.s32.totalorder %s152, %s154
      %p161 = scmp.eq.s32.totalorder %s20, 1
      %p162 = por %p160, %p161
      %p163 = scmp.ne.s32.totalorder %s154, %s155
      %p164 = scmp.eq.s32.totalorder %s20, 0
      %p165 = por %p163, %p164
      %p166 = scmp.ne.s32.totalorder %s154, %s155
      %p167 = scmp.eq.s32.totalorder %s21, 1
      %p168 = por %p166, %p167
      %p170 = scmp.ne.s32.totalorder %s155, %s169
      %p171 = scmp.eq.s32.totalorder %s21, 0
      %p172 = por %p170, %p171
      %s173 = ssub.s32 %s22, %s34
      %p174 = scmp.eq.s32.totalorder %s173, 0
      %s176 = sadd.s32 %s175, 1
      %s177 = scalar_select %p174, %s175, %s176
      %p180 = pneg %p174
      %p181 = scmp.eq.s32.totalorder %s15, 1
      %p182 = por %p180, %p181
      %p183 = scmp.ne.s32.totalorder %s175, %s178
      %p184 = scmp.eq.s32.totalorder %s15, 0
      %p185 = por %p183, %p184
      %p186 = scmp.ne.s32.totalorder %s175, %s178
      %p187 = scmp.eq.s32.totalorder %s20, 1
      %p188 = por %p186, %p187
      %p189 = scmp.ne.s32.totalorder %s178, %s179
      %p190 = scmp.eq.s32.totalorder %s20, 0
      %p191 = por %p189, %p190
      %p192 = scmp.ne.s32.totalorder %s178, %s179
      %p193 = scmp.eq.s32.totalorder %s21, 1
      %p194 = por %p192, %p193
      %p196 = scmp.ne.s32.totalorder %s179, %s195
      %p197 = scmp.eq.s32.totalorder %s21, 0
      %p198 = por %p196, %p197
      %p199 = scmp.le.s32.totalorder 1, %s15
      %p200 = scmp.lt.s32.totalorder %s15, 3
      %p201 = pnand %p199, %p200
      %p202 = pneg %p201
      // Predicated region
      $region9: #{tpu_custom_call.1} parent=5 // pred_check
        _
      $region10: #{tpu_custom_call.1} parent=5 // pred_check_branch
        %204 = sbr.rel (%p201) target = $region12
      $region11: #{tpu_custom_call.1} parent=5 // pred_region
        %s205 = ssub.s32 %s15, 1
        // Predicated region
        $region13: #{tpu_custom_call.1} parent=11 // pred_check
          %p206 = pneg %p81
        $region14: #{tpu_custom_call.1} parent=11 // pred_check_branch
          %208 = sbr.rel (%p206) target = $region16
        $region15: #{tpu_custom_call.1} parent=11 // pred_region
          %p209 = scmp.lt.s32.totalorder %s25, 0
          %s210 = scalar_select %p209, %s25, 0
          %s211 = smul.addr %s210, 2
          %s212 = scalar_lea.vmem %s1, %s211
        $region16: #{tpu_custom_call.1} parent=11 // pred_fallthru
          _
        // Predicated region
        $region17: #{tpu_custom_call.1} parent=11 // pred_check
          %p213 = pneg %p102
        $region18: #{tpu_custom_call.1} parent=11 // pred_check_branch
          %215 = sbr.rel (%p213) target = $region20
        $region19: #{tpu_custom_call.1} parent=11 // pred_region
          _
        $region20: #{tpu_custom_call.1} parent=11 // pred_fallthru
          _
        // Predicated region
        $region21: #{tpu_custom_call.1} parent=11 // pred_check
          %p216 = pneg %p123
        $region22: #{tpu_custom_call.1} parent=11 // pred_check_branch
          %218 = sbr.rel (%p216) target = $region24
        $region23: #{tpu_custom_call.1} parent=11 // pred_region
          _
        $region24: #{tpu_custom_call.1} parent=11 // pred_fallthru
          _
        // Predicated region
        $region25: #{tpu_custom_call.1} parent=11 // pred_check
          %p219 = pneg %p144
        $region26: #{tpu_custom_call.1} parent=11 // pred_check_branch
          %221 = sbr.rel (%p219) target = $region28
        $region27: #{tpu_custom_call.1} parent=11 // pred_region
          _
        $region28: #{tpu_custom_call.1} parent=11 // pred_fallthru
          _
        // Predicated region
        $region29: #{tpu_custom_call.1} parent=11 // pred_check
          %p222 = pneg %p165
        $region30: #{tpu_custom_call.1} parent=11 // pred_check_branch
          %224 = sbr.rel (%p222) target = $region32
        $region31: #{tpu_custom_call.1} parent=11 // pred_region
          _
        $region32: #{tpu_custom_call.1} parent=11 // pred_fallthru
          _
      $region12: #{tpu_custom_call.1} parent=5 // pred_fallthru
        _
      %p225 = scmp.lt.s32.totalorder %s15, 2
      // Predicated region
      $region33: #{tpu_custom_call.1} parent=5 // pred_check
        %p226 = pneg %p225
      $region34: #{tpu_custom_call.1} parent=5 // pred_check_branch
        %228 = sbr.rel (%p226) target = $region36
      $region35: #{tpu_custom_call.1} parent=5 // pred_region
        // Predicated region
        $region37: #{tpu_custom_call.1} parent=35 // pred_check
          %p229 = pneg %p49
        $region38: #{tpu_custom_call.1} parent=35 // pred_check_branch
          %231 = sbr.rel (%p229) target = $region40
        $region39: #{tpu_custom_call.1} parent=35 // pred_region
          %p232 = scmp.lt.s32.totalorder %s22, 1
          %s233 = scalar_select %p232, %s22, 1
          %p234 = scmp.lt.s32.totalorder %s23, 0
          %s235 = scalar_select %p234, %s23, 0
          %s236 = smul.addr %s233, 32
          %s237 = sadd.s32 %s235, %s236
          %s238 = smul.addr %s237, 4
          %s239 = scalar_lea.vmem %s0, %s238
        $region40: #{tpu_custom_call.1} parent=35 // pred_fallthru
          _
      $region36: #{tpu_custom_call.1} parent=5 // pred_fallthru
        _
      %p240 = scmp.le.s32.totalorder 1, %s15
      %p241 = scmp.lt.s32.totalorder %s15, 3
      %p242 = pnand %p240, %p241
      %p243 = pneg %p242
      // Predicated region
      $region41: #{tpu_custom_call.1} parent=5 // pred_check
        _
      $region42: #{tpu_custom_call.1} parent=5 // pred_check_branch
        %245 = sbr.rel (%p242) target = $region44
      $region43: #{tpu_custom_call.1} parent=5 // pred_region
        %s246 = ssub.s32 %s15, 1
        %p247 = scmp.lt.s32.totalorder %s24, 1
        %s248 = scalar_select %p247, %s24, 1
        %p249 = scmp.lt.s32.totalorder %s25, 0
        %s250 = scalar_select %p249, %s25, 0
        %s251 = smul.addr %s248, 32
        %s252 = sadd.s32 %s250, %s251
        %s253 = smul.addr %s252, 4
        %s254 = scalar_lea.vmem %s0, %s253
        %p255 = pneg %p55
        %p256 = pneg %p52
        %p257 = scmp.lt.s32.totalorder %s25, 0
        %s258 = scalar_select %p257, %s25, 0
        %s259 = smul.addr %s258, 2
        %s260 = scalar_lea.vmem %s1, %s259
        %p261 = pneg %p81
        %p262 = pneg %p78
        %p263 = pneg %p102
        %p264 = pneg %p99
        %p265 = pneg %p123
        %p266 = pneg %p120
        %p267 = pneg %p144
        %p268 = pneg %p141
        %p269 = pneg %p165
        %p270 = pneg %p162
        %p271 = pneg %p191
        %p272 = pneg %p188
        %s273 = sand.u32 %s178, 1
        %s274 = scalar_lea.sflag [#allocation5], %s273
        %s275 = sand.u32 %s178, 1
        %s276 = smul.addr %s275, 128
        %s277 = scalar_lea.vmem [#allocation4], %s276
        %p278 = scmp.lt.s32.totalorder %s24, 1
        %s279 = scalar_select %p278, %s24, 1
        %p280 = scmp.lt.s32.totalorder %s25, 0
        %s281 = scalar_select %p280, %s25, 0
        %s282 = smul.addr %s279, 32
        %s283 = sadd.s32 %s281, %s282
        %s284 = smul.addr %s283, 4
        %s285 = scalar_lea.vmem %s0, %s284
        %p286 = scmp.lt.s32.totalorder %s25, 0
        %s287 = scalar_select %p286, %s25, 0
        %s288 = smul.addr %s287, 2
        %s289 = scalar_lea.vmem %s1, %s288
        %p291 = scmp.eq.s32.totalorder %s25, 0
        // Predicated region
        $region45: #{tpu_custom_call.1} parent=43 // pred_check
          %p292 = pneg %p291
        $region46: #{tpu_custom_call.1} parent=43 // pred_check_branch
          %294 = sbr.rel (%p292) target = $region48
        $region47: #{tpu_custom_call.1} parent=43 // pred_region
          %vm295 = vcmask 523264
          %296 = vst.msk [vmem:[#allocation3] sm:$0xff] %vm295, 0.0
          %297 = vst.msk [vmem:[#allocation3 + $0x8] sm:$0xff] %vm295, 0.0
          %298 = vst.msk [vmem:[#allocation3 + $0x10] sm:$0xff] %vm295, 0.0
          %299 = vst.msk [vmem:[#allocation3 + $0x18] sm:$0xff] %vm295, 0.0
          %300 = vst.msk [vmem:[#allocation3 + $0x20] sm:$0xff] %vm295, 0.0
          %301 = vst.msk [vmem:[#allocation3 + $0x28] sm:$0xff] %vm295, 0.0
          %302 = vst.msk [vmem:[#allocation3 + $0x30] sm:$0xff] %vm295, 0.0
          %303 = vst.msk [vmem:[#allocation3 + $0x38] sm:$0xff] %vm295, 0.0
          %304 = vst.msk [vmem:[#allocation3 + $0x40] sm:$0xff] %vm295, 0.0
          %305 = vst.msk [vmem:[#allocation3 + $0x48] sm:$0xff] %vm295, 0.0
          %306 = vst.msk [vmem:[#allocation3 + $0x50] sm:$0xff] %vm295, 0.0
          %307 = vst.msk [vmem:[#allocation3 + $0x58] sm:$0xff] %vm295, 0.0
          %308 = vst.msk [vmem:[#allocation3 + $0x60] sm:$0xff] %vm295, 0.0
          %309 = vst.msk [vmem:[#allocation3 + $0x68] sm:$0xff] %vm295, 0.0
          %310 = vst.msk [vmem:[#allocation3 + $0x70] sm:$0xff] %vm295, 0.0
          %311 = vst.msk [vmem:[#allocation3 + $0x78] sm:$0xff] %vm295, 0.0
          %312 = vst.msk [vmem:[#allocation3 + $0x80] sm:$0xff] %vm295, 0.0
          %313 = vst.msk [vmem:[#allocation3 + $0x88] sm:$0xff] %vm295, 0.0
          %314 = vst.msk [vmem:[#allocation3 + $0x90] sm:$0xff] %vm295, 0.0
          %315 = vst.msk [vmem:[#allocation3 + $0x98] sm:$0xff] %vm295, 0.0
          %316 = vst.msk [vmem:[#allocation3 + $0xa0] sm:$0xff] %vm295, 0.0
          %317 = vst.msk [vmem:[#allocation3 + $0xa8] sm:$0xff] %vm295, 0.0
          %318 = vst.msk [vmem:[#allocation3 + $0xb0] sm:$0xff] %vm295, 0.0
          %319 = vst.msk [vmem:[#allocation3 + $0xb8] sm:$0xff] %vm295, 0.0
          %320 = vst.msk [vmem:[#allocation3 + $0xc0] sm:$0xff] %vm295, 0.0
          %321 = vst.msk [vmem:[#allocation3 + $0xc8] sm:$0xff] %vm295, 0.0
          %322 = vst.msk [vmem:[#allocation3 + $0xd0] sm:$0xff] %vm295, 0.0
          %323 = vst.msk [vmem:[#allocation3 + $0xd8] sm:$0xff] %vm295, 0.0
          %324 = vst.msk [vmem:[#allocation3 + $0xe0] sm:$0xff] %vm295, 0.0
          %325 = vst.msk [vmem:[#allocation3 + $0xe8] sm:$0xff] %vm295, 0.0
          %326 = vst.msk [vmem:[#allocation3 + $0xf0] sm:$0xff] %vm295, 0.0
          %327 = vst.msk [vmem:[#allocation3 + $0xf8] sm:$0xff] %vm295, 0.0
          %vm328 = vcmask 27648
          %329 = vst.msk [vmem:[#allocation2] sm:$0xf] %vm328, 0
          %330 = vst.msk [vmem:[#allocation2 + $0x4] sm:$0xf] %vm328, 0
          %331 = vst.msk [vmem:[#allocation2 + $0x8] sm:$0xf] %vm328, 0
          %332 = vst.msk [vmem:[#allocation2 + $0xc] sm:$0xf] %vm328, 0
          %333 = vst.msk [vmem:[#allocation2 + $0x10] sm:$0xf] %vm328, 0
          %334 = vst.msk [vmem:[#allocation2 + $0x14] sm:$0xf] %vm328, 0
          %335 = vst.msk [vmem:[#allocation2 + $0x18] sm:$0xf] %vm328, 0
          %336 = vst.msk [vmem:[#allocation2 + $0x1c] sm:$0xf] %vm328, 0
          %337 = vst.msk [vmem:[#allocation2 + $0x20] sm:$0xf] %vm328, 0
          %338 = vst.msk [vmem:[#allocation2 + $0x24] sm:$0xf] %vm328, 0
          %339 = vst.msk [vmem:[#allocation2 + $0x28] sm:$0xf] %vm328, 0
          %340 = vst.msk [vmem:[#allocation2 + $0x2c] sm:$0xf] %vm328, 0
          %341 = vst.msk [vmem:[#allocation2 + $0x30] sm:$0xf] %vm328, 0
          %342 = vst.msk [vmem:[#allocation2 + $0x34] sm:$0xf] %vm328, 0
          %343 = vst.msk [vmem:[#allocation2 + $0x38] sm:$0xf] %vm328, 0
          %344 = vst.msk [vmem:[#allocation2 + $0x3c] sm:$0xf] %vm328, 0
          %345 = vst.msk [vmem:[#allocation2 + $0x40] sm:$0xf] %vm328, 0
          %346 = vst.msk [vmem:[#allocation2 + $0x44] sm:$0xf] %vm328, 0
          %347 = vst.msk [vmem:[#allocation2 + $0x48] sm:$0xf] %vm328, 0
          %348 = vst.msk [vmem:[#allocation2 + $0x4c] sm:$0xf] %vm328, 0
          %349 = vst.msk [vmem:[#allocation2 + $0x50] sm:$0xf] %vm328, 0
          %350 = vst.msk [vmem:[#allocation2 + $0x54] sm:$0xf] %vm328, 0
          %351 = vst.msk [vmem:[#allocation2 + $0x58] sm:$0xf] %vm328, 0
          %352 = vst.msk [vmem:[#allocation2 + $0x5c] sm:$0xf] %vm328, 0
          %353 = vst.msk [vmem:[#allocation2 + $0x60] sm:$0xf] %vm328, 0
          %354 = vst.msk [vmem:[#allocation2 + $0x64] sm:$0xf] %vm328, 0
          %355 = vst.msk [vmem:[#allocation2 + $0x68] sm:$0xf] %vm328, 0
          %356 = vst.msk [vmem:[#allocation2 + $0x6c] sm:$0xf] %vm328, 0
          %357 = vst.msk [vmem:[#allocation2 + $0x70] sm:$0xf] %vm328, 0
          %358 = vst.msk [vmem:[#allocation2 + $0x74] sm:$0xf] %vm328, 0
          %359 = vst.msk [vmem:[#allocation2 + $0x78] sm:$0xf] %vm328, 0
          %360 = vst.msk [vmem:[#allocation2 + $0x7c] sm:$0xf] %vm328, 0
          %361 = vst.msk [vmem:[#allocation2 + $0x80] sm:$0xf] %vm328, 0
          %362 = vst.msk [vmem:[#allocation2 + $0x84] sm:$0xf] %vm328, 0
          %363 = vst.msk [vmem:[#allocation2 + $0x88] sm:$0xf] %vm328, 0
          %364 = vst.msk [vmem:[#allocation2 + $0x8c] sm:$0xf] %vm328, 0
          %365 = vst.msk [vmem:[#allocation2 + $0x90] sm:$0xf] %vm328, 0
          %366 = vst.msk [vmem:[#allocation2 + $0x94] sm:$0xf] %vm328, 0
          %367 = vst.msk [vmem:[#allocation2 + $0x98] sm:$0xf] %vm328, 0
          %368 = vst.msk [vmem:[#allocation2 + $0x9c] sm:$0xf] %vm328, 0
          %369 = vst.msk [vmem:[#allocation2 + $0xa0] sm:$0xf] %vm328, 0
          %370 = vst.msk [vmem:[#allocation2 + $0xa4] sm:$0xf] %vm328, 0
          %371 = vst.msk [vmem:[#allocation2 + $0xa8] sm:$0xf] %vm328, 0
          %372 = vst.msk [vmem:[#allocation2 + $0xac] sm:$0xf] %vm328, 0
          %373 = vst.msk [vmem:[#allocation2 + $0xb0] sm:$0xf] %vm328, 0
          %374 = vst.msk [vmem:[#allocation2 + $0xb4] sm:$0xf] %vm328, 0
          %375 = vst.msk [vmem:[#allocation2 + $0xb8] sm:$0xf] %vm328, 0
          %376 = vst.msk [vmem:[#allocation2 + $0xbc] sm:$0xf] %vm328, 0
          %377 = vst.msk [vmem:[#allocation2 + $0xc0] sm:$0xf] %vm328, 0
          %378 = vst.msk [vmem:[#allocation2 + $0xc4] sm:$0xf] %vm328, 0
          %379 = vst.msk [vmem:[#allocation2 + $0xc8] sm:$0xf] %vm328, 0
          %380 = vst.msk [vmem:[#allocation2 + $0xcc] sm:$0xf] %vm328, 0
          %381 = vst.msk [vmem:[#allocation2 + $0xd0] sm:$0xf] %vm328, 0
          %382 = vst.msk [vmem:[#allocation2 + $0xd4] sm:$0xf] %vm328, 0
          %383 = vst.msk [vmem:[#allocation2 + $0xd8] sm:$0xf] %vm328, 0
          %384 = vst.msk [vmem:[#allocation2 + $0xdc] sm:$0xf] %vm328, 0
          %385 = vst.msk [vmem:[#allocation2 + $0xe0] sm:$0xf] %vm328, 0
          %386 = vst.msk [vmem:[#allocation2 + $0xe4] sm:$0xf] %vm328, 0
          %387 = vst.msk [vmem:[#allocation2 + $0xe8] sm:$0xf] %vm328, 0
          %388 = vst.msk [vmem:[#allocation2 + $0xec] sm:$0xf] %vm328, 0
          %389 = vst.msk [vmem:[#allocation2 + $0xf0] sm:$0xf] %vm328, 0
          %390 = vst.msk [vmem:[#allocation2 + $0xf4] sm:$0xf] %vm328, 0
          %391 = vst.msk [vmem:[#allocation2 + $0xf8] sm:$0xf] %vm328, 0
          %392 = vst.msk [vmem:[#allocation2 + $0xfc] sm:$0xf] %vm328, 0
          %393 = vst.msk [vmem:[#allocation2 + $0x100] sm:$0xf] %vm328, 0
          %394 = vst.msk [vmem:[#allocation2 + $0x104] sm:$0xf] %vm328, 0
          %395 = vst.msk [vmem:[#allocation2 + $0x108] sm:$0xf] %vm328, 0
          %396 = vst.msk [vmem:[#allocation2 + $0x10c] sm:$0xf] %vm328, 0
          %397 = vst.msk [vmem:[#allocation2 + $0x110] sm:$0xf] %vm328, 0
          %398 = vst.msk [vmem:[#allocation2 + $0x114] sm:$0xf] %vm328, 0
          %399 = vst.msk [vmem:[#allocation2 + $0x118] sm:$0xf] %vm328, 0
          %400 = vst.msk [vmem:[#allocation2 + $0x11c] sm:$0xf] %vm328, 0
        $region48: #{tpu_custom_call.1} parent=43 // pred_fallthru
          _
        %v401 = vld [vmem:[%s285] sm:$0xf]
        %v402 = vld [vmem:[%s285 + $0x4] sm:$0xf]
        %v403 = vld [vmem:[%s285 + $0x8] sm:$0xf]
        %v404 = vld [vmem:[%s285 + $0xc] sm:$0xf]
        %v405 = vld [vmem:[%s285 + $0x10] sm:$0xf]
        %v406 = vld [vmem:[%s285 + $0x14] sm:$0xf]
        %v407 = vld [vmem:[%s285 + $0x18] sm:$0xf]
        %v408 = vld [vmem:[%s285 + $0x1c] sm:$0xf]
        %v409 = vld [vmem:[%s285 + $0x20] sm:$0xf]
        %v410 = vld [vmem:[%s285 + $0x24] sm:$0xf]
        %v411 = vld [vmem:[%s285 + $0x28] sm:$0xf]
        %v412 = vld [vmem:[%s285 + $0x2c] sm:$0xf]
        %v413 = vld [vmem:[%s285 + $0x30] sm:$0xf]
        %v414 = vld [vmem:[%s285 + $0x34] sm:$0xf]
        %v415 = vld [vmem:[%s285 + $0x38] sm:$0xf]
        %v416 = vld [vmem:[%s285 + $0x3c] sm:$0xf]
        %v417 = vld [vmem:[%s285 + $0x40] sm:$0xf]
        %v418 = vld [vmem:[%s285 + $0x44] sm:$0xf]
        %v419 = vld [vmem:[%s285 + $0x48] sm:$0xf]
        %v420 = vld [vmem:[%s285 + $0x4c] sm:$0xf]
        %v421 = vld [vmem:[%s285 + $0x50] sm:$0xf]
        %v422 = vld [vmem:[%s285 + $0x54] sm:$0xf]
        %v423 = vld [vmem:[%s285 + $0x58] sm:$0xf]
        %v424 = vld [vmem:[%s285 + $0x5c] sm:$0xf]
        %v425 = vld [vmem:[%s285 + $0x60] sm:$0xf]
        %v426 = vld [vmem:[%s285 + $0x64] sm:$0xf]
        %v427 = vld [vmem:[%s285 + $0x68] sm:$0xf]
        %v428 = vld [vmem:[%s285 + $0x6c] sm:$0xf]
        %v429 = vld [vmem:[%s285 + $0x70] sm:$0xf]
        %v430 = vld [vmem:[%s285 + $0x74] sm:$0xf]
        %v431 = vld [vmem:[%s285 + $0x78] sm:$0xf]
        %v432 = vld [vmem:[%s285 + $0x7c] sm:$0xf]
        %s433 = scalar_lea.vmem [#allocation2], 16
        %vm434 = vcmask 27648
        %435 = vst.msk [vmem:[%s433 + $0x4] sm:$0xf] %vm434, %v401
        %436 = vst.msk [vmem:[%s433 + $0x8] sm:$0xf] %vm434, %v402
        %437 = vst.msk [vmem:[%s433 + $0x14] sm:$0xf] %vm434, %v403
        %438 = vst.msk [vmem:[%s433 + $0x18] sm:$0xf] %vm434, %v404
        %439 = vst.msk [vmem:[%s433 + $0x24] sm:$0xf] %vm434, %v405
        %440 = vst.msk [vmem:[%s433 + $0x28] sm:$0xf] %vm434, %v406
        %441 = vst.msk [vmem:[%s433 + $0x34] sm:$0xf] %vm434, %v407
        %442 = vst.msk [vmem:[%s433 + $0x38] sm:$0xf] %vm434, %v408
        %443 = vst.msk [vmem:[%s433 + $0x44] sm:$0xf] %vm434, %v409
        %444 = vst.msk [vmem:[%s433 + $0x48] sm:$0xf] %vm434, %v410
        %445 = vst.msk [vmem:[%s433 + $0x54] sm:$0xf] %vm434, %v411
        %446 = vst.msk [vmem:[%s433 + $0x58] sm:$0xf] %vm434, %v412
        %447 = vst.msk [vmem:[%s433 + $0x64] sm:$0xf] %vm434, %v413
        %448 = vst.msk [vmem:[%s433 + $0x68] sm:$0xf] %vm434, %v414
        %449 = vst.msk [vmem:[%s433 + $0x74] sm:$0xf] %vm434, %v415
        %450 = vst.msk [vmem:[%s433 + $0x78] sm:$0xf] %vm434, %v416
        %451 = vst.msk [vmem:[%s433 + $0x84] sm:$0xf] %vm434, %v417
        %452 = vst.msk [vmem:[%s433 + $0x88] sm:$0xf] %vm434, %v418
        %453 = vst.msk [vmem:[%s433 + $0x94] sm:$0xf] %vm434, %v419
        %454 = vst.msk [vmem:[%s433 + $0x98] sm:$0xf] %vm434, %v420
        %455 = vst.msk [vmem:[%s433 + $0xa4] sm:$0xf] %vm434, %v421
        %456 = vst.msk [vmem:[%s433 + $0xa8] sm:$0xf] %vm434, %v422
        %457 = vst.msk [vmem:[%s433 + $0xb4] sm:$0xf] %vm434, %v423
        %458 = vst.msk [vmem:[%s433 + $0xb8] sm:$0xf] %vm434, %v424
        %459 = vst.msk [vmem:[%s433 + $0xc4] sm:$0xf] %vm434, %v425
        %460 = vst.msk [vmem:[%s433 + $0xc8] sm:$0xf] %vm434, %v426
        %461 = vst.msk [vmem:[%s433 + $0xd4] sm:$0xf] %vm434, %v427
        %462 = vst.msk [vmem:[%s433 + $0xd8] sm:$0xf] %vm434, %v428
        %463 = vst.msk [vmem:[%s433 + $0xe4] sm:$0xf] %vm434, %v429
        %464 = vst.msk [vmem:[%s433 + $0xe8] sm:$0xf] %vm434, %v430
        %465 = vst.msk [vmem:[%s433 + $0xf4] sm:$0xf] %vm434, %v431
        %466 = vst.msk [vmem:[%s433 + $0xf8] sm:$0xf] %vm434, %v432
        %v467 = vld [vmem:[#allocation2] sm:$0xf]
        %v468 = vld [vmem:[#allocation2 + $0x4] sm:$0xf]
        %v469 = vld [vmem:[#allocation2 + $0x8] sm:$0xf]
        %v470 = vld [vmem:[#allocation2 + $0xc] sm:$0xf]
        %v471 = vld [vmem:[#allocation2 + $0x10] sm:$0xf]
        %v472 = vld [vmem:[#allocation2 + $0x14] sm:$0xf]
        %v473 = vld [vmem:[#allocation2 + $0x18] sm:$0xf]
        %v474 = vld [vmem:[#allocation2 + $0x1c] sm:$0xf]
        %v475 = vld [vmem:[#allocation2 + $0x20] sm:$0xf]
        %v476 = vld [vmem:[#allocation2 + $0x24] sm:$0xf]
        %v477 = vld [vmem:[#allocation2 + $0x28] sm:$0xf]
        %v478 = vld [vmem:[#allocation2 + $0x2c] sm:$0xf]
        %v479 = vld [vmem:[#allocation2 + $0x30] sm:$0xf]
        %v480 = vld [vmem:[#allocation2 + $0x34] sm:$0xf]
        %v481 = vld [vmem:[#allocation2 + $0x38] sm:$0xf]
        %v482 = vld [vmem:[#allocation2 + $0x3c] sm:$0xf]
        %v483 = vld [vmem:[#allocation2 + $0x40] sm:$0xf]
        %v484 = vld [vmem:[#allocation2 + $0x44] sm:$0xf]
        %v485 = vld [vmem:[#allocation2 + $0x48] sm:$0xf]
        %v486 = vld [vmem:[#allocation2 + $0x4c] sm:$0xf]
        %v487 = vld [vmem:[#allocation2 + $0x50] sm:$0xf]
        %v488 = vld [vmem:[#allocation2 + $0x54] sm:$0xf]
        %v489 = vld [vmem:[#allocation2 + $0x58] sm:$0xf]
        %v490 = vld [vmem:[#allocation2 + $0x5c] sm:$0xf]
        %v491 = vld [vmem:[#allocation2 + $0x60] sm:$0xf]
        %v492 = vld [vmem:[#allocation2 + $0x64] sm:$0xf]
        %v493 = vld [vmem:[#allocation2 + $0x68] sm:$0xf]
        %v494 = vld [vmem:[#allocation2 + $0x6c] sm:$0xf]
        %v495 = vld [vmem:[#allocation2 + $0x70] sm:$0xf]
        %v496 = vld [vmem:[#allocation2 + $0x74] sm:$0xf]
        %v497 = vld [vmem:[#allocation2 + $0x78] sm:$0xf]
        %v498 = vld [vmem:[#allocation2 + $0x7c] sm:$0xf]
        %v499 = vld [vmem:[#allocation2 + $0x80] sm:$0xf]
        %v500 = vld [vmem:[#allocation2 + $0x84] sm:$0xf]
        %v501 = vld [vmem:[#allocation2 + $0x88] sm:$0xf]
        %v502 = vld [vmem:[#allocation2 + $0x8c] sm:$0xf]
        %v503 = vld [vmem:[#allocation2 + $0x90] sm:$0xf]
        %v504 = vld [vmem:[#allocation2 + $0x94] sm:$0xf]
        %v505 = vld [vmem:[#allocation2 + $0x98] sm:$0xf]
        %v506 = vld [vmem:[#allocation2 + $0x9c] sm:$0xf]
        %v507 = vld [vmem:[#allocation2 + $0xa0] sm:$0xf]
        %v508 = vld [vmem:[#allocation2 + $0xa4] sm:$0xf]
        %v509 = vld [vmem:[#allocation2 + $0xa8] sm:$0xf]
        %v510 = vld [vmem:[#allocation2 + $0xac] sm:$0xf]
        %v511 = vld [vmem:[#allocation2 + $0xb0] sm:$0xf]
        %v512 = vld [vmem:[#allocation2 + $0xb4] sm:$0xf]
        %v513 = vld [vmem:[#allocation2 + $0xb8] sm:$0xf]
        %v514 = vld [vmem:[#allocation2 + $0xbc] sm:$0xf]
        %v515 = vld [vmem:[#allocation2 + $0xc0] sm:$0xf]
        %v516 = vld [vmem:[#allocation2 + $0xc4] sm:$0xf]
        %v517 = vld [vmem:[#allocation2 + $0xc8] sm:$0xf]
        %v518 = vld [vmem:[#allocation2 + $0xcc] sm:$0xf]
        %v519 = vld [vmem:[#allocation2 + $0xd0] sm:$0xf]
        %v520 = vld [vmem:[#allocation2 + $0xd4] sm:$0xf]
        %v521 = vld [vmem:[#allocation2 + $0xd8] sm:$0xf]
        %v522 = vld [vmem:[#allocation2 + $0xdc] sm:$0xf]
        %v523 = vld [vmem:[#allocation2 + $0xe0] sm:$0xf]
        %v524 = vld [vmem:[#allocation2 + $0xe4] sm:$0xf]
        %v525 = vld [vmem:[#allocation2 + $0xe8] sm:$0xf]
        %v526 = vld [vmem:[#allocation2 + $0xec] sm:$0xf]
        %v527 = vld [vmem:[#allocation2 + $0xf0] sm:$0xf]
        %v528 = vld [vmem:[#allocation2 + $0xf4] sm:$0xf]
        %v529 = vld [vmem:[#allocation2 + $0xf8] sm:$0xf]
        %v530 = vld [vmem:[#allocation2 + $0xfc] sm:$0xf]
        %v531 = vld [vmem:[#allocation2 + $0x100] sm:$0xf]
        %v532 = vld [vmem:[#allocation2 + $0x104] sm:$0xf]
        %v533 = vld [vmem:[#allocation2 + $0x108] sm:$0xf]
        %v534 = vld [vmem:[#allocation2 + $0x10c] sm:$0xf]
        %v535 = vld [vmem:[#allocation2 + $0x110] sm:$0xf]
        %v536 = vld [vmem:[#allocation2 + $0x114] sm:$0xf]
        %v537 = vld [vmem:[#allocation2 + $0x118] sm:$0xf]
        %v538 = vld [vmem:[#allocation2 + $0x11c] sm:$0xf]
        %v539 = vld [vmem:[#allocation3] sm:$0xff]
        %v540 = vld [vmem:[#allocation3 + $0x8] sm:$0xff]
        %v541 = vld [vmem:[#allocation3 + $0x10] sm:$0xff]
        %v542 = vld [vmem:[#allocation3 + $0x18] sm:$0xff]
        %v543 = vld [vmem:[#allocation3 + $0x20] sm:$0xff]
        %v544 = vld [vmem:[#allocation3 + $0x28] sm:$0xff]
        %v545 = vld [vmem:[#allocation3 + $0x30] sm:$0xff]
        %v546 = vld [vmem:[#allocation3 + $0x38] sm:$0xff]
        %v547 = vld [vmem:[#allocation3 + $0x40] sm:$0xff]
        %v548 = vld [vmem:[#allocation3 + $0x48] sm:$0xff]
        %v549 = vld [vmem:[#allocation3 + $0x50] sm:$0xff]
        %v550 = vld [vmem:[#allocation3 + $0x58] sm:$0xff]
        %v551 = vld [vmem:[#allocation3 + $0x60] sm:$0xff]
        %v552 = vld [vmem:[#allocation3 + $0x68] sm:$0xff]
        %v553 = vld [vmem:[#allocation3 + $0x70] sm:$0xff]
        %v554 = vld [vmem:[#allocation3 + $0x78] sm:$0xff]
        %v555 = vld [vmem:[#allocation3 + $0x80] sm:$0xff]
        %v556 = vld [vmem:[#allocation3 + $0x88] sm:$0xff]
        %v557 = vld [vmem:[#allocation3 + $0x90] sm:$0xff]
        %v558 = vld [vmem:[#allocation3 + $0x98] sm:$0xff]
        %v559 = vld [vmem:[#allocation3 + $0xa0] sm:$0xff]
        %v560 = vld [vmem:[#allocation3 + $0xa8] sm:$0xff]
        %v561 = vld [vmem:[#allocation3 + $0xb0] sm:$0xff]
        %v562 = vld [vmem:[#allocation3 + $0xb8] sm:$0xff]
        %v563 = vld [vmem:[#allocation3 + $0xc0] sm:$0xff]
        %v564 = vld [vmem:[#allocation3 + $0xc8] sm:$0xff]
        %v565 = vld [vmem:[#allocation3 + $0xd0] sm:$0xff]
        %v566 = vld [vmem:[#allocation3 + $0xd8] sm:$0xff]
        %v567 = vld [vmem:[#allocation3 + $0xe0] sm:$0xff]
        %v568 = vld [vmem:[#allocation3 + $0xe8] sm:$0xff]
        %v569 = vld [vmem:[#allocation3 + $0xf0] sm:$0xff]
        %v570 = vld [vmem:[#allocation3 + $0xf8] sm:$0xff]
        %v571 = vld [vmem:[%s289] sm:$0x3]
        %vm572 = vsmask.f32 256
        %vm573 = vsmask.f32 4368
        %vm574 = vmor %vm572, %vm573
        %v576 = vshrl.u32 %v467, 16
        %v578 = vrot.slane %v576, 7
        %v579 = vrot.slane %v578, 4
        %v581 = vshrl.u32 %v468, 16
        %v583 = vrot.slane %v581, 7
        %v584 = vshll.u32 %v468, 16
        %v586 = vor.u32 %v583, %v584
        %v587 = vsel %vm574, %v579, %v586
        %v588 = vrot.slane %v583, 4
        %v590 = vshrl.u32 %v469, 16
        %v592 = vrot.slane %v590, 7
        %v593 = vshll.u32 %v469, 16
        %v595 = vor.u32 %v592, %v593
        %v596 = vsel %vm574, %v588, %v595
        %v598 = vshrl.u32 %v471, 16
        %v600 = vrot.slane %v598, 7
        %v601 = vrot.slane %v600, 4
        %v603 = vshrl.u32 %v472, 16
        %v605 = vrot.slane %v603, 7
        %v606 = vshll.u32 %v472, 16
        %v608 = vor.u32 %v605, %v606
        %v609 = vsel %vm574, %v601, %v608
        %v610 = vrot.slane %v605, 4
        %v612 = vshrl.u32 %v473, 16
        %v614 = vrot.slane %v612, 7
        %v615 = vshll.u32 %v473, 16
        %v617 = vor.u32 %v614, %v615
        %v618 = vsel %vm574, %v610, %v617
        %v620 = vshrl.u32 %v475, 16
        %v622 = vrot.slane %v620, 7
        %v623 = vrot.slane %v622, 4
        %v625 = vshrl.u32 %v476, 16
        %v627 = vrot.slane %v625, 7
        %v628 = vshll.u32 %v476, 16
        %v630 = vor.u32 %v627, %v628
        %v631 = vsel %vm574, %v623, %v630
        %v632 = vrot.slane %v627, 4
        %v634 = vshrl.u32 %v477, 16
        %v636 = vrot.slane %v634, 7
        %v637 = vshll.u32 %v477, 16
        %v639 = vor.u32 %v636, %v637
        %v640 = vsel %vm574, %v632, %v639
        %v642 = vshrl.u32 %v479, 16
        %v644 = vrot.slane %v642, 7
        %v645 = vrot.slane %v644, 4
        %v647 = vshrl.u32 %v480, 16
        %v649 = vrot.slane %v647, 7
        %v650 = vshll.u32 %v480, 16
        %v652 = vor.u32 %v649, %v650
        %v653 = vsel %vm574, %v645, %v652
        %v654 = vrot.slane %v649, 4
        %v656 = vshrl.u32 %v481, 16
        %v658 = vrot.slane %v656, 7
        %v659 = vshll.u32 %v481, 16
        %v661 = vor.u32 %v658, %v659
        %v662 = vsel %vm574, %v654, %v661
        %v664 = vshrl.u32 %v483, 16
        %v666 = vrot.slane %v664, 7
        %v667 = vrot.slane %v666, 4
        %v669 = vshrl.u32 %v484, 16
        %v671 = vrot.slane %v669, 7
        %v672 = vshll.u32 %v484, 16
        %v674 = vor.u32 %v671, %v672
        %v675 = vsel %vm574, %v667, %v674
        %v676 = vrot.slane %v671, 4
        %v678 = vshrl.u32 %v485, 16
        %v680 = vrot.slane %v678, 7
        %v681 = vshll.u32 %v485, 16
        %v683 = vor.u32 %v680, %v681
        %v684 = vsel %vm574, %v676, %v683
        %v686 = vshrl.u32 %v487, 16
        %v688 = vrot.slane %v686, 7
        %v689 = vrot.slane %v688, 4
        %v691 = vshrl.u32 %v488, 16
        %v693 = vrot.slane %v691, 7
        %v694 = vshll.u32 %v488, 16
        %v696 = vor.u32 %v693, %v694
        %v697 = vsel %vm574, %v689, %v696
        %v698 = vrot.slane %v693, 4
        %v700 = vshrl.u32 %v489, 16
        %v702 = vrot.slane %v700, 7
        %v703 = vshll.u32 %v489, 16
        %v705 = vor.u32 %v702, %v703
        %v706 = vsel %vm574, %v698, %v705
        %v708 = vshrl.u32 %v491, 16
        %v710 = vrot.slane %v708, 7
        %v711 = vrot.slane %v710, 4
        %v713 = vshrl.u32 %v492, 16
        %v715 = vrot.slane %v713, 7
        %v716 = vshll.u32 %v492, 16
        %v718 = vor.u32 %v715, %v716
        %v719 = vsel %vm574, %v711, %v718
        %v720 = vrot.slane %v715, 4
        %v722 = vshrl.u32 %v493, 16
        %v724 = vrot.slane %v722, 7
        %v725 = vshll.u32 %v493, 16
        %v727 = vor.u32 %v724, %v725
        %v728 = vsel %vm574, %v720, %v727
        %v730 = vshrl.u32 %v495, 16
        %v732 = vrot.slane %v730, 7
        %v733 = vrot.slane %v732, 4
        %v735 = vshrl.u32 %v496, 16
        %v737 = vrot.slane %v735, 7
        %v738 = vshll.u32 %v496, 16
        %v740 = vor.u32 %v737, %v738
        %v741 = vsel %vm574, %v733, %v740
        %v742 = vrot.slane %v737, 4
        %v744 = vshrl.u32 %v497, 16
        %v746 = vrot.slane %v744, 7
        %v747 = vshll.u32 %v497, 16
        %v749 = vor.u32 %v746, %v747
        %v750 = vsel %vm574, %v742, %v749
        %v752 = vshrl.u32 %v499, 16
        %v754 = vrot.slane %v752, 7
        %v755 = vrot.slane %v754, 4
        %v757 = vshrl.u32 %v500, 16
        %v759 = vrot.slane %v757, 7
        %v760 = vshll.u32 %v500, 16
        %v762 = vor.u32 %v759, %v760
        %v763 = vsel %vm574, %v755, %v762
        %v764 = vrot.slane %v759, 4
        %v766 = vshrl.u32 %v501, 16
        %v768 = vrot.slane %v766, 7
        %v769 = vshll.u32 %v501, 16
        %v771 = vor.u32 %v768, %v769
        %v772 = vsel %vm574, %v764, %v771
        %v774 = vshrl.u32 %v503, 16
        %v776 = vrot.slane %v774, 7
        %v777 = vrot.slane %v776, 4
        %v779 = vshrl.u32 %v504, 16
        %v781 = vrot.slane %v779, 7
        %v782 = vshll.u32 %v504, 16
        %v784 = vor.u32 %v781, %v782
        %v785 = vsel %vm574, %v777, %v784
        %v786 = vrot.slane %v781, 4
        %v788 = vshrl.u32 %v505, 16
        %v790 = vrot.slane %v788, 7
        %v791 = vshll.u32 %v505, 16
        %v793 = vor.u32 %v790, %v791
        %v794 = vsel %vm574, %v786, %v793
        %v796 = vshrl.u32 %v507, 16
        %v798 = vrot.slane %v796, 7
        %v799 = vrot.slane %v798, 4
        %v801 = vshrl.u32 %v508, 16
        %v803 = vrot.slane %v801, 7
        %v804 = vshll.u32 %v508, 16
        %v806 = vor.u32 %v803, %v804
        %v807 = vsel %vm574, %v799, %v806
        %v808 = vrot.slane %v803, 4
        %v810 = vshrl.u32 %v509, 16
        %v812 = vrot.slane %v810, 7
        %v813 = vshll.u32 %v509, 16
        %v815 = vor.u32 %v812, %v813
        %v816 = vsel %vm574, %v808, %v815
        %v818 = vshrl.u32 %v511, 16
        %v820 = vrot.slane %v818, 7
        %v821 = vrot.slane %v820, 4
        %v823 = vshrl.u32 %v512, 16
        %v825 = vrot.slane %v823, 7
        %v826 = vshll.u32 %v512, 16
        %v828 = vor.u32 %v825, %v826
        %v829 = vsel %vm574, %v821, %v828
        %v830 = vrot.slane %v825, 4
        %v832 = vshrl.u32 %v513, 16
        %v834 = vrot.slane %v832, 7
        %v835 = vshll.u32 %v513, 16
        %v837 = vor.u32 %v834, %v835
        %v838 = vsel %vm574, %v830, %v837
        %v840 = vshrl.u32 %v515, 16
        %v842 = vrot.slane %v840, 7
        %v843 = vrot.slane %v842, 4
        %v845 = vshrl.u32 %v516, 16
        %v847 = vrot.slane %v845, 7
        %v848 = vshll.u32 %v516, 16
        %v850 = vor.u32 %v847, %v848
        %v851 = vsel %vm574, %v843, %v850
        %v852 = vrot.slane %v847, 4
        %v854 = vshrl.u32 %v517, 16
        %v856 = vrot.slane %v854, 7
        %v857 = vshll.u32 %v517, 16
        %v859 = vor.u32 %v856, %v857
        %v860 = vsel %vm574, %v852, %v859
        %v862 = vshrl.u32 %v519, 16
        %v864 = vrot.slane %v862, 7
        %v865 = vrot.slane %v864, 4
        %v867 = vshrl.u32 %v520, 16
        %v869 = vrot.slane %v867, 7
        %v870 = vshll.u32 %v520, 16
        %v872 = vor.u32 %v869, %v870
        %v873 = vsel %vm574, %v865, %v872
        %v874 = vrot.slane %v869, 4
        %v876 = vshrl.u32 %v521, 16
        %v878 = vrot.slane %v876, 7
        %v879 = vshll.u32 %v521, 16
        %v881 = vor.u32 %v878, %v879
        %v882 = vsel %vm574, %v874, %v881
        %v884 = vshrl.u32 %v523, 16
        %v886 = vrot.slane %v884, 7
        %v887 = vrot.slane %v886, 4
        %v889 = vshrl.u32 %v524, 16
        %v891 = vrot.slane %v889, 7
        %v892 = vshll.u32 %v524, 16
        %v894 = vor.u32 %v891, %v892
        %v895 = vsel %vm574, %v887, %v894
        %v896 = vrot.slane %v891, 4
        %v898 = vshrl.u32 %v525, 16
        %v900 = vrot.slane %v898, 7
        %v901 = vshll.u32 %v525, 16
        %v903 = vor.u32 %v900, %v901
        %v904 = vsel %vm574, %v896, %v903
        %v906 = vshrl.u32 %v527, 16
        %v908 = vrot.slane %v906, 7
        %v909 = vrot.slane %v908, 4
        %v911 = vshrl.u32 %v528, 16
        %v913 = vrot.slane %v911, 7
        %v914 = vshll.u32 %v528, 16
        %v916 = vor.u32 %v913, %v914
        %v917 = vsel %vm574, %v909, %v916
        %v918 = vrot.slane %v913, 4
        %v920 = vshrl.u32 %v529, 16
        %v922 = vrot.slane %v920, 7
        %v923 = vshll.u32 %v529, 16
        %v925 = vor.u32 %v922, %v923
        %v926 = vsel %vm574, %v918, %v925
        %v927 = vunpack.c.l.b16 %v587
        %v928 = vunpack.c.l.b16 %v596
        %v929 = vunpack.c.l.b16 %v609
        %v930 = vunpack.c.l.b16 %v618
        %v931 = vunpack.c.l.b16 %v631
        %v932 = vunpack.c.l.b16 %v640
        %v933 = vunpack.c.l.b16 %v653
        %v934 = vunpack.c.l.b16 %v662
        %v935 = vunpack.c.l.b16 %v675
        %v936 = vunpack.c.l.b16 %v684
        %v937 = vunpack.c.l.b16 %v697
        %v938 = vunpack.c.l.b16 %v706
        %v939 = vunpack.c.l.b16 %v719
        %v940 = vunpack.c.l.b16 %v728
        %v941 = vunpack.c.l.b16 %v741
        %v942 = vunpack.c.l.b16 %v750
        %v943 = vunpack.c.l.b16 %v763
        %v944 = vunpack.c.l.b16 %v772
        %v945 = vunpack.c.l.b16 %v785
        %v946 = vunpack.c.l.b16 %v794
        %v947 = vunpack.c.l.b16 %v807
        %v948 = vunpack.c.l.b16 %v816
        %v949 = vunpack.c.l.b16 %v829
        %v950 = vunpack.c.l.b16 %v838
        %v951 = vunpack.c.l.b16 %v851
        %v952 = vunpack.c.l.b16 %v860
        %v953 = vunpack.c.l.b16 %v873
        %v954 = vunpack.c.l.b16 %v882
        %v955 = vunpack.c.l.b16 %v895
        %v956 = vunpack.c.l.b16 %v904
        %v957 = vunpack.c.l.b16 %v917
        %v958 = vunpack.c.l.b16 %v926
        %v959 = vpack.c.b16 %v928, %v927
        %v960 = vpack.c.b16 %v930, %v929
        %v961 = vpack.c.b16 %v932, %v931
        %v962 = vpack.c.b16 %v934, %v933
        %v963 = vpack.c.b16 %v936, %v935
        %v964 = vpack.c.b16 %v938, %v937
        %v965 = vpack.c.b16 %v940, %v939
        %v966 = vpack.c.b16 %v942, %v941
        %v967 = vpack.c.b16 %v944, %v943
        %v968 = vpack.c.b16 %v946, %v945
        %v969 = vpack.c.b16 %v948, %v947
        %v970 = vpack.c.b16 %v950, %v949
        %v971 = vpack.c.b16 %v952, %v951
        %v972 = vpack.c.b16 %v954, %v953
        %v973 = vpack.c.b16 %v956, %v955
        %v974 = vpack.c.b16 %v958, %v957
        %vm975 = vcmask 31744
        %v977 = vsel %vm975, %v959, 0
        %v980 = vsel %vm975, %v960, 0
        %v983 = vsel %vm975, %v961, 0
        %v986 = vsel %vm975, %v962, 0
        %v989 = vsel %vm975, %v963, 0
        %v992 = vsel %vm975, %v964, 0
        %v995 = vsel %vm975, %v965, 0
        %v998 = vsel %vm975, %v966, 0
        %v1001 = vsel %vm975, %v967, 0
        %v1004 = vsel %vm975, %v968, 0
        %v1007 = vsel %vm975, %v969, 0
        %v1010 = vsel %vm975, %v970, 0
        %v1013 = vsel %vm975, %v971, 0
        %v1016 = vsel %vm975, %v972, 0
        %v1019 = vsel %vm975, %v973, 0
        %v1022 = vsel %vm975, %v974, 0
        %vm1024 = vcmask 1041408
        %v1026 = vsel %vm1024, %v571, 0
        %1028 = vmatpush.bf16.msra.mxu0 0
        %1029 = vmatpush.bf16.msra.mxu0 0
        %1030 = vmatpush.bf16.msra.mxu0 0
        %1031 = vmatpush.bf16.msra.mxu0 0
        %1032 = vmatpush.bf16.msra.mxu0 0
        %1033 = vmatpush.bf16.msra.mxu0 0
        %1034 = vmatpush.bf16.msra.mxu0 0
        %1035 = vmatpush.bf16.msra.mxu0 %v1026
        %1036 = vmatmul.bf16.gmra.mxu0 %v977
        %v1037 = vpop.f32.mrf.mxu0
        %v1038 = vadd.f32 0.0, %v1037
        %v1039 = vpop.f32.mrf.mxu0
        %v1040 = vadd.f32 0.0, %v1039
        %1041 = vmatmul.bf16.gmra.mxu0 %v980
        %v1042 = vpop.f32.mrf.mxu0
        %v1043 = vadd.f32 0.0, %v1042
        %v1044 = vpop.f32.mrf.mxu0
        %v1045 = vadd.f32 0.0, %v1044
        %1046 = vmatmul.bf16.gmra.mxu0 %v983
        %v1047 = vpop.f32.mrf.mxu0
        %v1048 = vadd.f32 0.0, %v1047
        %v1049 = vpop.f32.mrf.mxu0
        %v1050 = vadd.f32 0.0, %v1049
        %1051 = vmatmul.bf16.gmra.mxu0 %v986
        %v1052 = vpop.f32.mrf.mxu0
        %v1053 = vadd.f32 0.0, %v1052
        %v1054 = vpop.f32.mrf.mxu0
        %v1055 = vadd.f32 0.0, %v1054
        %1056 = vmatmul.bf16.gmra.mxu0 %v989
        %v1057 = vpop.f32.mrf.mxu0
        %v1058 = vadd.f32 0.0, %v1057
        %v1059 = vpop.f32.mrf.mxu0
        %v1060 = vadd.f32 0.0, %v1059
        %1061 = vmatmul.bf16.gmra.mxu0 %v992
        %v1062 = vpop.f32.mrf.mxu0
        %v1063 = vadd.f32 0.0, %v1062
        %v1064 = vpop.f32.mrf.mxu0
        %v1065 = vadd.f32 0.0, %v1064
        %1066 = vmatmul.bf16.gmra.mxu0 %v995
        %v1067 = vpop.f32.mrf.mxu0
        %v1068 = vadd.f32 0.0, %v1067
        %v1069 = vpop.f32.mrf.mxu0
        %v1070 = vadd.f32 0.0, %v1069
        %1071 = vmatmul.bf16.gmra.mxu0 %v998
        %v1072 = vpop.f32.mrf.mxu0
        %v1073 = vadd.f32 0.0, %v1072
        %v1074 = vpop.f32.mrf.mxu0
        %v1075 = vadd.f32 0.0, %v1074
        %1076 = vmatmul.bf16.gmra.mxu0 %v1001
        %v1077 = vpop.f32.mrf.mxu0
        %v1078 = vadd.f32 0.0, %v1077
        %v1079 = vpop.f32.mrf.mxu0
        %v1080 = vadd.f32 0.0, %v1079
        %1081 = vmatmul.bf16.gmra.mxu0 %v1004
        %v1082 = vpop.f32.mrf.mxu0
        %v1083 = vadd.f32 0.0, %v1082
        %v1084 = vpop.f32.mrf.mxu0
        %v1085 = vadd.f32 0.0, %v1084
        %1086 = vmatmul.bf16.gmra.mxu0 %v1007
        %v1087 = vpop.f32.mrf.mxu0
        %v1088 = vadd.f32 0.0, %v1087
        %v1089 = vpop.f32.mrf.mxu0
        %v1090 = vadd.f32 0.0, %v1089
        %1091 = vmatmul.bf16.gmra.mxu0 %v1010
        %v1092 = vpop.f32.mrf.mxu0
        %v1093 = vadd.f32 0.0, %v1092
        %v1094 = vpop.f32.mrf.mxu0
        %v1095 = vadd.f32 0.0, %v1094
        %1096 = vmatmul.bf16.gmra.mxu0 %v1013
        %v1097 = vpop.f32.mrf.mxu0
        %v1098 = vadd.f32 0.0, %v1097
        %v1099 = vpop.f32.mrf.mxu0
        %v1100 = vadd.f32 0.0, %v1099
        %1101 = vmatmul.bf16.gmra.mxu0 %v1016
        %v1102 = vpop.f32.mrf.mxu0
        %v1103 = vadd.f32 0.0, %v1102
        %v1104 = vpop.f32.mrf.mxu0
        %v1105 = vadd.f32 0.0, %v1104
        %1106 = vmatmul.bf16.gmra.mxu0 %v1019
        %v1107 = vpop.f32.mrf.mxu0
        %v1108 = vadd.f32 0.0, %v1107
        %v1109 = vpop.f32.mrf.mxu0
        %v1110 = vadd.f32 0.0, %v1109
        %1111 = vmatmul.bf16.gmra.mxu0 %v1022
        %v1112 = vpop.f32.mrf.mxu0
        %v1113 = vadd.f32 0.0, %v1112
        %v1114 = vpop.f32.mrf.mxu0
        %v1115 = vadd.f32 0.0, %v1114
        %1116 = vdwg.mxu0
        %v1117 = vadd.f32 %v539, %v1038
        %v1118 = vadd.f32 %v540, %v1040
        %v1119 = vadd.f32 %v541, %v1043
        %v1120 = vadd.f32 %v542, %v1045
        %v1121 = vadd.f32 %v543, %v1048
        %v1122 = vadd.f32 %v544, %v1050
        %v1123 = vadd.f32 %v545, %v1053
        %v1124 = vadd.f32 %v546, %v1055
        %v1125 = vadd.f32 %v547, %v1058
        %v1126 = vadd.f32 %v548, %v1060
        %v1127 = vadd.f32 %v549, %v1063
        %v1128 = vadd.f32 %v550, %v1065
        %v1129 = vadd.f32 %v551, %v1068
        %v1130 = vadd.f32 %v552, %v1070
        %v1131 = vadd.f32 %v553, %v1073
        %v1132 = vadd.f32 %v554, %v1075
        %v1133 = vadd.f32 %v555, %v1078
        %v1134 = vadd.f32 %v556, %v1080
        %v1135 = vadd.f32 %v557, %v1083
        %v1136 = vadd.f32 %v558, %v1085
        %v1137 = vadd.f32 %v559, %v1088
        %v1138 = vadd.f32 %v560, %v1090
        %v1139 = vadd.f32 %v561, %v1093
        %v1140 = vadd.f32 %v562, %v1095
        %v1141 = vadd.f32 %v563, %v1098
        %v1142 = vadd.f32 %v564, %v1100
        %v1143 = vadd.f32 %v565, %v1103
        %v1144 = vadd.f32 %v566, %v1105
        %v1145 = vadd.f32 %v567, %v1108
        %v1146 = vadd.f32 %v568, %v1110
        %v1147 = vadd.f32 %v569, %v1113
        %v1148 = vadd.f32 %v570, %v1115
        %s1149 = scalar_lea.vmem %s289, 2
        %v1150 = vld [vmem:[%s1149] sm:$0x3]
        %v1183 = vunpack.c.l.b16 %v468
        %v1184 = vunpack.c.l.b16 %v469
        %v1185 = vunpack.c.l.b16 %v472
        %v1186 = vunpack.c.l.b16 %v473
        %v1187 = vunpack.c.l.b16 %v476
        %v1188 = vunpack.c.l.b16 %v477
        %v1189 = vunpack.c.l.b16 %v480
        %v1190 = vunpack.c.l.b16 %v481
        %v1191 = vunpack.c.l.b16 %v484
        %v1192 = vunpack.c.l.b16 %v485
        %v1193 = vunpack.c.l.b16 %v488
        %v1194 = vunpack.c.l.b16 %v489
        %v1195 = vunpack.c.l.b16 %v492
        %v1196 = vunpack.c.l.b16 %v493
        %v1197 = vunpack.c.l.b16 %v496
        %v1198 = vunpack.c.l.b16 %v497
        %v1199 = vunpack.c.l.b16 %v500
        %v1200 = vunpack.c.l.b16 %v501
        %v1201 = vunpack.c.l.b16 %v504
        %v1202 = vunpack.c.l.b16 %v505
        %v1203 = vunpack.c.l.b16 %v508
        %v1204 = vunpack.c.l.b16 %v509
        %v1205 = vunpack.c.l.b16 %v512
        %v1206 = vunpack.c.l.b16 %v513
        %v1207 = vunpack.c.l.b16 %v516
        %v1208 = vunpack.c.l.b16 %v517
        %v1209 = vunpack.c.l.b16 %v520
        %v1210 = vunpack.c.l.b16 %v521
        %v1211 = vunpack.c.l.b16 %v524
        %v1212 = vunpack.c.l.b16 %v525
        %v1213 = vunpack.c.l.b16 %v528
        %v1214 = vunpack.c.l.b16 %v529
        %v1215 = vpack.c.b16 %v1184, %v1183
        %v1216 = vpack.c.b16 %v1186, %v1185
        %v1217 = vpack.c.b16 %v1188, %v1187
        %v1218 = vpack.c.b16 %v1190, %v1189
        %v1219 = vpack.c.b16 %v1192, %v1191
        %v1220 = vpack.c.b16 %v1194, %v1193
        %v1221 = vpack.c.b16 %v1196, %v1195
        %v1222 = vpack.c.b16 %v1198, %v1197
        %v1223 = vpack.c.b16 %v1200, %v1199
        %v1224 = vpack.c.b16 %v1202, %v1201
        %v1225 = vpack.c.b16 %v1204, %v1203
        %v1226 = vpack.c.b16 %v1206, %v1205
        %v1227 = vpack.c.b16 %v1208, %v1207
        %v1228 = vpack.c.b16 %v1210, %v1209
        %v1229 = vpack.c.b16 %v1212, %v1211
        %v1230 = vpack.c.b16 %v1214, %v1213
        %v1232 = vsel %vm975, %v1215, 0
        %v1235 = vsel %vm975, %v1216, 0
        %v1238 = vsel %vm975, %v1217, 0
        %v1241 = vsel %vm975, %v1218, 0
        %v1244 = vsel %vm975, %v1219, 0
        %v1247 = vsel %vm975, %v1220, 0
        %v1250 = vsel %vm975, %v1221, 0
        %v1253 = vsel %vm975, %v1222, 0
        %v1256 = vsel %vm975, %v1223, 0
        %v1259 = vsel %vm975, %v1224, 0
        %v1262 = vsel %vm975, %v1225, 0
        %v1265 = vsel %vm975, %v1226, 0
        %v1268 = vsel %vm975, %v1227, 0
        %v1271 = vsel %vm975, %v1228, 0
        %v1274 = vsel %vm975, %v1229, 0
        %v1277 = vsel %vm975, %v1230, 0
        %v1280 = vsel %vm1024, %v1150, 0
        %1282 = vmatpush.bf16.msra.mxu0 0
        %1283 = vmatpush.bf16.msra.mxu0 0
        %1284 = vmatpush.bf16.msra.mxu0 0
        %1285 = vmatpush.bf16.msra.mxu0 0
        %1286 = vmatpush.bf16.msra.mxu0 0
        %1287 = vmatpush.bf16.msra.mxu0 0
        %1288 = vmatpush.bf16.msra.mxu0 0
        %1289 = vmatpush.bf16.msra.mxu0 %v1280
        %1290 = vmatmul.bf16.gmra.mxu0 %v1232
        %v1291 = vpop.f32.mrf.mxu0
        %v1292 = vadd.f32 0.0, %v1291
        %v1293 = vpop.f32.mrf.mxu0
        %v1294 = vadd.f32 0.0, %v1293
        %1295 = vmatmul.bf16.gmra.mxu0 %v1235
        %v1296 = vpop.f32.mrf.mxu0
        %v1297 = vadd.f32 0.0, %v1296
        %v1298 = vpop.f32.mrf.mxu0
        %v1299 = vadd.f32 0.0, %v1298
        %1300 = vmatmul.bf16.gmra.mxu0 %v1238
        %v1301 = vpop.f32.mrf.mxu0
        %v1302 = vadd.f32 0.0, %v1301
        %v1303 = vpop.f32.mrf.mxu0
        %v1304 = vadd.f32 0.0, %v1303
        %1305 = vmatmul.bf16.gmra.mxu0 %v1241
        %v1306 = vpop.f32.mrf.mxu0
        %v1307 = vadd.f32 0.0, %v1306
        %v1308 = vpop.f32.mrf.mxu0
        %v1309 = vadd.f32 0.0, %v1308
        %1310 = vmatmul.bf16.gmra.mxu0 %v1244
        %v1311 = vpop.f32.mrf.mxu0
        %v1312 = vadd.f32 0.0, %v1311
        %v1313 = vpop.f32.mrf.mxu0
        %v1314 = vadd.f32 0.0, %v1313
        %1315 = vmatmul.bf16.gmra.mxu0 %v1247
        %v1316 = vpop.f32.mrf.mxu0
        %v1317 = vadd.f32 0.0, %v1316
        %v1318 = vpop.f32.mrf.mxu0
        %v1319 = vadd.f32 0.0, %v1318
        %1320 = vmatmul.bf16.gmra.mxu0 %v1250
        %v1321 = vpop.f32.mrf.mxu0
        %v1322 = vadd.f32 0.0, %v1321
        %v1323 = vpop.f32.mrf.mxu0
        %v1324 = vadd.f32 0.0, %v1323
        %1325 = vmatmul.bf16.gmra.mxu0 %v1253
        %v1326 = vpop.f32.mrf.mxu0
        %v1327 = vadd.f32 0.0, %v1326
        %v1328 = vpop.f32.mrf.mxu0
        %v1329 = vadd.f32 0.0, %v1328
        %1330 = vmatmul.bf16.gmra.mxu0 %v1256
        %v1331 = vpop.f32.mrf.mxu0
        %v1332 = vadd.f32 0.0, %v1331
        %v1333 = vpop.f32.mrf.mxu0
        %v1334 = vadd.f32 0.0, %v1333
        %1335 = vmatmul.bf16.gmra.mxu0 %v1259
        %v1336 = vpop.f32.mrf.mxu0
        %v1337 = vadd.f32 0.0, %v1336
        %v1338 = vpop.f32.mrf.mxu0
        %v1339 = vadd.f32 0.0, %v1338
        %1340 = vmatmul.bf16.gmra.mxu0 %v1262
        %v1341 = vpop.f32.mrf.mxu0
        %v1342 = vadd.f32 0.0, %v1341
        %v1343 = vpop.f32.mrf.mxu0
        %v1344 = vadd.f32 0.0, %v1343
        %1345 = vmatmul.bf16.gmra.mxu0 %v1265
        %v1346 = vpop.f32.mrf.mxu0
        %v1347 = vadd.f32 0.0, %v1346
        %v1348 = vpop.f32.mrf.mxu0
        %v1349 = vadd.f32 0.0, %v1348
        %1350 = vmatmul.bf16.gmra.mxu0 %v1268
        %v1351 = vpop.f32.mrf.mxu0
        %v1352 = vadd.f32 0.0, %v1351
        %v1353 = vpop.f32.mrf.mxu0
        %v1354 = vadd.f32 0.0, %v1353
        %1355 = vmatmul.bf16.gmra.mxu0 %v1271
        %v1356 = vpop.f32.mrf.mxu0
        %v1357 = vadd.f32 0.0, %v1356
        %v1358 = vpop.f32.mrf.mxu0
        %v1359 = vadd.f32 0.0, %v1358
        %1360 = vmatmul.bf16.gmra.mxu0 %v1274
        %v1361 = vpop.f32.mrf.mxu0
        %v1362 = vadd.f32 0.0, %v1361
        %v1363 = vpop.f32.mrf.mxu0
        %v1364 = vadd.f32 0.0, %v1363
        %1365 = vmatmul.bf16.gmra.mxu0 %v1277
        %v1366 = vpop.f32.mrf.mxu0
        %v1367 = vadd.f32 0.0, %v1366
        %v1368 = vpop.f32.mrf.mxu0
        %v1369 = vadd.f32 0.0, %v1368
        %1370 = vdwg.mxu0
        %v1371 = vadd.f32 %v1117, %v1292
        %v1372 = vadd.f32 %v1118, %v1294
        %v1373 = vadd.f32 %v1119, %v1297
        %v1374 = vadd.f32 %v1120, %v1299
        %v1375 = vadd.f32 %v1121, %v1302
        %v1376 = vadd.f32 %v1122, %v1304
        %v1377 = vadd.f32 %v1123, %v1307
        %v1378 = vadd.f32 %v1124, %v1309
        %v1379 = vadd.f32 %v1125, %v1312
        %v1380 = vadd.f32 %v1126, %v1314
        %v1381 = vadd.f32 %v1127, %v1317
        %v1382 = vadd.f32 %v1128, %v1319
        %v1383 = vadd.f32 %v1129, %v1322
        %v1384 = vadd.f32 %v1130, %v1324
        %v1385 = vadd.f32 %v1131, %v1327
        %v1386 = vadd.f32 %v1132, %v1329
        %v1387 = vadd.f32 %v1133, %v1332
        %v1388 = vadd.f32 %v1134, %v1334
        %v1389 = vadd.f32 %v1135, %v1337
        %v1390 = vadd.f32 %v1136, %v1339
        %v1391 = vadd.f32 %v1137, %v1342
        %v1392 = vadd.f32 %v1138, %v1344
        %v1393 = vadd.f32 %v1139, %v1347
        %v1394 = vadd.f32 %v1140, %v1349
        %v1395 = vadd.f32 %v1141, %v1352
        %v1396 = vadd.f32 %v1142, %v1354
        %v1397 = vadd.f32 %v1143, %v1357
        %v1398 = vadd.f32 %v1144, %v1359
        %v1399 = vadd.f32 %v1145, %v1362
        %v1400 = vadd.f32 %v1146, %v1364
        %v1401 = vadd.f32 %v1147, %v1367
        %v1402 = vadd.f32 %v1148, %v1369
        %s1403 = scalar_lea.vmem %s289, 4
        %v1404 = vld [vmem:[%s1403] sm:$0x3]
        %vm1405 = vsmask.f32 3328
        %vm1406 = vsmask.f32 7440
        %vm1407 = vmor %vm1405, %vm1406
        %v1408 = vrot.slane %v581, 4
        %v1409 = vrot.slane %v584, 5
        %v1410 = vor.u32 %v1408, %v1409
        %v1411 = vrot.slane %v1410, 4
        %v1412 = vrot.slane %v593, 5
        %v1413 = vsel %vm1407, %v1411, %v1412
        %v1414 = vrot.slane %v590, 4
        %v1415 = vor.u32 %v1414, %v1412
        %v1416 = vrot.slane %v1415, 4
        %v1418 = vshll.u32 %v470, 16
        %v1420 = vrot.slane %v1418, 5
        %v1421 = vsel %vm1407, %v1416, %v1420
        %v1422 = vrot.slane %v603, 4
        %v1423 = vrot.slane %v606, 5
        %v1424 = vor.u32 %v1422, %v1423
        %v1425 = vrot.slane %v1424, 4
        %v1426 = vrot.slane %v615, 5
        %v1427 = vsel %vm1407, %v1425, %v1426
        %v1428 = vrot.slane %v612, 4
        %v1429 = vor.u32 %v1428, %v1426
        %v1430 = vrot.slane %v1429, 4
        %v1432 = vshll.u32 %v474, 16
        %v1434 = vrot.slane %v1432, 5
        %v1435 = vsel %vm1407, %v1430, %v1434
        %v1436 = vrot.slane %v625, 4
        %v1437 = vrot.slane %v628, 5
        %v1438 = vor.u32 %v1436, %v1437
        %v1439 = vrot.slane %v1438, 4
        %v1440 = vrot.slane %v637, 5
        %v1441 = vsel %vm1407, %v1439, %v1440
        %v1442 = vrot.slane %v634, 4
        %v1443 = vor.u32 %v1442, %v1440
        %v1444 = vrot.slane %v1443, 4
        %v1446 = vshll.u32 %v478, 16
        %v1448 = vrot.slane %v1446, 5
        %v1449 = vsel %vm1407, %v1444, %v1448
        %v1450 = vrot.slane %v647, 4
        %v1451 = vrot.slane %v650, 5
        %v1452 = vor.u32 %v1450, %v1451
        %v1453 = vrot.slane %v1452, 4
        %v1454 = vrot.slane %v659, 5
        %v1455 = vsel %vm1407, %v1453, %v1454
        %v1456 = vrot.slane %v656, 4
        %v1457 = vor.u32 %v1456, %v1454
        %v1458 = vrot.slane %v1457, 4
        %v1460 = vshll.u32 %v482, 16
        %v1462 = vrot.slane %v1460, 5
        %v1463 = vsel %vm1407, %v1458, %v1462
        %v1464 = vrot.slane %v669, 4
        %v1465 = vrot.slane %v672, 5
        %v1466 = vor.u32 %v1464, %v1465
        %v1467 = vrot.slane %v1466, 4
        %v1468 = vrot.slane %v681, 5
        %v1469 = vsel %vm1407, %v1467, %v1468
        %v1470 = vrot.slane %v678, 4
        %v1471 = vor.u32 %v1470, %v1468
        %v1472 = vrot.slane %v1471, 4
        %v1474 = vshll.u32 %v486, 16
        %v1476 = vrot.slane %v1474, 5
        %v1477 = vsel %vm1407, %v1472, %v1476
        %v1478 = vrot.slane %v691, 4
        %v1479 = vrot.slane %v694, 5
        %v1480 = vor.u32 %v1478, %v1479
        %v1481 = vrot.slane %v1480, 4
        %v1482 = vrot.slane %v703, 5
        %v1483 = vsel %vm1407, %v1481, %v1482
        %v1484 = vrot.slane %v700, 4
        %v1485 = vor.u32 %v1484, %v1482
        %v1486 = vrot.slane %v1485, 4
        %v1488 = vshll.u32 %v490, 16
        %v1490 = vrot.slane %v1488, 5
        %v1491 = vsel %vm1407, %v1486, %v1490
        %v1492 = vrot.slane %v713, 4
        %v1493 = vrot.slane %v716, 5
        %v1494 = vor.u32 %v1492, %v1493
        %v1495 = vrot.slane %v1494, 4
        %v1496 = vrot.slane %v725, 5
        %v1497 = vsel %vm1407, %v1495, %v1496
        %v1498 = vrot.slane %v722, 4
        %v1499 = vor.u32 %v1498, %v1496
        %v1500 = vrot.slane %v1499, 4
        %v1502 = vshll.u32 %v494, 16
        %v1504 = vrot.slane %v1502, 5
        %v1505 = vsel %vm1407, %v1500, %v1504
        %v1506 = vrot.slane %v735, 4
        %v1507 = vrot.slane %v738, 5
        %v1508 = vor.u32 %v1506, %v1507
        %v1509 = vrot.slane %v1508, 4
        %v1510 = vrot.slane %v747, 5
        %v1511 = vsel %vm1407, %v1509, %v1510
        %v1512 = vrot.slane %v744, 4
        %v1513 = vor.u32 %v1512, %v1510
        %v1514 = vrot.slane %v1513, 4
        %v1516 = vshll.u32 %v498, 16
        %v1518 = vrot.slane %v1516, 5
        %v1519 = vsel %vm1407, %v1514, %v1518
        %v1520 = vrot.slane %v757, 4
        %v1521 = vrot.slane %v760, 5
        %v1522 = vor.u32 %v1520, %v1521
        %v1523 = vrot.slane %v1522, 4
        %v1524 = vrot.slane %v769, 5
        %v1525 = vsel %vm1407, %v1523, %v1524
        %v1526 = vrot.slane %v766, 4
        %v1527 = vor.u32 %v1526, %v1524
        %v1528 = vrot.slane %v1527, 4
        %v1530 = vshll.u32 %v502, 16
        %v1532 = vrot.slane %v1530, 5
        %v1533 = vsel %vm1407, %v1528, %v1532
        %v1534 = vrot.slane %v779, 4
        %v1535 = vrot.slane %v782, 5
        %v1536 = vor.u32 %v1534, %v1535
        %v1537 = vrot.slane %v1536, 4
        %v1538 = vrot.slane %v791, 5
        %v1539 = vsel %vm1407, %v1537, %v1538
        %v1540 = vrot.slane %v788, 4
        %v1541 = vor.u32 %v1540, %v1538
        %v1542 = vrot.slane %v1541, 4
        %v1544 = vshll.u32 %v506, 16
        %v1546 = vrot.slane %v1544, 5
        %v1547 = vsel %vm1407, %v1542, %v1546
        %v1548 = vrot.slane %v801, 4
        %v1549 = vrot.slane %v804, 5
        %v1550 = vor.u32 %v1548, %v1549
        %v1551 = vrot.slane %v1550, 4
        %v1552 = vrot.slane %v813, 5
        %v1553 = vsel %vm1407, %v1551, %v1552
        %v1554 = vrot.slane %v810, 4
        %v1555 = vor.u32 %v1554, %v1552
        %v1556 = vrot.slane %v1555, 4
        %v1558 = vshll.u32 %v510, 16
        %v1560 = vrot.slane %v1558, 5
        %v1561 = vsel %vm1407, %v1556, %v1560
        %v1562 = vrot.slane %v823, 4
        %v1563 = vrot.slane %v826, 5
        %v1564 = vor.u32 %v1562, %v1563
        %v1565 = vrot.slane %v1564, 4
        %v1566 = vrot.slane %v835, 5
        %v1567 = vsel %vm1407, %v1565, %v1566
        %v1568 = vrot.slane %v832, 4
        %v1569 = vor.u32 %v1568, %v1566
        %v1570 = vrot.slane %v1569, 4
        %v1572 = vshll.u32 %v514, 16
        %v1574 = vrot.slane %v1572, 5
        %v1575 = vsel %vm1407, %v1570, %v1574
        %v1576 = vrot.slane %v845, 4
        %v1577 = vrot.slane %v848, 5
        %v1578 = vor.u32 %v1576, %v1577
        %v1579 = vrot.slane %v1578, 4
        %v1580 = vrot.slane %v857, 5
        %v1581 = vsel %vm1407, %v1579, %v1580
        %v1582 = vrot.slane %v854, 4
        %v1583 = vor.u32 %v1582, %v1580
        %v1584 = vrot.slane %v1583, 4
        %v1586 = vshll.u32 %v518, 16
        %v1588 = vrot.slane %v1586, 5
        %v1589 = vsel %vm1407, %v1584, %v1588
        %v1590 = vrot.slane %v867, 4
        %v1591 = vrot.slane %v870, 5
        %v1592 = vor.u32 %v1590, %v1591
        %v1593 = vrot.slane %v1592, 4
        %v1594 = vrot.slane %v879, 5
        %v1595 = vsel %vm1407, %v1593, %v1594
        %v1596 = vrot.slane %v876, 4
        %v1597 = vor.u32 %v1596, %v1594
        %v1598 = vrot.slane %v1597, 4
        %v1600 = vshll.u32 %v522, 16
        %v1602 = vrot.slane %v1600, 5
        %v1603 = vsel %vm1407, %v1598, %v1602
        %v1604 = vrot.slane %v889, 4
        %v1605 = vrot.slane %v892, 5
        %v1606 = vor.u32 %v1604, %v1605
        %v1607 = vrot.slane %v1606, 4
        %v1608 = vrot.slane %v901, 5
        %v1609 = vsel %vm1407, %v1607, %v1608
        %v1610 = vrot.slane %v898, 4
        %v1611 = vor.u32 %v1610, %v1608
        %v1612 = vrot.slane %v1611, 4
        %v1614 = vshll.u32 %v526, 16
        %v1616 = vrot.slane %v1614, 5
        %v1617 = vsel %vm1407, %v1612, %v1616
        %v1618 = vrot.slane %v911, 4
        %v1619 = vrot.slane %v914, 5
        %v1620 = vor.u32 %v1618, %v1619
        %v1621 = vrot.slane %v1620, 4
        %v1622 = vrot.slane %v923, 5
        %v1623 = vsel %vm1407, %v1621, %v1622
        %v1624 = vrot.slane %v920, 4
        %v1625 = vor.u32 %v1624, %v1622
        %v1626 = vrot.slane %v1625, 4
        %v1628 = vshll.u32 %v530, 16
        %v1630 = vrot.slane %v1628, 5
        %v1631 = vsel %vm1407, %v1626, %v1630
        %v1632 = vunpack.c.l.b16 %v1413
        %v1633 = vunpack.c.l.b16 %v1421
        %v1634 = vunpack.c.l.b16 %v1427
        %v1635 = vunpack.c.l.b16 %v1435
        %v1636 = vunpack.c.l.b16 %v1441
        %v1637 = vunpack.c.l.b16 %v1449
        %v1638 = vunpack.c.l.b16 %v1455
        %v1639 = vunpack.c.l.b16 %v1463
        %v1640 = vunpack.c.l.b16 %v1469
        %v1641 = vunpack.c.l.b16 %v1477
        %v1642 = vunpack.c.l.b16 %v1483
        %v1643 = vunpack.c.l.b16 %v1491
        %v1644 = vunpack.c.l.b16 %v1497
        %v1645 = vunpack.c.l.b16 %v1505
        %v1646 = vunpack.c.l.b16 %v1511
        %v1647 = vunpack.c.l.b16 %v1519
        %v1648 = vunpack.c.l.b16 %v1525
        %v1649 = vunpack.c.l.b16 %v1533
        %v1650 = vunpack.c.l.b16 %v1539
        %v1651 = vunpack.c.l.b16 %v1547
        %v1652 = vunpack.c.l.b16 %v1553
        %v1653 = vunpack.c.l.b16 %v1561
        %v1654 = vunpack.c.l.b16 %v1567
        %v1655 = vunpack.c.l.b16 %v1575
        %v1656 = vunpack.c.l.b16 %v1581
        %v1657 = vunpack.c.l.b16 %v1589
        %v1658 = vunpack.c.l.b16 %v1595
        %v1659 = vunpack.c.l.b16 %v1603
        %v1660 = vunpack.c.l.b16 %v1609
        %v1661 = vunpack.c.l.b16 %v1617
        %v1662 = vunpack.c.l.b16 %v1623
        %v1663 = vunpack.c.l.b16 %v1631
        %v1664 = vpack.c.b16 %v1633, %v1632
        %v1665 = vpack.c.b16 %v1635, %v1634
        %v1666 = vpack.c.b16 %v1637, %v1636
        %v1667 = vpack.c.b16 %v1639, %v1638
        %v1668 = vpack.c.b16 %v1641, %v1640
        %v1669 = vpack.c.b16 %v1643, %v1642
        %v1670 = vpack.c.b16 %v1645, %v1644
        %v1671 = vpack.c.b16 %v1647, %v1646
        %v1672 = vpack.c.b16 %v1649, %v1648
        %v1673 = vpack.c.b16 %v1651, %v1650
        %v1674 = vpack.c.b16 %v1653, %v1652
        %v1675 = vpack.c.b16 %v1655, %v1654
        %v1676 = vpack.c.b16 %v1657, %v1656
        %v1677 = vpack.c.b16 %v1659, %v1658
        %v1678 = vpack.c.b16 %v1661, %v1660
        %v1679 = vpack.c.b16 %v1663, %v1662
        %v1681 = vsel %vm975, %v1664, 0
        %v1684 = vsel %vm975, %v1665, 0
        %v1687 = vsel %vm975, %v1666, 0
        %v1690 = vsel %vm975, %v1667, 0
        %v1693 = vsel %vm975, %v1668, 0
        %v1696 = vsel %vm975, %v1669, 0
        %v1699 = vsel %vm975, %v1670, 0
        %v1702 = vsel %vm975, %v1671, 0
        %v1705 = vsel %vm975, %v1672, 0
        %v1708 = vsel %vm975, %v1673, 0
        %v1711 = vsel %vm975, %v1674, 0
        %v1714 = vsel %vm975, %v1675, 0
        %v1717 = vsel %vm975, %v1676, 0
        %v1720 = vsel %vm975, %v1677, 0
        %v1723 = vsel %vm975, %v1678, 0
        %v1726 = vsel %vm975, %v1679, 0
        %v1729 = vsel %vm1024, %v1404, 0
        %1731 = vmatpush.bf16.msra.mxu0 0
        %1732 = vmatpush.bf16.msra.mxu0 0
        %1733 = vmatpush.bf16.msra.mxu0 0
        %1734 = vmatpush.bf16.msra.mxu0 0
        %1735 = vmatpush.bf16.msra.mxu0 0
        %1736 = vmatpush.bf16.msra.mxu0 0
        %1737 = vmatpush.bf16.msra.mxu0 0
        %1738 = vmatpush.bf16.msra.mxu0 %v1729
        %1739 = vmatmul.bf16.gmra.mxu0 %v1681
        %v1740 = vpop.f32.mrf.mxu0
        %v1741 = vadd.f32 0.0, %v1740
        %v1742 = vpop.f32.mrf.mxu0
        %v1743 = vadd.f32 0.0, %v1742
        %1744 = vmatmul.bf16.gmra.mxu0 %v1684
        %v1745 = vpop.f32.mrf.mxu0
        %v1746 = vadd.f32 0.0, %v1745
        %v1747 = vpop.f32.mrf.mxu0
        %v1748 = vadd.f32 0.0, %v1747
        %1749 = vmatmul.bf16.gmra.mxu0 %v1687
        %v1750 = vpop.f32.mrf.mxu0
        %v1751 = vadd.f32 0.0, %v1750
        %v1752 = vpop.f32.mrf.mxu0
        %v1753 = vadd.f32 0.0, %v1752
        %1754 = vmatmul.bf16.gmra.mxu0 %v1690
        %v1755 = vpop.f32.mrf.mxu0
        %v1756 = vadd.f32 0.0, %v1755
        %v1757 = vpop.f32.mrf.mxu0
        %v1758 = vadd.f32 0.0, %v1757
        %1759 = vmatmul.bf16.gmra.mxu0 %v1693
        %v1760 = vpop.f32.mrf.mxu0
        %v1761 = vadd.f32 0.0, %v1760
        %v1762 = vpop.f32.mrf.mxu0
        %v1763 = vadd.f32 0.0, %v1762
        %1764 = vmatmul.bf16.gmra.mxu0 %v1696
        %v1765 = vpop.f32.mrf.mxu0
        %v1766 = vadd.f32 0.0, %v1765
        %v1767 = vpop.f32.mrf.mxu0
        %v1768 = vadd.f32 0.0, %v1767
        %1769 = vmatmul.bf16.gmra.mxu0 %v1699
        %v1770 = vpop.f32.mrf.mxu0
        %v1771 = vadd.f32 0.0, %v1770
        %v1772 = vpop.f32.mrf.mxu0
        %v1773 = vadd.f32 0.0, %v1772
        %1774 = vmatmul.bf16.gmra.mxu0 %v1702
        %v1775 = vpop.f32.mrf.mxu0
        %v1776 = vadd.f32 0.0, %v1775
        %v1777 = vpop.f32.mrf.mxu0
        %v1778 = vadd.f32 0.0, %v1777
        %1779 = vmatmul.bf16.gmra.mxu0 %v1705
        %v1780 = vpop.f32.mrf.mxu0
        %v1781 = vadd.f32 0.0, %v1780
        %v1782 = vpop.f32.mrf.mxu0
        %v1783 = vadd.f32 0.0, %v1782
        %1784 = vmatmul.bf16.gmra.mxu0 %v1708
        %v1785 = vpop.f32.mrf.mxu0
        %v1786 = vadd.f32 0.0, %v1785
        %v1787 = vpop.f32.mrf.mxu0
        %v1788 = vadd.f32 0.0, %v1787
        %1789 = vmatmul.bf16.gmra.mxu0 %v1711
        %v1790 = vpop.f32.mrf.mxu0
        %v1791 = vadd.f32 0.0, %v1790
        %v1792 = vpop.f32.mrf.mxu0
        %v1793 = vadd.f32 0.0, %v1792
        %1794 = vmatmul.bf16.gmra.mxu0 %v1714
        %v1795 = vpop.f32.mrf.mxu0
        %v1796 = vadd.f32 0.0, %v1795
        %v1797 = vpop.f32.mrf.mxu0
        %v1798 = vadd.f32 0.0, %v1797
        %1799 = vmatmul.bf16.gmra.mxu0 %v1717
        %v1800 = vpop.f32.mrf.mxu0
        %v1801 = vadd.f32 0.0, %v1800
        %v1802 = vpop.f32.mrf.mxu0
        %v1803 = vadd.f32 0.0, %v1802
        %1804 = vmatmul.bf16.gmra.mxu0 %v1720
        %v1805 = vpop.f32.mrf.mxu0
        %v1806 = vadd.f32 0.0, %v1805
        %v1807 = vpop.f32.mrf.mxu0
        %v1808 = vadd.f32 0.0, %v1807
        %1809 = vmatmul.bf16.gmra.mxu0 %v1723
        %v1810 = vpop.f32.mrf.mxu0
        %v1811 = vadd.f32 0.0, %v1810
        %v1812 = vpop.f32.mrf.mxu0
        %v1813 = vadd.f32 0.0, %v1812
        %1814 = vmatmul.bf16.gmra.mxu0 %v1726
        %v1815 = vpop.f32.mrf.mxu0
        %v1816 = vadd.f32 0.0, %v1815
        %v1817 = vpop.f32.mrf.mxu0
        %v1818 = vadd.f32 0.0, %v1817
        %1819 = vdwg.mxu0
        %v1820 = vadd.f32 %v1371, %v1741
        %v1821 = vadd.f32 %v1372, %v1743
        %v1822 = vadd.f32 %v1373, %v1746
        %v1823 = vadd.f32 %v1374, %v1748
        %v1824 = vadd.f32 %v1375, %v1751
        %v1825 = vadd.f32 %v1376, %v1753
        %v1826 = vadd.f32 %v1377, %v1756
        %v1827 = vadd.f32 %v1378, %v1758
        %v1828 = vadd.f32 %v1379, %v1761
        %v1829 = vadd.f32 %v1380, %v1763
        %v1830 = vadd.f32 %v1381, %v1766
        %v1831 = vadd.f32 %v1382, %v1768
        %v1832 = vadd.f32 %v1383, %v1771
        %v1833 = vadd.f32 %v1384, %v1773
        %v1834 = vadd.f32 %v1385, %v1776
        %v1835 = vadd.f32 %v1386, %v1778
        %v1836 = vadd.f32 %v1387, %v1781
        %v1837 = vadd.f32 %v1388, %v1783
        %v1838 = vadd.f32 %v1389, %v1786
        %v1839 = vadd.f32 %v1390, %v1788
        %v1840 = vadd.f32 %v1391, %v1791
        %v1841 = vadd.f32 %v1392, %v1793
        %v1842 = vadd.f32 %v1393, %v1796
        %v1843 = vadd.f32 %v1394, %v1798
        %v1844 = vadd.f32 %v1395, %v1801
        %v1845 = vadd.f32 %v1396, %v1803
        %v1846 = vadd.f32 %v1397, %v1806
        %v1847 = vadd.f32 %v1398, %v1808
        %v1848 = vadd.f32 %v1399, %v1811
        %v1849 = vadd.f32 %v1400, %v1813
        %v1850 = vadd.f32 %v1401, %v1816
        %v1851 = vadd.f32 %v1402, %v1818
        %s1852 = scalar_lea.vmem %s289, 6
        %v1853 = vld [vmem:[%s1852] sm:$0x3]
        %v1855 = vshrl.u32 %v531, 16
        %v1857 = vrot.slane %v1855, 7
        %v1858 = vrot.slane %v1857, 4
        %v1860 = vshrl.u32 %v532, 16
        %v1862 = vrot.slane %v1860, 7
        %v1863 = vshll.u32 %v532, 16
        %v1865 = vor.u32 %v1862, %v1863
        %v1866 = vsel %vm574, %v1858, %v1865
        %v1867 = vrot.slane %v1862, 4
        %v1869 = vshrl.u32 %v533, 16
        %v1871 = vrot.slane %v1869, 7
        %v1872 = vshll.u32 %v533, 16
        %v1874 = vor.u32 %v1871, %v1872
        %v1875 = vsel %vm574, %v1867, %v1874
        %v1876 = vunpack.c.l.b16 %v1866
        %v1877 = vunpack.c.l.b16 %v1875
        %v1878 = vpack.c.b16 %v1877, %v1876
        %v1880 = vsel %vm975, %v1878, 0
        %v1883 = vsel %vm1024, %v1853, 0
        %1885 = vmatpush.bf16.msra.mxu0 0
        %1886 = vmatpush.bf16.msra.mxu0 0
        %1887 = vmatpush.bf16.msra.mxu0 0
        %1888 = vmatpush.bf16.msra.mxu0 0
        %1889 = vmatpush.bf16.msra.mxu0 0
        %1890 = vmatpush.bf16.msra.mxu0 0
        %1891 = vmatpush.bf16.msra.mxu0 0
        %1892 = vmatpush.bf16.msra.mxu0 %v1883
        %1893 = vmatmul.bf16.gmra.mxu0 %v980
        %v1894 = vpop.f32.mrf.mxu0
        %v1895 = vadd.f32 0.0, %v1894
        %v1896 = vpop.f32.mrf.mxu0
        %v1897 = vadd.f32 0.0, %v1896
        %1898 = vmatmul.bf16.gmra.mxu0 %v983
        %v1899 = vpop.f32.mrf.mxu0
        %v1900 = vadd.f32 0.0, %v1899
        %v1901 = vpop.f32.mrf.mxu0
        %v1902 = vadd.f32 0.0, %v1901
        %1903 = vmatmul.bf16.gmra.mxu0 %v986
        %v1904 = vpop.f32.mrf.mxu0
        %v1905 = vadd.f32 0.0, %v1904
        %v1906 = vpop.f32.mrf.mxu0
        %v1907 = vadd.f32 0.0, %v1906
        %1908 = vmatmul.bf16.gmra.mxu0 %v989
        %v1909 = vpop.f32.mrf.mxu0
        %v1910 = vadd.f32 0.0, %v1909
        %v1911 = vpop.f32.mrf.mxu0
        %v1912 = vadd.f32 0.0, %v1911
        %1913 = vmatmul.bf16.gmra.mxu0 %v992
        %v1914 = vpop.f32.mrf.mxu0
        %v1915 = vadd.f32 0.0, %v1914
        %v1916 = vpop.f32.mrf.mxu0
        %v1917 = vadd.f32 0.0, %v1916
        %1918 = vmatmul.bf16.gmra.mxu0 %v995
        %v1919 = vpop.f32.mrf.mxu0
        %v1920 = vadd.f32 0.0, %v1919
        %v1921 = vpop.f32.mrf.mxu0
        %v1922 = vadd.f32 0.0, %v1921
        %1923 = vmatmul.bf16.gmra.mxu0 %v998
        %v1924 = vpop.f32.mrf.mxu0
        %v1925 = vadd.f32 0.0, %v1924
        %v1926 = vpop.f32.mrf.mxu0
        %v1927 = vadd.f32 0.0, %v1926
        %1928 = vmatmul.bf16.gmra.mxu0 %v1001
        %v1929 = vpop.f32.mrf.mxu0
        %v1930 = vadd.f32 0.0, %v1929
        %v1931 = vpop.f32.mrf.mxu0
        %v1932 = vadd.f32 0.0, %v1931
        %1933 = vmatmul.bf16.gmra.mxu0 %v1004
        %v1934 = vpop.f32.mrf.mxu0
        %v1935 = vadd.f32 0.0, %v1934
        %v1936 = vpop.f32.mrf.mxu0
        %v1937 = vadd.f32 0.0, %v1936
        %1938 = vmatmul.bf16.gmra.mxu0 %v1007
        %v1939 = vpop.f32.mrf.mxu0
        %v1940 = vadd.f32 0.0, %v1939
        %v1941 = vpop.f32.mrf.mxu0
        %v1942 = vadd.f32 0.0, %v1941
        %1943 = vmatmul.bf16.gmra.mxu0 %v1010
        %v1944 = vpop.f32.mrf.mxu0
        %v1945 = vadd.f32 0.0, %v1944
        %v1946 = vpop.f32.mrf.mxu0
        %v1947 = vadd.f32 0.0, %v1946
        %1948 = vmatmul.bf16.gmra.mxu0 %v1013
        %v1949 = vpop.f32.mrf.mxu0
        %v1950 = vadd.f32 0.0, %v1949
        %v1951 = vpop.f32.mrf.mxu0
        %v1952 = vadd.f32 0.0, %v1951
        %1953 = vmatmul.bf16.gmra.mxu0 %v1016
        %v1954 = vpop.f32.mrf.mxu0
        %v1955 = vadd.f32 0.0, %v1954
        %v1956 = vpop.f32.mrf.mxu0
        %v1957 = vadd.f32 0.0, %v1956
        %1958 = vmatmul.bf16.gmra.mxu0 %v1019
        %v1959 = vpop.f32.mrf.mxu0
        %v1960 = vadd.f32 0.0, %v1959
        %v1961 = vpop.f32.mrf.mxu0
        %v1962 = vadd.f32 0.0, %v1961
        %1963 = vmatmul.bf16.gmra.mxu0 %v1022
        %v1964 = vpop.f32.mrf.mxu0
        %v1965 = vadd.f32 0.0, %v1964
        %v1966 = vpop.f32.mrf.mxu0
        %v1967 = vadd.f32 0.0, %v1966
        %1968 = vmatmul.bf16.gmra.mxu0 %v1880
        %v1969 = vpop.f32.mrf.mxu0
        %v1970 = vadd.f32 0.0, %v1969
        %v1971 = vpop.f32.mrf.mxu0
        %v1972 = vadd.f32 0.0, %v1971
        %1973 = vdwg.mxu0
        %v1974 = vadd.f32 %v1820, %v1895
        %v1975 = vadd.f32 %v1821, %v1897
        %v1976 = vadd.f32 %v1822, %v1900
        %v1977 = vadd.f32 %v1823, %v1902
        %v1978 = vadd.f32 %v1824, %v1905
        %v1979 = vadd.f32 %v1825, %v1907
        %v1980 = vadd.f32 %v1826, %v1910
        %v1981 = vadd.f32 %v1827, %v1912
        %v1982 = vadd.f32 %v1828, %v1915
        %v1983 = vadd.f32 %v1829, %v1917
        %v1984 = vadd.f32 %v1830, %v1920
        %v1985 = vadd.f32 %v1831, %v1922
        %v1986 = vadd.f32 %v1832, %v1925
        %v1987 = vadd.f32 %v1833, %v1927
        %v1988 = vadd.f32 %v1834, %v1930
        %v1989 = vadd.f32 %v1835, %v1932
        %v1990 = vadd.f32 %v1836, %v1935
        %v1991 = vadd.f32 %v1837, %v1937
        %v1992 = vadd.f32 %v1838, %v1940
        %v1993 = vadd.f32 %v1839, %v1942
        %v1994 = vadd.f32 %v1840, %v1945
        %v1995 = vadd.f32 %v1841, %v1947
        %v1996 = vadd.f32 %v1842, %v1950
        %v1997 = vadd.f32 %v1843, %v1952
        %v1998 = vadd.f32 %v1844, %v1955
        %v1999 = vadd.f32 %v1845, %v1957
        %v2000 = vadd.f32 %v1846, %v1960
        %v2001 = vadd.f32 %v1847, %v1962
        %v2002 = vadd.f32 %v1848, %v1965
        %v2003 = vadd.f32 %v1849, %v1967
        %v2004 = vadd.f32 %v1850, %v1970
        %v2005 = vadd.f32 %v1851, %v1972
        %s2006 = scalar_lea.vmem %s289, 8
        %v2007 = vld [vmem:[%s2006] sm:$0x3]
        %v2010 = vunpack.c.l.b16 %v532
        %v2011 = vunpack.c.l.b16 %v533
        %v2012 = vpack.c.b16 %v2011, %v2010
        %v2014 = vsel %vm975, %v2012, 0
        %v2017 = vsel %vm1024, %v2007, 0
        %2019 = vmatpush.bf16.msra.mxu0 0
        %2020 = vmatpush.bf16.msra.mxu0 0
        %2021 = vmatpush.bf16.msra.mxu0 0
        %2022 = vmatpush.bf16.msra.mxu0 0
        %2023 = vmatpush.bf16.msra.mxu0 0
        %2024 = vmatpush.bf16.msra.mxu0 0
        %2025 = vmatpush.bf16.msra.mxu0 0
        %2026 = vmatpush.bf16.msra.mxu0 %v2017
        %2027 = vmatmul.bf16.gmra.mxu0 %v1235
        %v2028 = vpop.f32.mrf.mxu0
        %v2029 = vadd.f32 0.0, %v2028
        %v2030 = vpop.f32.mrf.mxu0
        %v2031 = vadd.f32 0.0, %v2030
        %2032 = vmatmul.bf16.gmra.mxu0 %v1238
        %v2033 = vpop.f32.mrf.mxu0
        %v2034 = vadd.f32 0.0, %v2033
        %v2035 = vpop.f32.mrf.mxu0
        %v2036 = vadd.f32 0.0, %v2035
        %2037 = vmatmul.bf16.gmra.mxu0 %v1241
        %v2038 = vpop.f32.mrf.mxu0
        %v2039 = vadd.f32 0.0, %v2038
        %v2040 = vpop.f32.mrf.mxu0
        %v2041 = vadd.f32 0.0, %v2040
        %2042 = vmatmul.bf16.gmra.mxu0 %v1244
        %v2043 = vpop.f32.mrf.mxu0
        %v2044 = vadd.f32 0.0, %v2043
        %v2045 = vpop.f32.mrf.mxu0
        %v2046 = vadd.f32 0.0, %v2045
        %2047 = vmatmul.bf16.gmra.mxu0 %v1247
        %v2048 = vpop.f32.mrf.mxu0
        %v2049 = vadd.f32 0.0, %v2048
        %v2050 = vpop.f32.mrf.mxu0
        %v2051 = vadd.f32 0.0, %v2050
        %2052 = vmatmul.bf16.gmra.mxu0 %v1250
        %v2053 = vpop.f32.mrf.mxu0
        %v2054 = vadd.f32 0.0, %v2053
        %v2055 = vpop.f32.mrf.mxu0
        %v2056 = vadd.f32 0.0, %v2055
        %2057 = vmatmul.bf16.gmra.mxu0 %v1253
        %v2058 = vpop.f32.mrf.mxu0
        %v2059 = vadd.f32 0.0, %v2058
        %v2060 = vpop.f32.mrf.mxu0
        %v2061 = vadd.f32 0.0, %v2060
        %2062 = vmatmul.bf16.gmra.mxu0 %v1256
        %v2063 = vpop.f32.mrf.mxu0
        %v2064 = vadd.f32 0.0, %v2063
        %v2065 = vpop.f32.mrf.mxu0
        %v2066 = vadd.f32 0.0, %v2065
        %2067 = vmatmul.bf16.gmra.mxu0 %v1259
        %v2068 = vpop.f32.mrf.mxu0
        %v2069 = vadd.f32 0.0, %v2068
        %v2070 = vpop.f32.mrf.mxu0
        %v2071 = vadd.f32 0.0, %v2070
        %2072 = vmatmul.bf16.gmra.mxu0 %v1262
        %v2073 = vpop.f32.mrf.mxu0
        %v2074 = vadd.f32 0.0, %v2073
        %v2075 = vpop.f32.mrf.mxu0
        %v2076 = vadd.f32 0.0, %v2075
        %2077 = vmatmul.bf16.gmra.mxu0 %v1265
        %v2078 = vpop.f32.mrf.mxu0
        %v2079 = vadd.f32 0.0, %v2078
        %v2080 = vpop.f32.mrf.mxu0
        %v2081 = vadd.f32 0.0, %v2080
        %2082 = vmatmul.bf16.gmra.mxu0 %v1268
        %v2083 = vpop.f32.mrf.mxu0
        %v2084 = vadd.f32 0.0, %v2083
        %v2085 = vpop.f32.mrf.mxu0
        %v2086 = vadd.f32 0.0, %v2085
        %2087 = vmatmul.bf16.gmra.mxu0 %v1271
        %v2088 = vpop.f32.mrf.mxu0
        %v2089 = vadd.f32 0.0, %v2088
        %v2090 = vpop.f32.mrf.mxu0
        %v2091 = vadd.f32 0.0, %v2090
        %2092 = vmatmul.bf16.gmra.mxu0 %v1274
        %v2093 = vpop.f32.mrf.mxu0
        %v2094 = vadd.f32 0.0, %v2093
        %v2095 = vpop.f32.mrf.mxu0
        %v2096 = vadd.f32 0.0, %v2095
        %2097 = vmatmul.bf16.gmra.mxu0 %v1277
        %v2098 = vpop.f32.mrf.mxu0
        %v2099 = vadd.f32 0.0, %v2098
        %v2100 = vpop.f32.mrf.mxu0
        %v2101 = vadd.f32 0.0, %v2100
        %2102 = vmatmul.bf16.gmra.mxu0 %v2014
        %v2103 = vpop.f32.mrf.mxu0
        %v2104 = vadd.f32 0.0, %v2103
        %v2105 = vpop.f32.mrf.mxu0
        %v2106 = vadd.f32 0.0, %v2105
        %2107 = vdwg.mxu0
        %v2108 = vadd.f32 %v1974, %v2029
        %v2109 = vadd.f32 %v1975, %v2031
        %v2110 = vadd.f32 %v1976, %v2034
        %v2111 = vadd.f32 %v1977, %v2036
        %v2112 = vadd.f32 %v1978, %v2039
        %v2113 = vadd.f32 %v1979, %v2041
        %v2114 = vadd.f32 %v1980, %v2044
        %v2115 = vadd.f32 %v1981, %v2046
        %v2116 = vadd.f32 %v1982, %v2049
        %v2117 = vadd.f32 %v1983, %v2051
        %v2118 = vadd.f32 %v1984, %v2054
        %v2119 = vadd.f32 %v1985, %v2056
        %v2120 = vadd.f32 %v1986, %v2059
        %v2121 = vadd.f32 %v1987, %v2061
        %v2122 = vadd.f32 %v1988, %v2064
        %v2123 = vadd.f32 %v1989, %v2066
        %v2124 = vadd.f32 %v1990, %v2069
        %v2125 = vadd.f32 %v1991, %v2071
        %v2126 = vadd.f32 %v1992, %v2074
        %v2127 = vadd.f32 %v1993, %v2076
        %v2128 = vadd.f32 %v1994, %v2079
        %v2129 = vadd.f32 %v1995, %v2081
        %v2130 = vadd.f32 %v1996, %v2084
        %v2131 = vadd.f32 %v1997, %v2086
        %v2132 = vadd.f32 %v1998, %v2089
        %v2133 = vadd.f32 %v1999, %v2091
        %v2134 = vadd.f32 %v2000, %v2094
        %v2135 = vadd.f32 %v2001, %v2096
        %v2136 = vadd.f32 %v2002, %v2099
        %v2137 = vadd.f32 %v2003, %v2101
        %v2138 = vadd.f32 %v2004, %v2104
        %v2139 = vadd.f32 %v2005, %v2106
        %s2140 = scalar_lea.vmem %s289, 10
        %v2141 = vld [vmem:[%s2140] sm:$0x3]
        %v2142 = vrot.slane %v1860, 4
        %v2143 = vrot.slane %v1863, 5
        %v2144 = vor.u32 %v2142, %v2143
        %v2145 = vrot.slane %v2144, 4
        %v2146 = vrot.slane %v1872, 5
        %v2147 = vsel %vm1407, %v2145, %v2146
        %v2148 = vrot.slane %v1869, 4
        %v2149 = vor.u32 %v2148, %v2146
        %v2150 = vrot.slane %v2149, 4
        %v2152 = vshll.u32 %v534, 16
        %v2154 = vrot.slane %v2152, 5
        %v2155 = vsel %vm1407, %v2150, %v2154
        %v2156 = vunpack.c.l.b16 %v2147
        %v2157 = vunpack.c.l.b16 %v2155
        %v2158 = vpack.c.b16 %v2157, %v2156
        %v2160 = vsel %vm975, %v2158, 0
        %v2163 = vsel %vm1024, %v2141, 0
        %2165 = vmatpush.bf16.msra.mxu0 0
        %2166 = vmatpush.bf16.msra.mxu0 0
        %2167 = vmatpush.bf16.msra.mxu0 0
        %2168 = vmatpush.bf16.msra.mxu0 0
        %2169 = vmatpush.bf16.msra.mxu0 0
        %2170 = vmatpush.bf16.msra.mxu0 0
        %2171 = vmatpush.bf16.msra.mxu0 0
        %2172 = vmatpush.bf16.msra.mxu0 %v2163
        %2173 = vmatmul.bf16.gmra.mxu0 %v1684
        %v2174 = vpop.f32.mrf.mxu0
        %v2175 = vadd.f32 0.0, %v2174
        %v2176 = vpop.f32.mrf.mxu0
        %v2177 = vadd.f32 0.0, %v2176
        %2178 = vmatmul.bf16.gmra.mxu0 %v1687
        %v2179 = vpop.f32.mrf.mxu0
        %v2180 = vadd.f32 0.0, %v2179
        %v2181 = vpop.f32.mrf.mxu0
        %v2182 = vadd.f32 0.0, %v2181
        %2183 = vmatmul.bf16.gmra.mxu0 %v1690
        %v2184 = vpop.f32.mrf.mxu0
        %v2185 = vadd.f32 0.0, %v2184
        %v2186 = vpop.f32.mrf.mxu0
        %v2187 = vadd.f32 0.0, %v2186
        %2188 = vmatmul.bf16.gmra.mxu0 %v1693
        %v2189 = vpop.f32.mrf.mxu0
        %v2190 = vadd.f32 0.0, %v2189
        %v2191 = vpop.f32.mrf.mxu0
        %v2192 = vadd.f32 0.0, %v2191
        %2193 = vmatmul.bf16.gmra.mxu0 %v1696
        %v2194 = vpop.f32.mrf.mxu0
        %v2195 = vadd.f32 0.0, %v2194
        %v2196 = vpop.f32.mrf.mxu0
        %v2197 = vadd.f32 0.0, %v2196
        %2198 = vmatmul.bf16.gmra.mxu0 %v1699
        %v2199 = vpop.f32.mrf.mxu0
        %v2200 = vadd.f32 0.0, %v2199
        %v2201 = vpop.f32.mrf.mxu0
        %v2202 = vadd.f32 0.0, %v2201
        %2203 = vmatmul.bf16.gmra.mxu0 %v1702
        %v2204 = vpop.f32.mrf.mxu0
        %v2205 = vadd.f32 0.0, %v2204
        %v2206 = vpop.f32.mrf.mxu0
        %v2207 = vadd.f32 0.0, %v2206
        %2208 = vmatmul.bf16.gmra.mxu0 %v1705
        %v2209 = vpop.f32.mrf.mxu0
        %v2210 = vadd.f32 0.0, %v2209
        %v2211 = vpop.f32.mrf.mxu0
        %v2212 = vadd.f32 0.0, %v2211
        %2213 = vmatmul.bf16.gmra.mxu0 %v1708
        %v2214 = vpop.f32.mrf.mxu0
        %v2215 = vadd.f32 0.0, %v2214
        %v2216 = vpop.f32.mrf.mxu0
        %v2217 = vadd.f32 0.0, %v2216
        %2218 = vmatmul.bf16.gmra.mxu0 %v1711
        %v2219 = vpop.f32.mrf.mxu0
        %v2220 = vadd.f32 0.0, %v2219
        %v2221 = vpop.f32.mrf.mxu0
        %v2222 = vadd.f32 0.0, %v2221
        %2223 = vmatmul.bf16.gmra.mxu0 %v1714
        %v2224 = vpop.f32.mrf.mxu0
        %v2225 = vadd.f32 0.0, %v2224
        %v2226 = vpop.f32.mrf.mxu0
        %v2227 = vadd.f32 0.0, %v2226
        %2228 = vmatmul.bf16.gmra.mxu0 %v1717
        %v2229 = vpop.f32.mrf.mxu0
        %v2230 = vadd.f32 0.0, %v2229
        %v2231 = vpop.f32.mrf.mxu0
        %v2232 = vadd.f32 0.0, %v2231
        %2233 = vmatmul.bf16.gmra.mxu0 %v1720
        %v2234 = vpop.f32.mrf.mxu0
        %v2235 = vadd.f32 0.0, %v2234
        %v2236 = vpop.f32.mrf.mxu0
        %v2237 = vadd.f32 0.0, %v2236
        %2238 = vmatmul.bf16.gmra.mxu0 %v1723
        %v2239 = vpop.f32.mrf.mxu0
        %v2240 = vadd.f32 0.0, %v2239
        %v2241 = vpop.f32.mrf.mxu0
        %v2242 = vadd.f32 0.0, %v2241
        %2243 = vmatmul.bf16.gmra.mxu0 %v1726
        %v2244 = vpop.f32.mrf.mxu0
        %v2245 = vadd.f32 0.0, %v2244
        %v2246 = vpop.f32.mrf.mxu0
        %v2247 = vadd.f32 0.0, %v2246
        %2248 = vmatmul.bf16.gmra.mxu0 %v2160
        %v2249 = vpop.f32.mrf.mxu0
        %v2250 = vadd.f32 0.0, %v2249
        %v2251 = vpop.f32.mrf.mxu0
        %v2252 = vadd.f32 0.0, %v2251
        %2253 = vdwg.mxu0
        %v2254 = vadd.f32 %v2108, %v2175
        %v2255 = vadd.f32 %v2109, %v2177
        %v2256 = vadd.f32 %v2110, %v2180
        %v2257 = vadd.f32 %v2111, %v2182
        %v2258 = vadd.f32 %v2112, %v2185
        %v2259 = vadd.f32 %v2113, %v2187
        %v2260 = vadd.f32 %v2114, %v2190
        %v2261 = vadd.f32 %v2115, %v2192
        %v2262 = vadd.f32 %v2116, %v2195
        %v2263 = vadd.f32 %v2117, %v2197
        %v2264 = vadd.f32 %v2118, %v2200
        %v2265 = vadd.f32 %v2119, %v2202
        %v2266 = vadd.f32 %v2120, %v2205
        %v2267 = vadd.f32 %v2121, %v2207
        %v2268 = vadd.f32 %v2122, %v2210
        %v2269 = vadd.f32 %v2123, %v2212
        %v2270 = vadd.f32 %v2124, %v2215
        %v2271 = vadd.f32 %v2125, %v2217
        %v2272 = vadd.f32 %v2126, %v2220
        %v2273 = vadd.f32 %v2127, %v2222
        %v2274 = vadd.f32 %v2128, %v2225
        %v2275 = vadd.f32 %v2129, %v2227
        %v2276 = vadd.f32 %v2130, %v2230
        %v2277 = vadd.f32 %v2131, %v2232
        %v2278 = vadd.f32 %v2132, %v2235
        %v2279 = vadd.f32 %v2133, %v2237
        %v2280 = vadd.f32 %v2134, %v2240
        %v2281 = vadd.f32 %v2135, %v2242
        %v2282 = vadd.f32 %v2136, %v2245
        %v2283 = vadd.f32 %v2137, %v2247
        %v2284 = vadd.f32 %v2138, %v2250
        %v2285 = vadd.f32 %v2139, %v2252
        %s2286 = scalar_lea.vmem %s289, 12
        %v2287 = vld [vmem:[%s2286] sm:$0x3]
        %v2289 = vshrl.u32 %v535, 16
        %v2291 = vrot.slane %v2289, 7
        %v2292 = vrot.slane %v2291, 4
        %v2294 = vshrl.u32 %v536, 16
        %v2296 = vrot.slane %v2294, 7
        %v2297 = vshll.u32 %v536, 16
        %v2299 = vor.u32 %v2296, %v2297
        %v2300 = vsel %vm574, %v2292, %v2299
        %v2301 = vrot.slane %v2296, 4
        %v2303 = vshrl.u32 %v537, 16
        %v2305 = vrot.slane %v2303, 7
        %v2306 = vshll.u32 %v537, 16
        %v2308 = vor.u32 %v2305, %v2306
        %v2309 = vsel %vm574, %v2301, %v2308
        %v2310 = vunpack.c.l.b16 %v2300
        %v2311 = vunpack.c.l.b16 %v2309
        %v2312 = vpack.c.b16 %v2311, %v2310
        %v2314 = vsel %vm975, %v2312, 0
        %v2317 = vsel %vm1024, %v2287, 0
        %2319 = vmatpush.bf16.msra.mxu0 0
        %2320 = vmatpush.bf16.msra.mxu0 0
        %2321 = vmatpush.bf16.msra.mxu0 0
        %2322 = vmatpush.bf16.msra.mxu0 0
        %2323 = vmatpush.bf16.msra.mxu0 0
        %2324 = vmatpush.bf16.msra.mxu0 0
        %2325 = vmatpush.bf16.msra.mxu0 0
        %2326 = vmatpush.bf16.msra.mxu0 %v2317
        %2327 = vmatmul.bf16.gmra.mxu0 %v983
        %v2328 = vpop.f32.mrf.mxu0
        %v2329 = vadd.f32 0.0, %v2328
        %v2330 = vpop.f32.mrf.mxu0
        %v2331 = vadd.f32 0.0, %v2330
        %2332 = vmatmul.bf16.gmra.mxu0 %v986
        %v2333 = vpop.f32.mrf.mxu0
        %v2334 = vadd.f32 0.0, %v2333
        %v2335 = vpop.f32.mrf.mxu0
        %v2336 = vadd.f32 0.0, %v2335
        %2337 = vmatmul.bf16.gmra.mxu0 %v989
        %v2338 = vpop.f32.mrf.mxu0
        %v2339 = vadd.f32 0.0, %v2338
        %v2340 = vpop.f32.mrf.mxu0
        %v2341 = vadd.f32 0.0, %v2340
        %2342 = vmatmul.bf16.gmra.mxu0 %v992
        %v2343 = vpop.f32.mrf.mxu0
        %v2344 = vadd.f32 0.0, %v2343
        %v2345 = vpop.f32.mrf.mxu0
        %v2346 = vadd.f32 0.0, %v2345
        %2347 = vmatmul.bf16.gmra.mxu0 %v995
        %v2348 = vpop.f32.mrf.mxu0
        %v2349 = vadd.f32 0.0, %v2348
        %v2350 = vpop.f32.mrf.mxu0
        %v2351 = vadd.f32 0.0, %v2350
        %2352 = vmatmul.bf16.gmra.mxu0 %v998
        %v2353 = vpop.f32.mrf.mxu0
        %v2354 = vadd.f32 0.0, %v2353
        %v2355 = vpop.f32.mrf.mxu0
        %v2356 = vadd.f32 0.0, %v2355
        %2357 = vmatmul.bf16.gmra.mxu0 %v1001
        %v2358 = vpop.f32.mrf.mxu0
        %v2359 = vadd.f32 0.0, %v2358
        %v2360 = vpop.f32.mrf.mxu0
        %v2361 = vadd.f32 0.0, %v2360
        %2362 = vmatmul.bf16.gmra.mxu0 %v1004
        %v2363 = vpop.f32.mrf.mxu0
        %v2364 = vadd.f32 0.0, %v2363
        %v2365 = vpop.f32.mrf.mxu0
        %v2366 = vadd.f32 0.0, %v2365
        %2367 = vmatmul.bf16.gmra.mxu0 %v1007
        %v2368 = vpop.f32.mrf.mxu0
        %v2369 = vadd.f32 0.0, %v2368
        %v2370 = vpop.f32.mrf.mxu0
        %v2371 = vadd.f32 0.0, %v2370
        %2372 = vmatmul.bf16.gmra.mxu0 %v1010
        %v2373 = vpop.f32.mrf.mxu0
        %v2374 = vadd.f32 0.0, %v2373
        %v2375 = vpop.f32.mrf.mxu0
        %v2376 = vadd.f32 0.0, %v2375
        %2377 = vmatmul.bf16.gmra.mxu0 %v1013
        %v2378 = vpop.f32.mrf.mxu0
        %v2379 = vadd.f32 0.0, %v2378
        %v2380 = vpop.f32.mrf.mxu0
        %v2381 = vadd.f32 0.0, %v2380
        %2382 = vmatmul.bf16.gmra.mxu0 %v1016
        %v2383 = vpop.f32.mrf.mxu0
        %v2384 = vadd.f32 0.0, %v2383
        %v2385 = vpop.f32.mrf.mxu0
        %v2386 = vadd.f32 0.0, %v2385
        %2387 = vmatmul.bf16.gmra.mxu0 %v1019
        %v2388 = vpop.f32.mrf.mxu0
        %v2389 = vadd.f32 0.0, %v2388
        %v2390 = vpop.f32.mrf.mxu0
        %v2391 = vadd.f32 0.0, %v2390
        %2392 = vmatmul.bf16.gmra.mxu0 %v1022
        %v2393 = vpop.f32.mrf.mxu0
        %v2394 = vadd.f32 0.0, %v2393
        %v2395 = vpop.f32.mrf.mxu0
        %v2396 = vadd.f32 0.0, %v2395
        %2397 = vmatmul.bf16.gmra.mxu0 %v1880
        %v2398 = vpop.f32.mrf.mxu0
        %v2399 = vadd.f32 0.0, %v2398
        %v2400 = vpop.f32.mrf.mxu0
        %v2401 = vadd.f32 0.0, %v2400
        %2402 = vmatmul.bf16.gmra.mxu0 %v2314
        %v2403 = vpop.f32.mrf.mxu0
        %v2404 = vadd.f32 0.0, %v2403
        %v2405 = vpop.f32.mrf.mxu0
        %v2406 = vadd.f32 0.0, %v2405
        %2407 = vdwg.mxu0
        %v2408 = vadd.f32 %v2254, %v2329
        %v2409 = vadd.f32 %v2255, %v2331
        %v2410 = vadd.f32 %v2256, %v2334
        %v2411 = vadd.f32 %v2257, %v2336
        %v2412 = vadd.f32 %v2258, %v2339
        %v2413 = vadd.f32 %v2259, %v2341
        %v2414 = vadd.f32 %v2260, %v2344
        %v2415 = vadd.f32 %v2261, %v2346
        %v2416 = vadd.f32 %v2262, %v2349
        %v2417 = vadd.f32 %v2263, %v2351
        %v2418 = vadd.f32 %v2264, %v2354
        %v2419 = vadd.f32 %v2265, %v2356
        %v2420 = vadd.f32 %v2266, %v2359
        %v2421 = vadd.f32 %v2267, %v2361
        %v2422 = vadd.f32 %v2268, %v2364
        %v2423 = vadd.f32 %v2269, %v2366
        %v2424 = vadd.f32 %v2270, %v2369
        %v2425 = vadd.f32 %v2271, %v2371
        %v2426 = vadd.f32 %v2272, %v2374
        %v2427 = vadd.f32 %v2273, %v2376
        %v2428 = vadd.f32 %v2274, %v2379
        %v2429 = vadd.f32 %v2275, %v2381
        %v2430 = vadd.f32 %v2276, %v2384
        %v2431 = vadd.f32 %v2277, %v2386
        %v2432 = vadd.f32 %v2278, %v2389
        %v2433 = vadd.f32 %v2279, %v2391
        %v2434 = vadd.f32 %v2280, %v2394
        %v2435 = vadd.f32 %v2281, %v2396
        %v2436 = vadd.f32 %v2282, %v2399
        %v2437 = vadd.f32 %v2283, %v2401
        %v2438 = vadd.f32 %v2284, %v2404
        %v2439 = vadd.f32 %v2285, %v2406
        %s2440 = scalar_lea.vmem %s289, 14
        %v2441 = vld [vmem:[%s2440] sm:$0x3]
        %v2444 = vunpack.c.l.b16 %v536
        %v2445 = vunpack.c.l.b16 %v537
        %v2446 = vpack.c.b16 %v2445, %v2444
        %v2448 = vsel %vm975, %v2446, 0
        %v2451 = vsel %vm1024, %v2441, 0
        %2453 = vmatpush.bf16.msra.mxu0 0
        %2454 = vmatpush.bf16.msra.mxu0 0
        %2455 = vmatpush.bf16.msra.mxu0 0
        %2456 = vmatpush.bf16.msra.mxu0 0
        %2457 = vmatpush.bf16.msra.mxu0 0
        %2458 = vmatpush.bf16.msra.mxu0 0
        %2459 = vmatpush.bf16.msra.mxu0 0
        %2460 = vmatpush.bf16.msra.mxu0 %v2451
        %2461 = vmatmul.bf16.gmra.mxu0 %v1238
        %v2462 = vpop.f32.mrf.mxu0
        %v2463 = vadd.f32 0.0, %v2462
        %v2464 = vpop.f32.mrf.mxu0
        %v2465 = vadd.f32 0.0, %v2464
        %2466 = vmatmul.bf16.gmra.mxu0 %v1241
        %v2467 = vpop.f32.mrf.mxu0
        %v2468 = vadd.f32 0.0, %v2467
        %v2469 = vpop.f32.mrf.mxu0
        %v2470 = vadd.f32 0.0, %v2469
        %2471 = vmatmul.bf16.gmra.mxu0 %v1244
        %v2472 = vpop.f32.mrf.mxu0
        %v2473 = vadd.f32 0.0, %v2472
        %v2474 = vpop.f32.mrf.mxu0
        %v2475 = vadd.f32 0.0, %v2474
        %2476 = vmatmul.bf16.gmra.mxu0 %v1247
        %v2477 = vpop.f32.mrf.mxu0
        %v2478 = vadd.f32 0.0, %v2477
        %v2479 = vpop.f32.mrf.mxu0
        %v2480 = vadd.f32 0.0, %v2479
        %2481 = vmatmul.bf16.gmra.mxu0 %v1250
        %v2482 = vpop.f32.mrf.mxu0
        %v2483 = vadd.f32 0.0, %v2482
        %v2484 = vpop.f32.mrf.mxu0
        %v2485 = vadd.f32 0.0, %v2484
        %2486 = vmatmul.bf16.gmra.mxu0 %v1253
        %v2487 = vpop.f32.mrf.mxu0
        %v2488 = vadd.f32 0.0, %v2487
        %v2489 = vpop.f32.mrf.mxu0
        %v2490 = vadd.f32 0.0, %v2489
        %2491 = vmatmul.bf16.gmra.mxu0 %v1256
        %v2492 = vpop.f32.mrf.mxu0
        %v2493 = vadd.f32 0.0, %v2492
        %v2494 = vpop.f32.mrf.mxu0
        %v2495 = vadd.f32 0.0, %v2494
        %2496 = vmatmul.bf16.gmra.mxu0 %v1259
        %v2497 = vpop.f32.mrf.mxu0
        %v2498 = vadd.f32 0.0, %v2497
        %v2499 = vpop.f32.mrf.mxu0
        %v2500 = vadd.f32 0.0, %v2499
        %2501 = vmatmul.bf16.gmra.mxu0 %v1262
        %v2502 = vpop.f32.mrf.mxu0
        %v2503 = vadd.f32 0.0, %v2502
        %v2504 = vpop.f32.mrf.mxu0
        %v2505 = vadd.f32 0.0, %v2504
        %2506 = vmatmul.bf16.gmra.mxu0 %v1265
        %v2507 = vpop.f32.mrf.mxu0
        %v2508 = vadd.f32 0.0, %v2507
        %v2509 = vpop.f32.mrf.mxu0
        %v2510 = vadd.f32 0.0, %v2509
        %2511 = vmatmul.bf16.gmra.mxu0 %v1268
        %v2512 = vpop.f32.mrf.mxu0
        %v2513 = vadd.f32 0.0, %v2512
        %v2514 = vpop.f32.mrf.mxu0
        %v2515 = vadd.f32 0.0, %v2514
        %2516 = vmatmul.bf16.gmra.mxu0 %v1271
        %v2517 = vpop.f32.mrf.mxu0
        %v2518 = vadd.f32 0.0, %v2517
        %v2519 = vpop.f32.mrf.mxu0
        %v2520 = vadd.f32 0.0, %v2519
        %2521 = vmatmul.bf16.gmra.mxu0 %v1274
        %v2522 = vpop.f32.mrf.mxu0
        %v2523 = vadd.f32 0.0, %v2522
        %v2524 = vpop.f32.mrf.mxu0
        %v2525 = vadd.f32 0.0, %v2524
        %2526 = vmatmul.bf16.gmra.mxu0 %v1277
        %v2527 = vpop.f32.mrf.mxu0
        %v2528 = vadd.f32 0.0, %v2527
        %v2529 = vpop.f32.mrf.mxu0
        %v2530 = vadd.f32 0.0, %v2529
        %2531 = vmatmul.bf16.gmra.mxu0 %v2014
        %v2532 = vpop.f32.mrf.mxu0
        %v2533 = vadd.f32 0.0, %v2532
        %v2534 = vpop.f32.mrf.mxu0
        %v2535 = vadd.f32 0.0, %v2534
        %2536 = vmatmul.bf16.gmra.mxu0 %v2448
        %v2537 = vpop.f32.mrf.mxu0
        %v2538 = vadd.f32 0.0, %v2537
        %v2539 = vpop.f32.mrf.mxu0
        %v2540 = vadd.f32 0.0, %v2539
        %2541 = vdwg.mxu0
        %v2542 = vadd.f32 %v2408, %v2463
        %v2543 = vadd.f32 %v2409, %v2465
        %v2544 = vadd.f32 %v2410, %v2468
        %v2545 = vadd.f32 %v2411, %v2470
        %v2546 = vadd.f32 %v2412, %v2473
        %v2547 = vadd.f32 %v2413, %v2475
        %v2548 = vadd.f32 %v2414, %v2478
        %v2549 = vadd.f32 %v2415, %v2480
        %v2550 = vadd.f32 %v2416, %v2483
        %v2551 = vadd.f32 %v2417, %v2485
        %v2552 = vadd.f32 %v2418, %v2488
        %v2553 = vadd.f32 %v2419, %v2490
        %v2554 = vadd.f32 %v2420, %v2493
        %v2555 = vadd.f32 %v2421, %v2495
        %v2556 = vadd.f32 %v2422, %v2498
        %v2557 = vadd.f32 %v2423, %v2500
        %v2558 = vadd.f32 %v2424, %v2503
        %v2559 = vadd.f32 %v2425, %v2505
        %v2560 = vadd.f32 %v2426, %v2508
        %v2561 = vadd.f32 %v2427, %v2510
        %v2562 = vadd.f32 %v2428, %v2513
        %v2563 = vadd.f32 %v2429, %v2515
        %v2564 = vadd.f32 %v2430, %v2518
        %v2565 = vadd.f32 %v2431, %v2520
        %v2566 = vadd.f32 %v2432, %v2523
        %v2567 = vadd.f32 %v2433, %v2525
        %v2568 = vadd.f32 %v2434, %v2528
        %v2569 = vadd.f32 %v2435, %v2530
        %v2570 = vadd.f32 %v2436, %v2533
        %v2571 = vadd.f32 %v2437, %v2535
        %v2572 = vadd.f32 %v2438, %v2538
        %v2573 = vadd.f32 %v2439, %v2540
        %s2574 = scalar_lea.vmem %s289, 16
        %v2575 = vld [vmem:[%s2574] sm:$0x3]
        %v2576 = vrot.slane %v2294, 4
        %v2577 = vrot.slane %v2297, 5
        %v2578 = vor.u32 %v2576, %v2577
        %v2579 = vrot.slane %v2578, 4
        %v2580 = vrot.slane %v2306, 5
        %v2581 = vsel %vm1407, %v2579, %v2580
        %v2582 = vrot.slane %v2303, 4
        %v2583 = vor.u32 %v2582, %v2580
        %v2584 = vrot.slane %v2583, 4
        %v2586 = vshll.u32 %v538, 16
        %v2588 = vrot.slane %v2586, 5
        %v2589 = vsel %vm1407, %v2584, %v2588
        %v2590 = vunpack.c.l.b16 %v2581
        %v2591 = vunpack.c.l.b16 %v2589
        %v2592 = vpack.c.b16 %v2591, %v2590
        %v2594 = vsel %vm975, %v2592, 0
        %v2597 = vsel %vm1024, %v2575, 0
        %2599 = vmatpush.bf16.msra.mxu0 0
        %2600 = vmatpush.bf16.msra.mxu0 0
        %2601 = vmatpush.bf16.msra.mxu0 0
        %2602 = vmatpush.bf16.msra.mxu0 0
        %2603 = vmatpush.bf16.msra.mxu0 0
        %2604 = vmatpush.bf16.msra.mxu0 0
        %2605 = vmatpush.bf16.msra.mxu0 0
        %2606 = vmatpush.bf16.msra.mxu0 %v2597
        %2607 = vmatmul.bf16.gmra.mxu0 %v1687
        %v2608 = vpop.f32.mrf.mxu0
        %v2609 = vadd.f32 0.0, %v2608
        %v2610 = vpop.f32.mrf.mxu0
        %v2611 = vadd.f32 0.0, %v2610
        %2612 = vmatmul.bf16.gmra.mxu0 %v1690
        %v2613 = vpop.f32.mrf.mxu0
        %v2614 = vadd.f32 0.0, %v2613
        %v2615 = vpop.f32.mrf.mxu0
        %v2616 = vadd.f32 0.0, %v2615
        %2617 = vmatmul.bf16.gmra.mxu0 %v1693
        %v2618 = vpop.f32.mrf.mxu0
        %v2619 = vadd.f32 0.0, %v2618
        %v2620 = vpop.f32.mrf.mxu0
        %v2621 = vadd.f32 0.0, %v2620
        %2622 = vmatmul.bf16.gmra.mxu0 %v1696
        %v2623 = vpop.f32.mrf.mxu0
        %v2624 = vadd.f32 0.0, %v2623
        %v2625 = vpop.f32.mrf.mxu0
        %v2626 = vadd.f32 0.0, %v2625
        %2627 = vmatmul.bf16.gmra.mxu0 %v1699
        %v2628 = vpop.f32.mrf.mxu0
        %v2629 = vadd.f32 0.0, %v2628
        %v2630 = vpop.f32.mrf.mxu0
        %v2631 = vadd.f32 0.0, %v2630
        %2632 = vmatmul.bf16.gmra.mxu0 %v1702
        %v2633 = vpop.f32.mrf.mxu0
        %v2634 = vadd.f32 0.0, %v2633
        %v2635 = vpop.f32.mrf.mxu0
        %v2636 = vadd.f32 0.0, %v2635
        %2637 = vmatmul.bf16.gmra.mxu0 %v1705
        %v2638 = vpop.f32.mrf.mxu0
        %v2639 = vadd.f32 0.0, %v2638
        %v2640 = vpop.f32.mrf.mxu0
        %v2641 = vadd.f32 0.0, %v2640
        %2642 = vmatmul.bf16.gmra.mxu0 %v1708
        %v2643 = vpop.f32.mrf.mxu0
        %v2644 = vadd.f32 0.0, %v2643
        %v2645 = vpop.f32.mrf.mxu0
        %v2646 = vadd.f32 0.0, %v2645
        %2647 = vmatmul.bf16.gmra.mxu0 %v1711
        %v2648 = vpop.f32.mrf.mxu0
        %v2649 = vadd.f32 0.0, %v2648
        %v2650 = vpop.f32.mrf.mxu0
        %v2651 = vadd.f32 0.0, %v2650
        %2652 = vmatmul.bf16.gmra.mxu0 %v1714
        %v2653 = vpop.f32.mrf.mxu0
        %v2654 = vadd.f32 0.0, %v2653
        %v2655 = vpop.f32.mrf.mxu0
        %v2656 = vadd.f32 0.0, %v2655
        %2657 = vmatmul.bf16.gmra.mxu0 %v1717
        %v2658 = vpop.f32.mrf.mxu0
        %v2659 = vadd.f32 0.0, %v2658
        %v2660 = vpop.f32.mrf.mxu0
        %v2661 = vadd.f32 0.0, %v2660
        %2662 = vmatmul.bf16.gmra.mxu0 %v1720
        %v2663 = vpop.f32.mrf.mxu0
        %v2664 = vadd.f32 0.0, %v2663
        %v2665 = vpop.f32.mrf.mxu0
        %v2666 = vadd.f32 0.0, %v2665
        %2667 = vmatmul.bf16.gmra.mxu0 %v1723
        %v2668 = vpop.f32.mrf.mxu0
        %v2669 = vadd.f32 0.0, %v2668
        %v2670 = vpop.f32.mrf.mxu0
        %v2671 = vadd.f32 0.0, %v2670
        %2672 = vmatmul.bf16.gmra.mxu0 %v1726
        %v2673 = vpop.f32.mrf.mxu0
        %v2674 = vadd.f32 0.0, %v2673
        %v2675 = vpop.f32.mrf.mxu0
        %v2676 = vadd.f32 0.0, %v2675
        %2677 = vmatmul.bf16.gmra.mxu0 %v2160
        %v2678 = vpop.f32.mrf.mxu0
        %v2679 = vadd.f32 0.0, %v2678
        %v2680 = vpop.f32.mrf.mxu0
        %v2681 = vadd.f32 0.0, %v2680
        %2682 = vmatmul.bf16.gmra.mxu0 %v2594
        %v2683 = vpop.f32.mrf.mxu0
        %v2684 = vadd.f32 0.0, %v2683
        %v2685 = vpop.f32.mrf.mxu0
        %v2686 = vadd.f32 0.0, %v2685
        %2687 = vdwg.mxu0
        %v2688 = vadd.f32 %v2542, %v2609
        %v2689 = vadd.f32 %v2543, %v2611
        %v2690 = vadd.f32 %v2544, %v2614
        %v2691 = vadd.f32 %v2545, %v2616
        %v2692 = vadd.f32 %v2546, %v2619
        %v2693 = vadd.f32 %v2547, %v2621
        %v2694 = vadd.f32 %v2548, %v2624
        %v2695 = vadd.f32 %v2549, %v2626
        %v2696 = vadd.f32 %v2550, %v2629
        %v2697 = vadd.f32 %v2551, %v2631
        %v2698 = vadd.f32 %v2552, %v2634
        %v2699 = vadd.f32 %v2553, %v2636
        %v2700 = vadd.f32 %v2554, %v2639
        %v2701 = vadd.f32 %v2555, %v2641
        %v2702 = vadd.f32 %v2556, %v2644
        %v2703 = vadd.f32 %v2557, %v2646
        %v2704 = vadd.f32 %v2558, %v2649
        %v2705 = vadd.f32 %v2559, %v2651
        %v2706 = vadd.f32 %v2560, %v2654
        %v2707 = vadd.f32 %v2561, %v2656
        %v2708 = vadd.f32 %v2562, %v2659
        %v2709 = vadd.f32 %v2563, %v2661
        %v2710 = vadd.f32 %v2564, %v2664
        %v2711 = vadd.f32 %v2565, %v2666
        %v2712 = vadd.f32 %v2566, %v2669
        %v2713 = vadd.f32 %v2567, %v2671
        %v2714 = vadd.f32 %v2568, %v2674
        %v2715 = vadd.f32 %v2569, %v2676
        %v2716 = vadd.f32 %v2570, %v2679
        %v2717 = vadd.f32 %v2571, %v2681
        %v2718 = vadd.f32 %v2572, %v2684
        %v2719 = vadd.f32 %v2573, %v2686
        %vm2720 = vcmask 523264
        %2721 = vst.msk [vmem:[#allocation3] sm:$0xff] %vm2720, %v2688
        %2722 = vst.msk [vmem:[#allocation3 + $0x8] sm:$0xff] %vm2720, %v2689
        %2723 = vst.msk [vmem:[#allocation3 + $0x10] sm:$0xff] %vm2720, %v2690
        %2724 = vst.msk [vmem:[#allocation3 + $0x18] sm:$0xff] %vm2720, %v2691
        %2725 = vst.msk [vmem:[#allocation3 + $0x20] sm:$0xff] %vm2720, %v2692
        %2726 = vst.msk [vmem:[#allocation3 + $0x28] sm:$0xff] %vm2720, %v2693
        %2727 = vst.msk [vmem:[#allocation3 + $0x30] sm:$0xff] %vm2720, %v2694
        %2728 = vst.msk [vmem:[#allocation3 + $0x38] sm:$0xff] %vm2720, %v2695
        %2729 = vst.msk [vmem:[#allocation3 + $0x40] sm:$0xff] %vm2720, %v2696
        %2730 = vst.msk [vmem:[#allocation3 + $0x48] sm:$0xff] %vm2720, %v2697
        %2731 = vst.msk [vmem:[#allocation3 + $0x50] sm:$0xff] %vm2720, %v2698
        %2732 = vst.msk [vmem:[#allocation3 + $0x58] sm:$0xff] %vm2720, %v2699
        %2733 = vst.msk [vmem:[#allocation3 + $0x60] sm:$0xff] %vm2720, %v2700
        %2734 = vst.msk [vmem:[#allocation3 + $0x68] sm:$0xff] %vm2720, %v2701
        %2735 = vst.msk [vmem:[#allocation3 + $0x70] sm:$0xff] %vm2720, %v2702
        %2736 = vst.msk [vmem:[#allocation3 + $0x78] sm:$0xff] %vm2720, %v2703
        %2737 = vst.msk [vmem:[#allocation3 + $0x80] sm:$0xff] %vm2720, %v2704
        %2738 = vst.msk [vmem:[#allocation3 + $0x88] sm:$0xff] %vm2720, %v2705
        %2739 = vst.msk [vmem:[#allocation3 + $0x90] sm:$0xff] %vm2720, %v2706
        %2740 = vst.msk [vmem:[#allocation3 + $0x98] sm:$0xff] %vm2720, %v2707
        %2741 = vst.msk [vmem:[#allocation3 + $0xa0] sm:$0xff] %vm2720, %v2708
        %2742 = vst.msk [vmem:[#allocation3 + $0xa8] sm:$0xff] %vm2720, %v2709
        %2743 = vst.msk [vmem:[#allocation3 + $0xb0] sm:$0xff] %vm2720, %v2710
        %2744 = vst.msk [vmem:[#allocation3 + $0xb8] sm:$0xff] %vm2720, %v2711
        %2745 = vst.msk [vmem:[#allocation3 + $0xc0] sm:$0xff] %vm2720, %v2712
        %2746 = vst.msk [vmem:[#allocation3 + $0xc8] sm:$0xff] %vm2720, %v2713
        %2747 = vst.msk [vmem:[#allocation3 + $0xd0] sm:$0xff] %vm2720, %v2714
        %2748 = vst.msk [vmem:[#allocation3 + $0xd8] sm:$0xff] %vm2720, %v2715
        %2749 = vst.msk [vmem:[#allocation3 + $0xe0] sm:$0xff] %vm2720, %v2716
        %2750 = vst.msk [vmem:[#allocation3 + $0xe8] sm:$0xff] %vm2720, %v2717
        %2751 = vst.msk [vmem:[#allocation3 + $0xf0] sm:$0xff] %vm2720, %v2718
        %2752 = vst.msk [vmem:[#allocation3 + $0xf8] sm:$0xff] %vm2720, %v2719
        // Predicated region
        $region49: #{tpu_custom_call.1} parent=43 // pred_check
          %p2753 = pneg %p291
        $region50: #{tpu_custom_call.1} parent=43 // pred_check_branch
          %2755 = sbr.rel (%p2753) target = $region52
        $region51: #{tpu_custom_call.1} parent=43 // pred_region
          %v2756 = vld [vmem:[%s2] sm:$0x1]
          %v2758 = vperm.slane %v2756, 0
          %v2760 = vmul.f32 %v2688, %v2758
          %v2761 = vmul.f32 %v2689, %v2758
          %v2762 = vmul.f32 %v2690, %v2758
          %v2763 = vmul.f32 %v2691, %v2758
          %v2764 = vmul.f32 %v2692, %v2758
          %v2765 = vmul.f32 %v2693, %v2758
          %v2766 = vmul.f32 %v2694, %v2758
          %v2767 = vmul.f32 %v2695, %v2758
          %v2768 = vmul.f32 %v2696, %v2758
          %v2769 = vmul.f32 %v2697, %v2758
          %v2770 = vmul.f32 %v2698, %v2758
          %v2771 = vmul.f32 %v2699, %v2758
          %v2772 = vmul.f32 %v2700, %v2758
          %v2773 = vmul.f32 %v2701, %v2758
          %v2774 = vmul.f32 %v2702, %v2758
          %v2775 = vmul.f32 %v2703, %v2758
          %v2776 = vmul.f32 %v2704, %v2758
          %v2777 = vmul.f32 %v2705, %v2758
          %v2778 = vmul.f32 %v2706, %v2758
          %v2779 = vmul.f32 %v2707, %v2758
          %v2780 = vmul.f32 %v2708, %v2758
          %v2781 = vmul.f32 %v2709, %v2758
          %v2782 = vmul.f32 %v2710, %v2758
          %v2783 = vmul.f32 %v2711, %v2758
          %v2784 = vmul.f32 %v2712, %v2758
          %v2785 = vmul.f32 %v2713, %v2758
          %v2786 = vmul.f32 %v2714, %v2758
          %v2787 = vmul.f32 %v2715, %v2758
          %v2788 = vmul.f32 %v2716, %v2758
          %v2789 = vmul.f32 %v2717, %v2758
          %v2790 = vmul.f32 %v2718, %v2758
          %v2791 = vmul.f32 %v2719, %v2758
          %v2792 = vld [vmem:[%s3] sm:$0x1]
          %v2794 = vperm.slane %v2792, 0
          %v2796 = vadd.f32 %v2760, %v2794
          %v2797 = vadd.f32 %v2761, %v2794
          %v2798 = vadd.f32 %v2762, %v2794
          %v2799 = vadd.f32 %v2763, %v2794
          %v2800 = vadd.f32 %v2764, %v2794
          %v2801 = vadd.f32 %v2765, %v2794
          %v2802 = vadd.f32 %v2766, %v2794
          %v2803 = vadd.f32 %v2767, %v2794
          %v2804 = vadd.f32 %v2768, %v2794
          %v2805 = vadd.f32 %v2769, %v2794
          %v2806 = vadd.f32 %v2770, %v2794
          %v2807 = vadd.f32 %v2771, %v2794
          %v2808 = vadd.f32 %v2772, %v2794
          %v2809 = vadd.f32 %v2773, %v2794
          %v2810 = vadd.f32 %v2774, %v2794
          %v2811 = vadd.f32 %v2775, %v2794
          %v2812 = vadd.f32 %v2776, %v2794
          %v2813 = vadd.f32 %v2777, %v2794
          %v2814 = vadd.f32 %v2778, %v2794
          %v2815 = vadd.f32 %v2779, %v2794
          %v2816 = vadd.f32 %v2780, %v2794
          %v2817 = vadd.f32 %v2781, %v2794
          %v2818 = vadd.f32 %v2782, %v2794
          %v2819 = vadd.f32 %v2783, %v2794
          %v2820 = vadd.f32 %v2784, %v2794
          %v2821 = vadd.f32 %v2785, %v2794
          %v2822 = vadd.f32 %v2786, %v2794
          %v2823 = vadd.f32 %v2787, %v2794
          %v2824 = vadd.f32 %v2788, %v2794
          %v2825 = vadd.f32 %v2789, %v2794
          %v2826 = vadd.f32 %v2790, %v2794
          %v2827 = vadd.f32 %v2791, %v2794
          %v2828 = vmax.f32 %v2796, 0.0
          %v2829 = vmax.f32 %v2797, 0.0
          %v2830 = vmax.f32 %v2798, 0.0
          %v2831 = vmax.f32 %v2799, 0.0
          %v2832 = vmax.f32 %v2800, 0.0
          %v2833 = vmax.f32 %v2801, 0.0
          %v2834 = vmax.f32 %v2802, 0.0
          %v2835 = vmax.f32 %v2803, 0.0
          %v2836 = vmax.f32 %v2804, 0.0
          %v2837 = vmax.f32 %v2805, 0.0
          %v2838 = vmax.f32 %v2806, 0.0
          %v2839 = vmax.f32 %v2807, 0.0
          %v2840 = vmax.f32 %v2808, 0.0
          %v2841 = vmax.f32 %v2809, 0.0
          %v2842 = vmax.f32 %v2810, 0.0
          %v2843 = vmax.f32 %v2811, 0.0
          %v2844 = vmax.f32 %v2812, 0.0
          %v2845 = vmax.f32 %v2813, 0.0
          %v2846 = vmax.f32 %v2814, 0.0
          %v2847 = vmax.f32 %v2815, 0.0
          %v2848 = vmax.f32 %v2816, 0.0
          %v2849 = vmax.f32 %v2817, 0.0
          %v2850 = vmax.f32 %v2818, 0.0
          %v2851 = vmax.f32 %v2819, 0.0
          %v2852 = vmax.f32 %v2820, 0.0
          %v2853 = vmax.f32 %v2821, 0.0
          %v2854 = vmax.f32 %v2822, 0.0
          %v2855 = vmax.f32 %v2823, 0.0
          %v2856 = vmax.f32 %v2824, 0.0
          %v2857 = vmax.f32 %v2825, 0.0
          %v2858 = vmax.f32 %v2826, 0.0
          %v2859 = vmax.f32 %v2827, 0.0
          %v2860 = vpack.c.bf16 %v2828, %v2828
          %v2861 = vpack.c.bf16 %v2829, %v2829
          %v2862 = vpack.c.bf16 %v2830, %v2830
          %v2863 = vpack.c.bf16 %v2831, %v2831
          %v2864 = vpack.c.bf16 %v2832, %v2832
          %v2865 = vpack.c.bf16 %v2833, %v2833
          %v2866 = vpack.c.bf16 %v2834, %v2834
          %v2867 = vpack.c.bf16 %v2835, %v2835
          %v2868 = vpack.c.bf16 %v2836, %v2836
          %v2869 = vpack.c.bf16 %v2837, %v2837
          %v2870 = vpack.c.bf16 %v2838, %v2838
          %v2871 = vpack.c.bf16 %v2839, %v2839
          %v2872 = vpack.c.bf16 %v2840, %v2840
          %v2873 = vpack.c.bf16 %v2841, %v2841
          %v2874 = vpack.c.bf16 %v2842, %v2842
          %v2875 = vpack.c.bf16 %v2843, %v2843
          %v2876 = vpack.c.bf16 %v2844, %v2844
          %v2877 = vpack.c.bf16 %v2845, %v2845
          %v2878 = vpack.c.bf16 %v2846, %v2846
          %v2879 = vpack.c.bf16 %v2847, %v2847
          %v2880 = vpack.c.bf16 %v2848, %v2848
          %v2881 = vpack.c.bf16 %v2849, %v2849
          %v2882 = vpack.c.bf16 %v2850, %v2850
          %v2883 = vpack.c.bf16 %v2851, %v2851
          %v2884 = vpack.c.bf16 %v2852, %v2852
          %v2885 = vpack.c.bf16 %v2853, %v2853
          %v2886 = vpack.c.bf16 %v2854, %v2854
          %v2887 = vpack.c.bf16 %v2855, %v2855
          %v2888 = vpack.c.bf16 %v2856, %v2856
          %v2889 = vpack.c.bf16 %v2857, %v2857
          %v2890 = vpack.c.bf16 %v2858, %v2858
          %v2891 = vpack.c.bf16 %v2859, %v2859
          %v2892 = vld [vmem:[%s4] sm:$0xf]
          %v2893 = vld [vmem:[%s4 + $0x4] sm:$0xf]
          %v2894 = vld [vmem:[%s4 + $0x8] sm:$0xf]
          %v2895 = vld [vmem:[%s4 + $0xc] sm:$0xf]
          %v2896 = vld [vmem:[%s4 + $0x10] sm:$0xf]
          %v2897 = vld [vmem:[%s4 + $0x14] sm:$0xf]
          %v2898 = vld [vmem:[%s4 + $0x18] sm:$0xf]
          %v2899 = vld [vmem:[%s4 + $0x1c] sm:$0xf]
          %v2900 = vld [vmem:[%s5] sm:$0x1]
          %v2902 = vperm.slane %v2900, 0
          %v2936 = vunpack.c.l.b16 %v2860
          %v2937 = vunpack.c.l.b16 %v2861
          %v2938 = vunpack.c.l.b16 %v2862
          %v2939 = vunpack.c.l.b16 %v2863
          %v2940 = vunpack.c.l.b16 %v2864
          %v2941 = vunpack.c.l.b16 %v2865
          %v2942 = vunpack.c.l.b16 %v2866
          %v2943 = vunpack.c.l.b16 %v2867
          %v2944 = vunpack.c.l.b16 %v2868
          %v2945 = vunpack.c.l.b16 %v2869
          %v2946 = vunpack.c.l.b16 %v2870
          %v2947 = vunpack.c.l.b16 %v2871
          %v2948 = vunpack.c.l.b16 %v2872
          %v2949 = vunpack.c.l.b16 %v2873
          %v2950 = vunpack.c.l.b16 %v2874
          %v2951 = vunpack.c.l.b16 %v2875
          %v2952 = vunpack.c.l.b16 %v2876
          %v2953 = vunpack.c.l.b16 %v2877
          %v2954 = vunpack.c.l.b16 %v2878
          %v2955 = vunpack.c.l.b16 %v2879
          %v2956 = vunpack.c.l.b16 %v2880
          %v2957 = vunpack.c.l.b16 %v2881
          %v2958 = vunpack.c.l.b16 %v2882
          %v2959 = vunpack.c.l.b16 %v2883
          %v2960 = vunpack.c.l.b16 %v2884
          %v2961 = vunpack.c.l.b16 %v2885
          %v2962 = vunpack.c.l.b16 %v2886
          %v2963 = vunpack.c.l.b16 %v2887
          %v2964 = vunpack.c.l.b16 %v2888
          %v2965 = vunpack.c.l.b16 %v2889
          %v2966 = vunpack.c.l.b16 %v2890
          %v2967 = vunpack.c.l.b16 %v2891
          %v2968 = vpack.c.b16 %v2937, %v2936
          %v2969 = vpack.c.b16 %v2939, %v2938
          %v2970 = vpack.c.b16 %v2941, %v2940
          %v2971 = vpack.c.b16 %v2943, %v2942
          %v2972 = vpack.c.b16 %v2945, %v2944
          %v2973 = vpack.c.b16 %v2947, %v2946
          %v2974 = vpack.c.b16 %v2949, %v2948
          %v2975 = vpack.c.b16 %v2951, %v2950
          %v2976 = vpack.c.b16 %v2953, %v2952
          %v2977 = vpack.c.b16 %v2955, %v2954
          %v2978 = vpack.c.b16 %v2957, %v2956
          %v2979 = vpack.c.b16 %v2959, %v2958
          %v2980 = vpack.c.b16 %v2961, %v2960
          %v2981 = vpack.c.b16 %v2963, %v2962
          %v2982 = vpack.c.b16 %v2965, %v2964
          %v2983 = vpack.c.b16 %v2967, %v2966
          %v2992 = vunpack.c.l.b16 %v2892
          %v2993 = vunpack.c.l.b16 %v2893
          %v2994 = vunpack.c.l.b16 %v2894
          %v2995 = vunpack.c.l.b16 %v2895
          %v2996 = vunpack.c.l.b16 %v2896
          %v2997 = vunpack.c.l.b16 %v2897
          %v2998 = vunpack.c.l.b16 %v2898
          %v2999 = vunpack.c.l.b16 %v2899
          %v3000 = vpack.c.b16 %v2993, %v2992
          %v3001 = vpack.c.b16 %v2995, %v2994
          %v3002 = vpack.c.b16 %v2997, %v2996
          %v3003 = vpack.c.b16 %v2999, %v2998
          %v3009 = vsel %vm2720, %v2968, 0
          %v3012 = vsel %vm2720, %v2969, 0
          %v3015 = vsel %vm2720, %v2970, 0
          %v3018 = vsel %vm2720, %v2971, 0
          %v3021 = vsel %vm2720, %v2972, 0
          %v3024 = vsel %vm2720, %v2973, 0
          %v3027 = vsel %vm2720, %v2974, 0
          %v3030 = vsel %vm2720, %v2975, 0
          %v3033 = vsel %vm2720, %v2976, 0
          %v3036 = vsel %vm2720, %v2977, 0
          %v3039 = vsel %vm2720, %v2978, 0
          %v3042 = vsel %vm2720, %v2979, 0
          %v3045 = vsel %vm2720, %v2980, 0
          %v3048 = vsel %vm2720, %v2981, 0
          %v3051 = vsel %vm2720, %v2982, 0
          %v3054 = vsel %vm2720, %v2983, 0
          %3056 = vmatpush.bf16.msra.mxu0 0
          %3057 = vmatpush.bf16.msra.mxu0 0
          %3058 = vmatpush.bf16.msra.mxu0 0
          %3059 = vmatpush.bf16.msra.mxu0 0
          %3060 = vmatpush.bf16.msra.mxu0 %v3003
          %3061 = vmatpush.bf16.msra.mxu0 %v3002
          %3062 = vmatpush.bf16.msra.mxu0 %v3001
          %3063 = vmatpush.bf16.msra.mxu0 %v3000
          %3064 = vmatmul.bf16.gmra.mxu0 %v3009
          %v3065 = vpop.f32.mrf.mxu0
          %v3066 = vadd.f32 %v2902, %v3065
          %v3067 = vpop.f32.mrf.mxu0
          %v3068 = vadd.f32 %v2902, %v3067
          %3069 = vmatmul.bf16.gmra.mxu0 %v3012
          %v3070 = vpop.f32.mrf.mxu0
          %v3071 = vadd.f32 %v2902, %v3070
          %v3072 = vpop.f32.mrf.mxu0
          %v3073 = vadd.f32 %v2902, %v3072
          %3074 = vmatmul.bf16.gmra.mxu0 %v3015
          %v3075 = vpop.f32.mrf.mxu0
          %v3076 = vadd.f32 %v2902, %v3075
          %v3077 = vpop.f32.mrf.mxu0
          %v3078 = vadd.f32 %v2902, %v3077
          %3079 = vmatmul.bf16.gmra.mxu0 %v3018
          %v3080 = vpop.f32.mrf.mxu0
          %v3081 = vadd.f32 %v2902, %v3080
          %v3082 = vpop.f32.mrf.mxu0
          %v3083 = vadd.f32 %v2902, %v3082
          %3084 = vmatmul.bf16.gmra.mxu0 %v3021
          %v3085 = vpop.f32.mrf.mxu0
          %v3086 = vadd.f32 %v2902, %v3085
          %v3087 = vpop.f32.mrf.mxu0
          %v3088 = vadd.f32 %v2902, %v3087
          %3089 = vmatmul.bf16.gmra.mxu0 %v3024
          %v3090 = vpop.f32.mrf.mxu0
          %v3091 = vadd.f32 %v2902, %v3090
          %v3092 = vpop.f32.mrf.mxu0
          %v3093 = vadd.f32 %v2902, %v3092
          %3094 = vmatmul.bf16.gmra.mxu0 %v3027
          %v3095 = vpop.f32.mrf.mxu0
          %v3096 = vadd.f32 %v2902, %v3095
          %v3097 = vpop.f32.mrf.mxu0
          %v3098 = vadd.f32 %v2902, %v3097
          %3099 = vmatmul.bf16.gmra.mxu0 %v3030
          %v3100 = vpop.f32.mrf.mxu0
          %v3101 = vadd.f32 %v2902, %v3100
          %v3102 = vpop.f32.mrf.mxu0
          %v3103 = vadd.f32 %v2902, %v3102
          %3104 = vmatmul.bf16.gmra.mxu0 %v3033
          %v3105 = vpop.f32.mrf.mxu0
          %v3106 = vadd.f32 %v2902, %v3105
          %v3107 = vpop.f32.mrf.mxu0
          %v3108 = vadd.f32 %v2902, %v3107
          %3109 = vmatmul.bf16.gmra.mxu0 %v3036
          %v3110 = vpop.f32.mrf.mxu0
          %v3111 = vadd.f32 %v2902, %v3110
          %v3112 = vpop.f32.mrf.mxu0
          %v3113 = vadd.f32 %v2902, %v3112
          %3114 = vmatmul.bf16.gmra.mxu0 %v3039
          %v3115 = vpop.f32.mrf.mxu0
          %v3116 = vadd.f32 %v2902, %v3115
          %v3117 = vpop.f32.mrf.mxu0
          %v3118 = vadd.f32 %v2902, %v3117
          %3119 = vmatmul.bf16.gmra.mxu0 %v3042
          %v3120 = vpop.f32.mrf.mxu0
          %v3121 = vadd.f32 %v2902, %v3120
          %v3122 = vpop.f32.mrf.mxu0
          %v3123 = vadd.f32 %v2902, %v3122
          %3124 = vmatmul.bf16.gmra.mxu0 %v3045
          %v3125 = vpop.f32.mrf.mxu0
          %v3126 = vadd.f32 %v2902, %v3125
          %v3127 = vpop.f32.mrf.mxu0
          %v3128 = vadd.f32 %v2902, %v3127
          %3129 = vmatmul.bf16.gmra.mxu0 %v3048
          %v3130 = vpop.f32.mrf.mxu0
          %v3131 = vadd.f32 %v2902, %v3130
          %v3132 = vpop.f32.mrf.mxu0
          %v3133 = vadd.f32 %v2902, %v3132
          %3134 = vmatmul.bf16.gmra.mxu0 %v3051
          %v3135 = vpop.f32.mrf.mxu0
          %v3136 = vadd.f32 %v2902, %v3135
          %v3137 = vpop.f32.mrf.mxu0
          %v3138 = vadd.f32 %v2902, %v3137
          %3139 = vmatmul.bf16.gmra.mxu0 %v3054
          %v3140 = vpop.f32.mrf.mxu0
          %v3141 = vadd.f32 %v2902, %v3140
          %v3142 = vpop.f32.mrf.mxu0
          %v3143 = vadd.f32 %v2902, %v3142
          %3144 = vdwg.mxu0
          %v3145 = vpack.c.bf16 %v3066, %v3066
          %v3146 = vpack.c.bf16 %v3068, %v3068
          %v3147 = vpack.c.bf16 %v3071, %v3071
          %v3148 = vpack.c.bf16 %v3073, %v3073
          %v3149 = vpack.c.bf16 %v3076, %v3076
          %v3150 = vpack.c.bf16 %v3078, %v3078
          %v3151 = vpack.c.bf16 %v3081, %v3081
          %v3152 = vpack.c.bf16 %v3083, %v3083
          %v3153 = vpack.c.bf16 %v3086, %v3086
          %v3154 = vpack.c.bf16 %v3088, %v3088
          %v3155 = vpack.c.bf16 %v3091, %v3091
          %v3156 = vpack.c.bf16 %v3093, %v3093
          %v3157 = vpack.c.bf16 %v3096, %v3096
          %v3158 = vpack.c.bf16 %v3098, %v3098
          %v3159 = vpack.c.bf16 %v3101, %v3101
          %v3160 = vpack.c.bf16 %v3103, %v3103
          %v3161 = vpack.c.bf16 %v3106, %v3106
          %v3162 = vpack.c.bf16 %v3108, %v3108
          %v3163 = vpack.c.bf16 %v3111, %v3111
          %v3164 = vpack.c.bf16 %v3113, %v3113
          %v3165 = vpack.c.bf16 %v3116, %v3116
          %v3166 = vpack.c.bf16 %v3118, %v3118
          %v3167 = vpack.c.bf16 %v3121, %v3121
          %v3168 = vpack.c.bf16 %v3123, %v3123
          %v3169 = vpack.c.bf16 %v3126, %v3126
          %v3170 = vpack.c.bf16 %v3128, %v3128
          %v3171 = vpack.c.bf16 %v3131, %v3131
          %v3172 = vpack.c.bf16 %v3133, %v3133
          %v3173 = vpack.c.bf16 %v3136, %v3136
          %v3174 = vpack.c.bf16 %v3138, %v3138
          %v3175 = vpack.c.bf16 %v3141, %v3141
          %v3176 = vpack.c.bf16 %v3143, %v3143
          %3177 = vst [vmem:[%s277] sm:$0xf] %v3145
          %3178 = vst [vmem:[%s277 + $0x4] sm:$0xf] %v3146
          %3179 = vst [vmem:[%s277 + $0x8] sm:$0xf] %v3147
          %3180 = vst [vmem:[%s277 + $0xc] sm:$0xf] %v3148
          %3181 = vst [vmem:[%s277 + $0x10] sm:$0xf] %v3149
          %3182 = vst [vmem:[%s277 + $0x14] sm:$0xf] %v3150
          %3183 = vst [vmem:[%s277 + $0x18] sm:$0xf] %v3151
          %3184 = vst [vmem:[%s277 + $0x1c] sm:$0xf] %v3152
          %3185 = vst [vmem:[%s277 + $0x20] sm:$0xf] %v3153
          %3186 = vst [vmem:[%s277 + $0x24] sm:$0xf] %v3154
          %3187 = vst [vmem:[%s277 + $0x28] sm:$0xf] %v3155
          %3188 = vst [vmem:[%s277 + $0x2c] sm:$0xf] %v3156
          %3189 = vst [vmem:[%s277 + $0x30] sm:$0xf] %v3157
          %3190 = vst [vmem:[%s277 + $0x34] sm:$0xf] %v3158
          %3191 = vst [vmem:[%s277 + $0x38] sm:$0xf] %v3159
          %3192 = vst [vmem:[%s277 + $0x3c] sm:$0xf] %v3160
          %3193 = vst [vmem:[%s277 + $0x40] sm:$0xf] %v3161
          %3194 = vst [vmem:[%s277 + $0x44] sm:$0xf] %v3162
          %3195 = vst [vmem:[%s277 + $0x48] sm:$0xf] %v3163
          %3196 = vst [vmem:[%s277 + $0x4c] sm:$0xf] %v3164
          %3197 = vst [vmem:[%s277 + $0x50] sm:$0xf] %v3165
          %3198 = vst [vmem:[%s277 + $0x54] sm:$0xf] %v3166
          %3199 = vst [vmem:[%s277 + $0x58] sm:$0xf] %v3167
          %3200 = vst [vmem:[%s277 + $0x5c] sm:$0xf] %v3168
          %3201 = vst [vmem:[%s277 + $0x60] sm:$0xf] %v3169
          %3202 = vst [vmem:[%s277 + $0x64] sm:$0xf] %v3170
          %3203 = vst [vmem:[%s277 + $0x68] sm:$0xf] %v3171
          %3204 = vst [vmem:[%s277 + $0x6c] sm:$0xf] %v3172
          %3205 = vst [vmem:[%s277 + $0x70] sm:$0xf] %v3173
          %3206 = vst [vmem:[%s277 + $0x74] sm:$0xf] %v3174
          %3207 = vst [vmem:[%s277 + $0x78] sm:$0xf] %v3175
          %3208 = vst [vmem:[%s277 + $0x7c] sm:$0xf] %v3176
        $region52: #{tpu_custom_call.1} parent=43 // pred_fallthru
          _
        %s3209 = sand.u32 %s178, 1
        %s3210 = scalar_lea.sflag [#allocation5], %s3209
        %s3211 = sand.u32 %s178, 1
        %s3212 = smul.addr %s3211, 128
        %s3213 = scalar_lea.vmem [#allocation4], %s3212
        // Predicated region
        $region53: #{tpu_custom_call.1} parent=43 // pred_check
          %p3214 = pneg %p188
        $region54: #{tpu_custom_call.1} parent=43 // pred_check_branch
          %3216 = sbr.rel (%p3214) target = $region56
        $region55: #{tpu_custom_call.1} parent=43 // pred_region
          %3218 = vsyncadd %s3210, 0
          %s3219 = smul.addr %s24, 32
          %s3220 = smul.addr %s3219, 4
          %s3221 = scalar_lea.hbm %s6, %s3220
          %s3222 = sshll.u32 %s3213, 4
          %s3223 = int_to_ptr.vmem [resolvable:$true] %s3222
          %s3224 = sshll.u32 %s3221, 4
          %s3225 = int_to_ptr.hbm [resolvable:$true] %s3224
          %3230 = dma.vmem_to_hbm [thread:$0]  %s3223, 2048, %s3225, %s3210, 64, 64, 4
        $region56: #{tpu_custom_call.1} parent=43 // pred_fallthru
          _
      $region44: #{tpu_custom_call.1} parent=5 // pred_fallthru
        _
      %p3231 = scmp.le.s32.totalorder 2, %s15
      // Predicated region
      $region57: #{tpu_custom_call.1} parent=5 // pred_check
        %p3232 = pneg %p3231
      $region58: #{tpu_custom_call.1} parent=5 // pred_check_branch
        %3234 = sbr.rel (%p3232) target = $region60
      $region59: #{tpu_custom_call.1} parent=5 // pred_region
        %s3235 = ssub.s32 %s15, 2
        // Predicated region
        $region61: #{tpu_custom_call.1} parent=59 // pred_check
          %p3236 = pneg %p194
        $region62: #{tpu_custom_call.1} parent=59 // pred_check_branch
          %3238 = sbr.rel (%p3236) target = $region64
        $region63: #{tpu_custom_call.1} parent=59 // pred_region
          %s3239 = sand.u32 %s179, 1
          %s3240 = scalar_lea.sflag [#allocation5], %s3239
          %s3241 = sand.u32 %s179, 1
          %s3242 = smul.addr %s3241, 128
          %s3243 = scalar_lea.vmem [#allocation4], %s3242
          %3245 = dma.done %s3240, 2048
        $region64: #{tpu_custom_call.1} parent=59 // pred_fallthru
          _
      $region60: #{tpu_custom_call.1} parent=5 // pred_fallthru
        _
    $region6: #{tpu_custom_call.1} parent=1 // loop_footer
      %s19 = sadd.s32 1, %s15
    $region7: #{tpu_custom_call.1} parent=1 // loop_footer_branch
      %14 = sbr.rel target = $region3
    $region8: #{tpu_custom_call.1} parent=1 // loop_exit
      _
    %3246 = vsyncpa [#allocation5], 1
    %s3247 = scalar_lea.sflag [#allocation5], 1
    %3248 = vsyncpa %s3247, 1

</llo_original>
